<compile_context>
chip_gen: v7x
topology: tpu7x:2x2x1
jax: 0.10.0
libtpu: 0.0.40
codegen_flags: <defaults>
</compile_context>

<pallas_src>
import functools
import math

import jax
import jax.numpy as jnp
from jax.experimental import pallas as pl
from jax.experimental.pallas import tpu as pltpu

F32 = jnp.float32
BF16 = jnp.bfloat16
NEG_INF = float(jnp.finfo(jnp.float32).min)   # matches torch.finfo(float32).min


# ----------------------------- Pallas kernels ------------------------------

def _linear_kernel(*refs, has_bias):
    """Tiled matmul with f32 VMEM accumulator (optionally + bias on last k step)."""
    if has_bias:
        x_ref, w_ref, b_ref, o_ref, acc_ref = refs
    else:
        x_ref, w_ref, o_ref, acc_ref = refs
        b_ref = None
    k = pl.program_id(2)

    @pl.when(k == 0)
    def _():
        acc_ref[...] = jnp.zeros_like(acc_ref)

    acc_ref[...] += jnp.dot(x_ref[...].astype(BF16), w_ref[...],
                            preferred_element_type=jnp.float32)

    @pl.when(k == pl.num_programs(2) - 1)
    def _():
        r = acc_ref[...]
        if has_bias:
            r = r + b_ref[...].astype(jnp.float32)
        o_ref[...] = r.astype(o_ref.dtype)


def tiled_linear(x, w, bias=None, *, tm=256, tn=256, tk=512):
    """x: (M, K) f32, w: (K, N) bf16 -> (M, N) f32.  Tiled, double-buffered."""
    M, K = x.shape
    N = w.shape[1]
    tm = tm if M % tm == 0 else M
    tn = tn if N % tn == 0 else N
    tk = tk if K % tk == 0 else K
    in_specs = [pl.BlockSpec((tm, tk), lambda i, j, k: (i, k)),
                pl.BlockSpec((tk, tn), lambda i, j, k: (k, j))]
    args = [x, w]
    if bias is not None:
        in_specs.append(pl.BlockSpec((1, tn), lambda i, j, k: (0, j)))
        args.append(bias.reshape(1, N))
    return pl.pallas_call(
        functools.partial(_linear_kernel, has_bias=bias is not None),
        out_shape=jax.ShapeDtypeStruct((M, N), F32),
        grid=(M // tm, N // tn, K // tk),
        in_specs=in_specs,
        out_specs=pl.BlockSpec((tm, tn), lambda i, j, k: (i, j)),
        scratch_shapes=[pltpu.VMEM((tm, tn), jnp.float32)],
        compiler_params=pltpu.CompilerParams(
            dimension_semantics=("parallel", "parallel", "arbitrary")),
    )(*args)


def _rmsnorm_kernel(x_ref, w_ref, o_ref, *, eps):
    x = x_ref[...].astype(jnp.float32)
    var = jnp.mean(x * x, axis=-1, keepdims=True)
    o_ref[...] = (w_ref[...] * (x * jax.lax.rsqrt(var + eps))).astype(o_ref.dtype)


def rmsnorm(x, w, eps, *, tm=256):
    """Final T5LayerNorm (RMS, no mean subtraction).  x: (B, L, D), w: (D,)."""
    B, L, D = x.shape
    x2d = x.reshape(-1, D)
    M = x2d.shape[0]
    tm = tm if M % tm == 0 else M
    out = pl.pallas_call(
        functools.partial(_rmsnorm_kernel, eps=eps),
        out_shape=jax.ShapeDtypeStruct((M, D), F32),
        grid=(M // tm,),
        in_specs=[pl.BlockSpec((tm, D), lambda i: (i, 0)),
                  pl.BlockSpec((1, D), lambda i: (0, 0))],
        out_specs=pl.BlockSpec((tm, D), lambda i: (i, 0)),
        compiler_params=pltpu.CompilerParams(dimension_semantics=("parallel",)),
    )(x2d, w.reshape(1, D))
    return out.reshape(B, L, D)


def _attn_block_kernel(*refs, n_heads, d_kv, eps, is_self):
    """Fused: RMSNorm -> QKV proj -> softmax attention -> O proj -> residual.

    One batch element per grid step.  Heads are unrolled in a static loop;
    each head's (Lq, d_kv) context is written into a VMEM scratch slab so the
    output projection is a single (Lq, H*d_kv) @ (H*d_kv, D) MXU matmul.
    T5 attention has NO 1/sqrt(d) scaling.
    """
    if is_self:
        h_ref, lnw_ref, wqkv_ref, wo_ref, bias_ref, mask_ref, o_ref, ctx_ref = refs
    else:
        h_ref, kv_ref, lnw_ref, wqkv_ref, wo_ref, mask_ref, o_ref, ctx_ref = refs
        bias_ref = None
    Hdkv = n_heads * d_kv

    h = h_ref[0].astype(jnp.float32)                              # (Lq, D)
    var = jnp.mean(h * h, axis=-1, keepdims=True)
    q_src = lnw_ref[...] * (h * jax.lax.rsqrt(var + eps))          # (Lq, D)

    wqkv = wqkv_ref[...]                                           # (D, 3*Hdkv) bf16
    if is_self:
        qkv = jnp.dot(q_src.astype(BF16), wqkv,
                      preferred_element_type=jnp.float32)          # (Lq, 3*Hdkv)
        q = qkv[:, :Hdkv]
        k = qkv[:, Hdkv:2 * Hdkv]
        v = qkv[:, 2 * Hdkv:]
    else:
        # cross attention: K/V come from (already-normalised) encoder states.
        kv_src = kv_ref[0].astype(jnp.float32)                     # (Lk, D)
        q = jnp.dot(q_src.astype(BF16), wqkv[:, :Hdkv],
                    preferred_element_type=jnp.float32)            # (Lq, Hdkv)
        kvp = jnp.dot(kv_src.astype(BF16), wqkv[:, Hdkv:],
                      preferred_element_type=jnp.float32)          # (Lk, 2*Hdkv)
        k = kvp[:, :Hdkv]
        v = kvp[:, Hdkv:]

    mask = mask_ref[0].astype(jnp.float32)                         # (1|Lq, Lk)

    for hh in range(n_heads):
        sl = slice(hh * d_kv, (hh + 1) * d_kv)
        qh = q[:, sl].astype(BF16)
        kh = k[:, sl].astype(BF16)
        vh = v[:, sl].astype(BF16)
        s = jax.lax.dot_general(qh, kh, (((1,), (1,)), ((), ())),
                                preferred_element_type=jnp.float32)   # (Lq, Lk)
        s = s + mask
        if is_self:
            s = s + bias_ref[hh]
        # max-subtraction is load-bearing: fully masked rows stay finite.
        s = s - jnp.max(s, axis=-1, keepdims=True)
        p = jnp.exp(s)
        p = p * pl.reciprocal(jnp.sum(p, axis=-1, keepdims=True), approx=True)
        ctx_ref[:, sl] = jnp.dot(p.astype(BF16), vh,
                                 preferred_element_type=jnp.float32)  # (Lq, d_kv)

    # Single output-projection matmul over all heads + residual.
    y = jnp.dot(ctx_ref[...].astype(BF16), wo_ref[...],
                preferred_element_type=jnp.float32)                   # (Lq, D)
    o_ref[0] = (h + y).astype(o_ref.dtype)


def attention_block(h, kv, ln_w, wqkv, wo, bias, mask_add, *,
                    n_heads, d_kv, eps, is_self):
    """h: (B, Lq, D); kv: (B, Lk, D) (ignored when is_self); bias: (H, Lq, Lk) or None;
    mask_add: additive mask (B, 1|Lq, Lk)."""
    B, Lq, D = h.shape
    Hdkv = n_heads * d_kv
    Lk = Lq if is_self else kv.shape[1]
    mq = mask_add.shape[1]

    in_specs = [pl.BlockSpec((1, Lq, D), lambda b: (b, 0, 0))]
    args = [h]
    if not is_self:
        in_specs.append(pl.BlockSpec((1, Lk, D), lambda b: (b, 0, 0)))
        args.append(kv)
    in_specs += [pl.BlockSpec((1, D), lambda b: (0, 0)),
                 pl.BlockSpec((D, 3 * Hdkv), lambda b: (0, 0)),
                 pl.BlockSpec((Hdkv, D), lambda b: (0, 0))]
    args += [ln_w.reshape(1, D), wqkv, wo]
    if is_self:
        in_specs.append(pl.BlockSpec((n_heads, Lq, Lk), lambda b: (0, 0, 0)))
        args.append(bias)
    in_specs.append(pl.BlockSpec((1, mq, Lk), lambda b: (b, 0, 0)))
    args.append(mask_add)

    # TODO(synk): for long sequences (Lq*Lk per head > VMEM) this needs a
    # flash-style KV-tiled inner loop; fine at the target block sizes here.
    return pl.pallas_call(
        functools.partial(_attn_block_kernel, n_heads=n_heads, d_kv=d_kv,
                          eps=eps, is_self=is_self),
        out_shape=jax.ShapeDtypeStruct((B, Lq, D), F32),
        grid=(B,),
        in_specs=in_specs,
        out_specs=pl.BlockSpec((1, Lq, D), lambda b: (b, 0, 0)),
        scratch_shapes=[pltpu.VMEM((Lq, Hdkv), jnp.float32)],
        compiler_params=pltpu.CompilerParams(dimension_semantics=("parallel",)),
    )(*args)


def _ff_block_kernel(h_ref, lnw_ref, w01_ref, wo_ref, o_ref, *, eps, d_ff):
    """Fused: RMSNorm -> wo(gelu_new(x@wi_0) * (x@wi_1)) -> residual."""
    h = h_ref[...].astype(jnp.float32)                             # (tm, D)
    var = jnp.mean(h * h, axis=-1, keepdims=True)
    normed = lnw_ref[...] * (h * jax.lax.rsqrt(var + eps))
    h01 = jnp.dot(normed.astype(BF16), w01_ref[...],
                  preferred_element_type=jnp.float32)              # (tm, 2F)
    h0 = h01[:, :d_ff]
    h1 = h01[:, d_ff:]
    c = math.sqrt(2.0 / math.pi)                                   # gelu_new
    g = 0.5 * h0 * (1.0 + jnp.tanh(c * (h0 + 0.044715 * (h0 * h0 * h0))))
    y = jnp.dot((g * h1).astype(BF16), wo_ref[...],
                preferred_element_type=jnp.float32)                # (tm, D)
    o_ref[...] = (h + y).astype(o_ref.dtype)


def ff_block(h, ln_w, w01, wo, eps, *, tm=256):
    B, L, D = h.shape
    x2d = h.reshape(-1, D)
    M = x2d.shape[0]
    d_ff = w01.shape[1] // 2
    tm = tm if M % tm == 0 else M
    out = pl.pallas_call(
        functools.partial(_ff_block_kernel, eps=eps, d_ff=d_ff),
        out_shape=jax.ShapeDtypeStruct((M, D), F32),
        grid=(M // tm,),
        in_specs=[pl.BlockSpec((tm, D), lambda i: (i, 0)),
                  pl.BlockSpec((1, D), lambda i: (0, 0)),
                  pl.BlockSpec((D, 2 * d_ff), lambda i: (0, 0)),
                  pl.BlockSpec((d_ff, D), lambda i: (0, 0))],
        out_specs=pl.BlockSpec((tm, D), lambda i: (i, 0)),
        compiler_params=pltpu.CompilerParams(dimension_semantics=("parallel",)),
    )(x2d, ln_w.reshape(1, D), w01, wo)
    return out.reshape(B, L, D)


# ------------------------------- JAX glue -----------------------------------

def relative_position_bucket(relative_position, bidirectional, num_buckets, max_distance):
    relative_buckets = jnp.zeros_like(relative_position)
    if bidirectional:
        num_buckets //= 2
        relative_buckets = relative_buckets + (relative_position > 0).astype(jnp.int32) * num_buckets
        relative_position = jnp.abs(relative_position)
    else:
        relative_position = -jnp.minimum(relative_position, 0)
    max_exact = num_buckets // 2
    is_small = relative_position < max_exact
    rp = jnp.maximum(relative_position, 1).astype(jnp.float32)  # guard log(0); masked by is_small
    rel_if_large = max_exact + (
        jnp.log(rp / max_exact) / math.log(max_distance / max_exact) * (num_buckets - max_exact)
    ).astype(jnp.int32)
    rel_if_large = jnp.minimum(rel_if_large, num_buckets - 1)
    relative_buckets = relative_buckets + jnp.where(is_small, relative_position, rel_if_large)
    return relative_buckets


def compute_bias(rel_bias_weight, qlen, klen, bidirectional, num_buckets, max_distance):
    """Relative position bias, shape (H, qlen, klen) (shared across the batch)."""
    ctx = jnp.arange(qlen, dtype=jnp.int32)[:, None]
    mem = jnp.arange(klen, dtype=jnp.int32)[None, :]
    rp = mem - ctx
    bucket = relative_position_bucket(rp, bidirectional, num_buckets, max_distance)
    values = rel_bias_weight[bucket]                  # (qlen, klen, H) embedding gather (glue)
    return jnp.transpose(values, (2, 0, 1)).astype(F32)


def stack_forward(cfg, params, inputs_embeds, attention_mask,
                  encoder_hidden_states=None, encoder_attention_mask=None,
                  is_decoder=False):
    B, L, D = inputs_embeds.shape
    if attention_mask is None:
        attention_mask = jnp.ones((B, L), dtype=F32)
    attention_mask = attention_mask.astype(F32)
    H, dkv = cfg['num_heads'], cfg['d_kv']
    eps = cfg['layer_norm_epsilon']

    # Additive self-attention mask (applied exactly once, inside the kernel).
    if is_decoder:
        seq = jnp.arange(L)
        causal = (seq[None, :] <= seq[:, None]).astype(F32)          # (L, L)
        ext = causal[None, :, :] * attention_mask[:, None, :]        # (B, L, L)
    else:
        ext = attention_mask[:, None, :]                             # (B, 1, L)
    self_mask = (1.0 - ext) * NEG_INF

    cross_mask = None
    if is_decoder and encoder_hidden_states is not None:
        enc_mask = encoder_attention_mask
        if enc_mask is None:
            enc_mask = jnp.ones((B, encoder_hidden_states.shape[1]), F32)
        cross_mask = (1.0 - enc_mask.astype(F32)[:, None, :]) * NEG_INF   # (B, 1, Lk)

    # Layer-0 relative bias, reused by every layer's self-attention (HF semantics).
    rel_bias = compute_bias(params['blocks'][0]['rel_bias'], L, L, not is_decoder,
                            cfg['relative_attention_num_buckets'],
                            cfg['relative_attention_max_distance'])

    h = inputs_embeds
    for lp in params['blocks']:
        h = attention_block(h, h, lp['ln_self'], lp['wqkv_self'], lp['wo_self'],
                            rel_bias, self_mask,
                            n_heads=H, d_kv=dkv, eps=eps, is_self=True)
        if is_decoder and encoder_hidden_states is not None:
            h = attention_block(h, encoder_hidden_states, lp['ln_cross'],
                                lp['wqkv_cross'], lp['wo_cross'],
                                None, cross_mask,
                                n_heads=H, d_kv=dkv, eps=eps, is_self=False)
        h = ff_block(h, lp['ln_ff'], lp['w01'], lp['wo_ff'], eps)

    h = rmsnorm(h, params['final_ln'], eps)
    return h, attention_mask


def shift_right(tokens, cfg):
    shifted = jnp.zeros_like(tokens)
    shifted = shifted.at[:, 1:].set(tokens[:, :-1])
    shifted = shifted.at[:, 0].set(cfg['decoder_start_token_id'])
    return jnp.where(shifted == -100, cfg['pad_token_id'], shifted)


def cross_entropy(logits, targets):
    # CrossEntropyLoss(ignore_index=-100), mean over valid targets (plain JAX glue)
    valid = (targets != -100)
    tgt = jnp.where(valid, targets, 0)
    logz = jax.nn.logsumexp(logits, axis=-1)
    ll = jnp.take_along_axis(logits, tgt[:, None], axis=-1)[:, 0]
    nll = (logz - ll) * valid.astype(F32)
    return jnp.sum(nll) / jnp.maximum(jnp.sum(valid), 1)


def t5_forward(cfg, params, frames, attention_mask=None,
               decoder_input_ids=None, tokens=None):
    B, Le, n_mels = frames.shape
    D = cfg['d_model']

    # encoder_embedder: nn.Linear(n_mels, d_model)
    emb = tiled_linear(frames.reshape(-1, n_mels), params['enc_emb_w'],
                       bias=params['enc_emb_b']).reshape(B, Le, D)

    enc_h, _ = stack_forward(cfg, params['encoder'], emb, attention_mask,
                             is_decoder=False)

    if tokens is not None and decoder_input_ids is None:
        decoder_input_ids = shift_right(tokens, cfg)

    dec_emb = params['dec_emb'][decoder_input_ids]          # embedding gather (glue)
    dec_h, _ = stack_forward(cfg, params['decoder'], dec_emb, None,
                             encoder_hidden_states=enc_h,
                             encoder_attention_mask=attention_mask,
                             is_decoder=True)

    Ld = decoder_input_ids.shape[1]
    logits = tiled_linear(dec_h.reshape(-1, D), params['lm_head']
                          ).reshape(B, Ld, cfg['vocab_size'])

    loss = None
    if tokens is not None:
        loss = cross_entropy(logits.reshape(-1, cfg['vocab_size']), tokens.reshape(-1))
    return loss, logits, enc_h


# ----------------------------- parameter init -------------------------------

def init_params(cfg, key):
    factor = cfg['initializer_factor']
    D, dkv, H, Fff = cfg['d_model'], cfg['d_kv'], cfg['num_heads'], cfg['d_ff']
    Hdkv = H * dkv
    keys = iter(jax.random.split(key, 512))

    def nrm(shape, std, dtype=F32):
        return (jax.random.normal(next(keys), shape, F32) * std).astype(dtype)

    def attn_weights():
        wq = nrm((D, Hdkv), factor * (D * dkv) ** -0.5)
        wk = nrm((D, Hdkv), factor * D ** -0.5)
        wv = nrm((D, Hdkv), factor * D ** -0.5)
        wo = nrm((Hdkv, D), factor * Hdkv ** -0.5)
        # pre-cast matmul weights to bf16 (MXU operands); accumulation stays f32
        return jnp.concatenate([wq, wk, wv], axis=1).astype(BF16), wo.astype(BF16)

    def block_params(is_decoder, has_rel):
        wqkv, wo = attn_weights()
        wi_0 = nrm((D, Fff), factor * D ** -0.5)
        wi_1 = nrm((D, Fff), factor * D ** -0.5)
        bp = {'ln_self': jnp.full((D,), factor, F32),
              'wqkv_self': wqkv, 'wo_self': wo,
              'ln_ff': jnp.full((D,), factor, F32),
              'w01': jnp.concatenate([wi_0, wi_1], axis=1).astype(BF16),
              'wo_ff': nrm((Fff, D), factor * Fff ** -0.5, BF16)}
        if has_rel:
            bp['rel_bias'] = nrm((cfg['relative_attention_num_buckets'], H),
                                 factor * D ** -0.5)
        if is_decoder:
            wqkv_c, wo_c = attn_weights()
            bp['ln_cross'] = jnp.full((D,), factor, F32)
            bp['wqkv_cross'] = wqkv_c
            bp['wo_cross'] = wo_c
        return bp

    encoder = {'blocks': [block_params(False, i == 0) for i in range(cfg['num_layers'])],
               'final_ln': jnp.full((D,), factor, F32)}
    decoder = {'blocks': [block_params(True, i == 0) for i in range(cfg['num_decoder_layers'])],
               'final_ln': jnp.full((D,), factor, F32)}

    return {'enc_emb_w': nrm((cfg['n_mels'], D), cfg['n_mels'] ** -0.5, BF16),
            'enc_emb_b': jnp.zeros((D,), F32),
            'dec_emb': nrm((cfg['vocab_size'], D), factor * 1.0),
            'lm_head': nrm((D, cfg['vocab_size']), factor * 1.0, BF16),
            'encoder': encoder, 'decoder': decoder}


# ---------------------------------- main -------------------------------------

if __name__ == "__main__":
    cfg = dict(
        d_model=32, d_kv=8, num_heads=4, d_ff=64,
        num_layers=2, num_decoder_layers=2,
        vocab_size=64, n_mels=16,
        relative_attention_num_buckets=32,
        relative_attention_max_distance=128,
        layer_norm_epsilon=1e-6,
        dropout_rate=0.0,                 # eval mode: dropout is identity
        initializer_factor=1.0,
        decoder_start_token_id=1, pad_token_id=0, eos_token_id=2,
    )

    key = jax.random.PRNGKey(0)
    k_params, k_frames, k_tokens = jax.random.split(key, 3)
    params = init_params(cfg, k_params)

    B, L_enc, L_dec = 2, 8, 8
    frames = jax.random.normal(k_frames, (B, L_enc, cfg['n_mels']), F32)
    attention_mask = jnp.ones((B, L_enc), jnp.int32)
    tokens = jax.random.randint(k_tokens, (B, L_dec), 0, cfg['vocab_size'])

    fwd = jax.jit(lambda p, f, m, t: t5_forward(cfg, p, f, attention_mask=m, tokens=t))
    loss, logits, enc_h = fwd(params, frames, attention_mask, tokens)
    jax.block_until_ready((loss, logits, enc_h))
    assert logits.shape == (B, L_dec, cfg['vocab_size'])
    assert enc_h.shape == (B, L_enc, cfg['d_model'])
    assert bool(jnp.isfinite(loss))
    # TODO(synk): generate() greedy-decoding loop is host-side control flow and is not kernelized.
    print("KERNEL_OK")
</pallas_src>

<mosaic_0001>
module attributes {stable_mosaic.version = 11 : i64} {
  func.func @_attn_block_kernel(%arg0: i32, %arg1: memref<1x8x32xf32, #tpu.memory_space<vmem>>, %arg2: memref<1x32xf32, #tpu.memory_space<vmem>>, %arg3: memref<32x96xbf16, #tpu.memory_space<vmem>>, %arg4: memref<32x32xbf16, #tpu.memory_space<vmem>>, %arg5: memref<4x8x8xf32, #tpu.memory_space<vmem>>, %arg6: memref<1x1x8xf32, #tpu.memory_space<vmem>>, %arg7: memref<1x8x32xf32, #tpu.memory_space<vmem>>, %arg8: memref<8x32xf32, #tpu.memory_space<vmem>>) attributes {dimension_semantics = [#tpu.dimension_semantics<parallel>], iteration_bounds = array<i64: 2>, scalar_prefetch = 0 : i64, scratch_operands = 1 : i64, tpu.core_type = #tpu.core_type<tc>, window_params = [{transform_indices = @transform_0, window_bounds = array<i64: 1, 8, 32>}, {pipeline_mode = #tpu.pipeline_mode<synchronous>, transform_indices = @transform_1, window_bounds = array<i64: 1, 32>}, {pipeline_mode = #tpu.pipeline_mode<synchronous>, transform_indices = @transform_2, window_bounds = array<i64: 32, 96>}, {pipeline_mode = #tpu.pipeline_mode<synchronous>, transform_indices = @transform_3, window_bounds = array<i64: 32, 32>}, {pipeline_mode = #tpu.pipeline_mode<synchronous>, transform_indices = @transform_4, window_bounds = array<i64: 4, 8, 8>}, {transform_indices = @transform_5, window_bounds = array<i64: 1, 1, 8>}, {transform_indices = @transform_6, window_bounds = array<i64: 1, 8, 32>}]} {
    %c0 = arith.constant 0 : index
    %c0_0 = arith.constant 0 : index
    %c0_1 = arith.constant 0 : index
    %0 = vector.load %arg1[%c0, %c0_0, %c0_1] : memref<1x8x32xf32, #tpu.memory_space<vmem>>, vector<1x8x32xf32>
    %1 = vector.shape_cast %0 : vector<1x8x32xf32> to vector<8x32xf32>
    %2 = arith.mulf %1, %1 : vector<8x32xf32>
    %cst = arith.constant dense<0.000000e+00> : vector<8xf32>
    %3 = vector.multi_reduction <add>, %2, %cst [1] : vector<8x32xf32> to vector<8xf32>
    %4 = vector.shape_cast %3 : vector<8xf32> to vector<8x1xf32>
    %cst_2 = arith.constant 3.200000e+01 : f32
    %5 = vector.broadcast %cst_2 : f32 to vector<8x1xf32>
    %6 = arith.divf %4, %5 : vector<8x1xf32>
    %c0_3 = arith.constant 0 : index
    %c0_4 = arith.constant 0 : index
    %7 = vector.load %arg2[%c0_3, %c0_4] : memref<1x32xf32, #tpu.memory_space<vmem>>, vector<1x32xf32>
    %cst_5 = arith.constant 9.99999997E-7 : f32
    %8 = vector.broadcast %cst_5 : f32 to vector<8x1xf32>
    %9 = arith.addf %6, %8 : vector<8x1xf32>
    %10 = math.rsqrt %9 : vector<8x1xf32>
    %11 = vector.broadcast %10 : vector<8x1xf32> to vector<8x32xf32>
    %12 = arith.mulf %1, %11 : vector<8x32xf32>
    %13 = vector.broadcast %7 : vector<1x32xf32> to vector<8x32xf32>
    %14 = arith.mulf %13, %12 : vector<8x32xf32>
    %c0_6 = arith.constant 0 : index
    %c0_7 = arith.constant 0 : index
    %15 = vector.load %arg3[%c0_6, %c0_7] : memref<32x96xbf16, #tpu.memory_space<vmem>>, vector<32x96xbf16>
    %16 = arith.truncf %14 : vector<8x32xf32> to vector<8x32xbf16>
    %cst_8 = arith.constant dense<0.000000e+00> : vector<8x96xf32>
    %17 = tpu.matmul %16, %15, %cst_8 {dimension_numbers = #tpu.dot_dimension_numbers<[1], [0], [0], [1], [0, 0, 1, 1], [], []>} : vector<8x32xbf16>, vector<32x96xbf16>, vector<8x96xf32> -> vector<8x96xf32>
    %18 = vector.extract_strided_slice %17 {offsets = [0, 0], sizes = [8, 32], strides = [1, 1]} : vector<8x96xf32> to vector<8x32xf32>
    %19 = vector.extract_strided_slice %17 {offsets = [0, 32], sizes = [8, 32], strides = [1, 1]} : vector<8x96xf32> to vector<8x32xf32>
    %20 = vector.extract_strided_slice %17 {offsets = [0, 64], sizes = [8, 32], strides = [1, 1]} : vector<8x96xf32> to vector<8x32xf32>
    %c0_9 = arith.constant 0 : index
    %c0_10 = arith.constant 0 : index
    %c0_11 = arith.constant 0 : index
    %21 = vector.load %arg6[%c0_9, %c0_10, %c0_11] : memref<1x1x8xf32, #tpu.memory_space<vmem>>, vector<1x1x8xf32>
    %22 = vector.shape_cast %21 : vector<1x1x8xf32> to vector<1x8xf32>
    %23 = vector.extract_strided_slice %18 {offsets = [0, 0], sizes = [8, 8], strides = [1, 1]} : vector<8x32xf32> to vector<8x8xf32>
    %24 = arith.truncf %23 : vector<8x8xf32> to vector<8x8xbf16>
    %25 = vector.extract_strided_slice %19 {offsets = [0, 0], sizes = [8, 8], strides = [1, 1]} : vector<8x32xf32> to vector<8x8xf32>
    %26 = arith.truncf %25 : vector<8x8xf32> to vector<8x8xbf16>
    %27 = vector.extract_strided_slice %20 {offsets = [0, 0], sizes = [8, 8], strides = [1, 1]} : vector<8x32xf32> to vector<8x8xf32>
    %28 = arith.truncf %27 : vector<8x8xf32> to vector<8x8xbf16>
    %cst_12 = arith.constant dense<0.000000e+00> : vector<8x8xf32>
    %29 = tpu.matmul %24, %26, %cst_12 {dimension_numbers = #tpu.dot_dimension_numbers<[1], [1], [0], [0], [0, 0, 1, 0], [], []>} : vector<8x8xbf16>, vector<8x8xbf16>, vector<8x8xf32> -> vector<8x8xf32>
    %30 = vector.broadcast %22 : vector<1x8xf32> to vector<8x8xf32>
    %31 = arith.addf %29, %30 : vector<8x8xf32>
    %c0_13 = arith.constant 0 : index
    %c0_14 = arith.constant 0 : index
    %c0_15 = arith.constant 0 : index
    %32 = vector.load %arg5[%c0_13, %c0_14, %c0_15] : memref<4x8x8xf32, #tpu.memory_space<vmem>>, vector<1x8x8xf32>
    %33 = vector.shape_cast %32 : vector<1x8x8xf32> to vector<8x8xf32>
    %34 = arith.addf %31, %33 : vector<8x8xf32>
    %cst_16 = arith.constant dense<0xFF800000> : vector<8xf32>
    %35 = vector.multi_reduction <maximumf>, %34, %cst_16 [1] : vector<8x8xf32> to vector<8xf32>
    %36 = vector.shape_cast %35 : vector<8xf32> to vector<8x1xf32>
    %37 = vector.broadcast %36 : vector<8x1xf32> to vector<8x8xf32>
    %38 = arith.subf %34, %37 : vector<8x8xf32>
    %39 = math.exp %38 : vector<8x8xf32>
    %cst_17 = arith.constant dense<0.000000e+00> : vector<8xf32>
    %40 = vector.multi_reduction <add>, %39, %cst_17 [1] : vector<8x8xf32> to vector<8xf32>
    %41 = vector.shape_cast %40 : vector<8xf32> to vector<8x1xf32>
    %42 = tpu.reciprocal %41 {approx = true} : vector<8x1xf32> -> vector<8x1xf32>
    %43 = vector.broadcast %42 : vector<8x1xf32> to vector<8x8xf32>
    %44 = arith.mulf %39, %43 : vector<8x8xf32>
    %45 = arith.truncf %44 : vector<8x8xf32> to vector<8x8xbf16>
    %cst_18 = arith.constant dense<0.000000e+00> : vector<8x8xf32>
    %46 = tpu.matmul %45, %28, %cst_18 {dimension_numbers = #tpu.dot_dimension_numbers<[1], [0], [0], [1], [0, 0, 1, 1], [], []>} : vector<8x8xbf16>, vector<8x8xbf16>, vector<8x8xf32> -> vector<8x8xf32>
    %c0_19 = arith.constant 0 : index
    %c0_20 = arith.constant 0 : index
    %47 = vector.load %arg8[%c0_19, %c0_20] : memref<8x32xf32, #tpu.memory_space<vmem>>, vector<8x8xf32>
    tpu.vector_store %arg8[%c0_19, %c0_20], %46 {strides = array<i32>} : memref<8x32xf32, #tpu.memory_space<vmem>>, vector<8x8xf32>,
    %48 = vector.extract_strided_slice %18 {offsets = [0, 8], sizes = [8, 8], strides = [1, 1]} : vector<8x32xf32> to vector<8x8xf32>
    %49 = arith.truncf %48 : vector<8x8xf32> to vector<8x8xbf16>
    %50 = vector.extract_strided_slice %19 {offsets = [0, 8], sizes = [8, 8], strides = [1, 1]} : vector<8x32xf32> to vector<8x8xf32>
    %51 = arith.truncf %50 : vector<8x8xf32> to vector<8x8xbf16>
    %52 = vector.extract_strided_slice %20 {offsets = [0, 8], sizes = [8, 8], strides = [1, 1]} : vector<8x32xf32> to vector<8x8xf32>
    %53 = arith.truncf %52 : vector<8x8xf32> to vector<8x8xbf16>
    %cst_21 = arith.constant dense<0.000000e+00> : vector<8x8xf32>
    %54 = tpu.matmul %49, %51, %cst_21 {dimension_numbers = #tpu.dot_dimension_numbers<[1], [1], [0], [0], [0, 0, 1, 0], [], []>} : vector<8x8xbf16>, vector<8x8xbf16>, vector<8x8xf32> -> vector<8x8xf32>
    %55 = vector.broadcast %22 : vector<1x8xf32> to vector<8x8xf32>
    %56 = arith.addf %54, %55 : vector<8x8xf32>
    %c1 = arith.constant 1 : index
    %c0_22 = arith.constant 0 : index
    %c0_23 = arith.constant 0 : index
    %57 = vector.load %arg5[%c1, %c0_22, %c0_23] : memref<4x8x8xf32, #tpu.memory_space<vmem>>, vector<1x8x8xf32>
    %58 = vector.shape_cast %57 : vector<1x8x8xf32> to vector<8x8xf32>
    %59 = arith.addf %56, %58 : vector<8x8xf32>
    %cst_24 = arith.constant dense<0xFF800000> : vector<8xf32>
    %60 = vector.multi_reduction <maximumf>, %59, %cst_24 [1] : vector<8x8xf32> to vector<8xf32>
    %61 = vector.shape_cast %60 : vector<8xf32> to vector<8x1xf32>
    %62 = vector.broadcast %61 : vector<8x1xf32> to vector<8x8xf32>
    %63 = arith.subf %59, %62 : vector<8x8xf32>
    %64 = math.exp %63 : vector<8x8xf32>
    %cst_25 = arith.constant dense<0.000000e+00> : vector<8xf32>
    %65 = vector.multi_reduction <add>, %64, %cst_25 [1] : vector<8x8xf32> to vector<8xf32>
    %66 = vector.shape_cast %65 : vector<8xf32> to vector<8x1xf32>
    %67 = tpu.reciprocal %66 {approx = true} : vector<8x1xf32> -> vector<8x1xf32>
    %68 = vector.broadcast %67 : vector<8x1xf32> to vector<8x8xf32>
    %69 = arith.mulf %64, %68 : vector<8x8xf32>
    %70 = arith.truncf %69 : vector<8x8xf32> to vector<8x8xbf16>
    %cst_26 = arith.constant dense<0.000000e+00> : vector<8x8xf32>
    %71 = tpu.matmul %70, %53, %cst_26 {dimension_numbers = #tpu.dot_dimension_numbers<[1], [0], [0], [1], [0, 0, 1, 1], [], []>} : vector<8x8xbf16>, vector<8x8xbf16>, vector<8x8xf32> -> vector<8x8xf32>
    %c0_27 = arith.constant 0 : index
    %c8 = arith.constant 8 : index
    %72 = vector.load %arg8[%c0_27, %c8] : memref<8x32xf32, #tpu.memory_space<vmem>>, vector<8x8xf32>
    tpu.vector_store %arg8[%c0_27, %c8], %71 {strides = array<i32>} : memref<8x32xf32, #tpu.memory_space<vmem>>, vector<8x8xf32>,
    %73 = vector.extract_strided_slice %18 {offsets = [0, 16], sizes = [8, 8], strides = [1, 1]} : vector<8x32xf32> to vector<8x8xf32>
    %74 = arith.truncf %73 : vector<8x8xf32> to vector<8x8xbf16>
    %75 = vector.extract_strided_slice %19 {offsets = [0, 16], sizes = [8, 8], strides = [1, 1]} : vector<8x32xf32> to vector<8x8xf32>
    %76 = arith.truncf %75 : vector<8x8xf32> to vector<8x8xbf16>
    %77 = vector.extract_strided_slice %20 {offsets = [0, 16], sizes = [8, 8], strides = [1, 1]} : vector<8x32xf32> to vector<8x8xf32>
    %78 = arith.truncf %77 : vector<8x8xf32> to vector<8x8xbf16>
    %cst_28 = arith.constant dense<0.000000e+00> : vector<8x8xf32>
    %79 = tpu.matmul %74, %76, %cst_28 {dimension_numbers = #tpu.dot_dimension_numbers<[1], [1], [0], [0], [0, 0, 1, 0], [], []>} : vector<8x8xbf16>, vector<8x8xbf16>, vector<8x8xf32> -> vector<8x8xf32>
    %80 = vector.broadcast %22 : vector<1x8xf32> to vector<8x8xf32>
    %81 = arith.addf %79, %80 : vector<8x8xf32>
    %c2 = arith.constant 2 : index
    %c0_29 = arith.constant 0 : index
    %c0_30 = arith.constant 0 : index
    %82 = vector.load %arg5[%c2, %c0_29, %c0_30] : memref<4x8x8xf32, #tpu.memory_space<vmem>>, vector<1x8x8xf32>
    %83 = vector.shape_cast %82 : vector<1x8x8xf32> to vector<8x8xf32>
    %84 = arith.addf %81, %83 : vector<8x8xf32>
    %cst_31 = arith.constant dense<0xFF800000> : vector<8xf32>
    %85 = vector.multi_reduction <maximumf>, %84, %cst_31 [1] : vector<8x8xf32> to vector<8xf32>
    %86 = vector.shape_cast %85 : vector<8xf32> to vector<8x1xf32>
    %87 = vector.broadcast %86 : vector<8x1xf32> to vector<8x8xf32>
    %88 = arith.subf %84, %87 : vector<8x8xf32>
    %89 = math.exp %88 : vector<8x8xf32>
    %cst_32 = arith.constant dense<0.000000e+00> : vector<8xf32>
    %90 = vector.multi_reduction <add>, %89, %cst_32 [1] : vector<8x8xf32> to vector<8xf32>
    %91 = vector.shape_cast %90 : vector<8xf32> to vector<8x1xf32>
    %92 = tpu.reciprocal %91 {approx = true} : vector<8x1xf32> -> vector<8x1xf32>
    %93 = vector.broadcast %92 : vector<8x1xf32> to vector<8x8xf32>
    %94 = arith.mulf %89, %93 : vector<8x8xf32>
    %95 = arith.truncf %94 : vector<8x8xf32> to vector<8x8xbf16>
    %cst_33 = arith.constant dense<0.000000e+00> : vector<8x8xf32>
    %96 = tpu.matmul %95, %78, %cst_33 {dimension_numbers = #tpu.dot_dimension_numbers<[1], [0], [0], [1], [0, 0, 1, 1], [], []>} : vector<8x8xbf16>, vector<8x8xbf16>, vector<8x8xf32> -> vector<8x8xf32>
    %c0_34 = arith.constant 0 : index
    %c16 = arith.constant 16 : index
    %97 = vector.load %arg8[%c0_34, %c16] : memref<8x32xf32, #tpu.memory_space<vmem>>, vector<8x8xf32>
    tpu.vector_store %arg8[%c0_34, %c16], %96 {strides = array<i32>} : memref<8x32xf32, #tpu.memory_space<vmem>>, vector<8x8xf32>,
    %98 = vector.extract_strided_slice %18 {offsets = [0, 24], sizes = [8, 8], strides = [1, 1]} : vector<8x32xf32> to vector<8x8xf32>
    %99 = arith.truncf %98 : vector<8x8xf32> to vector<8x8xbf16>
    %100 = vector.extract_strided_slice %19 {offsets = [0, 24], sizes = [8, 8], strides = [1, 1]} : vector<8x32xf32> to vector<8x8xf32>
    %101 = arith.truncf %100 : vector<8x8xf32> to vector<8x8xbf16>
    %102 = vector.extract_strided_slice %20 {offsets = [0, 24], sizes = [8, 8], strides = [1, 1]} : vector<8x32xf32> to vector<8x8xf32>
    %103 = arith.truncf %102 : vector<8x8xf32> to vector<8x8xbf16>
    %cst_35 = arith.constant dense<0.000000e+00> : vector<8x8xf32>
    %104 = tpu.matmul %99, %101, %cst_35 {dimension_numbers = #tpu.dot_dimension_numbers<[1], [1], [0], [0], [0, 0, 1, 0], [], []>} : vector<8x8xbf16>, vector<8x8xbf16>, vector<8x8xf32> -> vector<8x8xf32>
    %105 = vector.broadcast %22 : vector<1x8xf32> to vector<8x8xf32>
    %106 = arith.addf %104, %105 : vector<8x8xf32>
    %c3 = arith.constant 3 : index
    %c0_36 = arith.constant 0 : index
    %c0_37 = arith.constant 0 : index
    %107 = vector.load %arg5[%c3, %c0_36, %c0_37] : memref<4x8x8xf32, #tpu.memory_space<vmem>>, vector<1x8x8xf32>
    %108 = vector.shape_cast %107 : vector<1x8x8xf32> to vector<8x8xf32>
    %109 = arith.addf %106, %108 : vector<8x8xf32>
    %cst_38 = arith.constant dense<0xFF800000> : vector<8xf32>
    %110 = vector.multi_reduction <maximumf>, %109, %cst_38 [1] : vector<8x8xf32> to vector<8xf32>
    %111 = vector.shape_cast %110 : vector<8xf32> to vector<8x1xf32>
    %112 = vector.broadcast %111 : vector<8x1xf32> to vector<8x8xf32>
    %113 = arith.subf %109, %112 : vector<8x8xf32>
    %114 = math.exp %113 : vector<8x8xf32>
    %cst_39 = arith.constant dense<0.000000e+00> : vector<8xf32>
    %115 = vector.multi_reduction <add>, %114, %cst_39 [1] : vector<8x8xf32> to vector<8xf32>
    %116 = vector.shape_cast %115 : vector<8xf32> to vector<8x1xf32>
    %117 = tpu.reciprocal %116 {approx = true} : vector<8x1xf32> -> vector<8x1xf32>
    %118 = vector.broadcast %117 : vector<8x1xf32> to vector<8x8xf32>
    %119 = arith.mulf %114, %118 : vector<8x8xf32>
    %120 = arith.truncf %119 : vector<8x8xf32> to vector<8x8xbf16>
    %cst_40 = arith.constant dense<0.000000e+00> : vector<8x8xf32>
    %121 = tpu.matmul %120, %103, %cst_40 {dimension_numbers = #tpu.dot_dimension_numbers<[1], [0], [0], [1], [0, 0, 1, 1], [], []>} : vector<8x8xbf16>, vector<8x8xbf16>, vector<8x8xf32> -> vector<8x8xf32>
    %c0_41 = arith.constant 0 : index
    %c24 = arith.constant 24 : index
    %122 = vector.load %arg8[%c0_41, %c24] : memref<8x32xf32, #tpu.memory_space<vmem>>, vector<8x8xf32>
    tpu.vector_store %arg8[%c0_41, %c24], %121 {strides = array<i32>} : memref<8x32xf32, #tpu.memory_space<vmem>>, vector<8x8xf32>,
    %c0_42 = arith.constant 0 : index
    %c0_43 = arith.constant 0 : index
    %123 = vector.load %arg8[%c0_42, %c0_43] : memref<8x32xf32, #tpu.memory_space<vmem>>, vector<8x32xf32>
    %124 = arith.truncf %123 : vector<8x32xf32> to vector<8x32xbf16>
    %c0_44 = arith.constant 0 : index
    %c0_45 = arith.constant 0 : index
    %125 = vector.load %arg4[%c0_44, %c0_45] : memref<32x32xbf16, #tpu.memory_space<vmem>>, vector<32x32xbf16>
    %cst_46 = arith.constant dense<0.000000e+00> : vector<8x32xf32>
    %126 = tpu.matmul %124, %125, %cst_46 {dimension_numbers = #tpu.dot_dimension_numbers<[1], [0], [0], [1], [0, 0, 1, 1], [], []>} : vector<8x32xbf16>, vector<32x32xbf16>, vector<8x32xf32> -> vector<8x32xf32>
    %127 = arith.addf %1, %126 : vector<8x32xf32>
    %c0_47 = arith.constant 0 : index
    %c0_48 = arith.constant 0 : index
    %c0_49 = arith.constant 0 : index
    %128 = vector.load %arg7[%c0_47, %c0_48, %c0_49] : memref<1x8x32xf32, #tpu.memory_space<vmem>>, vector<1x8x32xf32>
    %129 = vector.shape_cast %128 : vector<1x8x32xf32> to vector<8x32xf32>
    %130 = vector.shape_cast %127 : vector<8x32xf32> to vector<1x8x32xf32>
    tpu.vector_store %arg7[%c0_47, %c0_48, %c0_49], %130 {strides = array<i32>} : memref<1x8x32xf32, #tpu.memory_space<vmem>>, vector<1x8x32xf32>,
    return
  }
  func.func @transform_0(%arg0: i32) -> (i32, i32, i32) {
    %c0_i32 = arith.constant 0 : i32
    %c0_i32_0 = arith.constant 0 : i32
    %c0_i32_1 = arith.constant 0 : i32
    return %arg0, %c0_i32, %c0_i32_0 : i32, i32, i32
  }
  func.func @transform_1(%arg0: i32) -> (i32, i32) {
    %c0_i32 = arith.constant 0 : i32
    %c0_i32_0 = arith.constant 0 : i32
    %c0_i32_1 = arith.constant 0 : i32
    return %c0_i32, %c0_i32_0 : i32, i32
  }
  func.func @transform_2(%arg0: i32) -> (i32, i32) {
    %c0_i32 = arith.constant 0 : i32
    %c0_i32_0 = arith.constant 0 : i32
    %c0_i32_1 = arith.constant 0 : i32
    return %c0_i32, %c0_i32_0 : i32, i32
  }
  func.func @transform_3(%arg0: i32) -> (i32, i32) {
    %c0_i32 = arith.constant 0 : i32
    %c0_i32_0 = arith.constant 0 : i32
    %c0_i32_1 = arith.constant 0 : i32
    return %c0_i32, %c0_i32_0 : i32, i32
  }
  func.func @transform_4(%arg0: i32) -> (i32, i32, i32) {
    %c0_i32 = arith.constant 0 : i32
    %c0_i32_0 = arith.constant 0 : i32
    %c0_i32_1 = arith.constant 0 : i32
    %c0_i32_2 = arith.constant 0 : i32
    return %c0_i32, %c0_i32_0, %c0_i32_1 : i32, i32, i32
  }
  func.func @transform_5(%arg0: i32) -> (i32, i32, i32) {
    %c0_i32 = arith.constant 0 : i32
    %c0_i32_0 = arith.constant 0 : i32
    %c0_i32_1 = arith.constant 0 : i32
    return %arg0, %c0_i32, %c0_i32_0 : i32, i32, i32
  }
  func.func @transform_6(%arg0: i32) -> (i32, i32, i32) {
    %c0_i32 = arith.constant 0 : i32
    %c0_i32_0 = arith.constant 0 : i32
    %c0_i32_1 = arith.constant 0 : i32
    return %arg0, %c0_i32, %c0_i32_0 : i32, i32, i32
  }
}

module attributes {stable_mosaic.version = 11 : i64} {
  func.func @_linear_kernel(%arg0: i32, %arg1: i32, %arg2: i32, %arg3: memref<16x16xf32, #tpu.memory_space<vmem>>, %arg4: memref<16x32xbf16, #tpu.memory_space<vmem>>, %arg5: memref<1x32xf32, #tpu.memory_space<vmem>>, %arg6: memref<16x32xf32, #tpu.memory_space<vmem>>, %arg7: memref<16x32xf32, #tpu.memory_space<vmem>>) attributes {dimension_semantics = [#tpu.dimension_semantics<parallel>, #tpu.dimension_semantics<parallel>, #tpu.dimension_semantics<arbitrary>], iteration_bounds = array<i64: 1, 1, 1>, scalar_prefetch = 0 : i64, scratch_operands = 1 : i64, tpu.core_type = #tpu.core_type<tc>, window_params = [{transform_indices = @transform_0, window_bounds = array<i64: 16, 16>}, {transform_indices = @transform_1, window_bounds = array<i64: 16, 32>}, {transform_indices = @transform_2, window_bounds = array<i64: 1, 32>}, {transform_indices = @transform_3, window_bounds = array<i64: 16, 32>}]} {
    %c0_i32 = arith.constant 0 : i32
    %0 = arith.cmpi eq, %arg2, %c0_i32 : i32
    %1 = arith.extui %0 : i1 to i32
    %c0_i32_0 = arith.constant 0 : i32
    %2 = arith.cmpi ne, %1, %c0_i32_0 : i32
    scf.if %2 {
      %cst_10 = arith.constant 0.000000e+00 : f32
      %13 = vector.broadcast %cst_10 : f32 to vector<16x32xf32>
      %c0_11 = arith.constant 0 : index
      %c0_12 = arith.constant 0 : index
      %14 = vector.load %arg7[%c0_11, %c0_12] : memref<16x32xf32, #tpu.memory_space<vmem>>, vector<16x32xf32>
      tpu.vector_store %arg7[%c0_11, %c0_12], %13 {strides = array<i32>} : memref<16x32xf32, #tpu.memory_space<vmem>>, vector<16x32xf32>,
    } else {
    }
    %c0 = arith.constant 0 : index
    %c0_1 = arith.constant 0 : index
    %3 = vector.load %arg7[%c0, %c0_1] : memref<16x32xf32, #tpu.memory_space<vmem>>, vector<16x32xf32>
    %c0_2 = arith.constant 0 : index
    %c0_3 = arith.constant 0 : index
    %4 = vector.load %arg3[%c0_2, %c0_3] : memref<16x16xf32, #tpu.memory_space<vmem>>, vector<16x16xf32>
    %5 = arith.truncf %4 : vector<16x16xf32> to vector<16x16xbf16>
    %c0_4 = arith.constant 0 : index
    %c0_5 = arith.constant 0 : index
    %6 = vector.load %arg4[%c0_4, %c0_5] : memref<16x32xbf16, #tpu.memory_space<vmem>>, vector<16x32xbf16>
    %cst = arith.constant dense<0.000000e+00> : vector<16x32xf32>
    %7 = tpu.matmul %5, %6, %cst {dimension_numbers = #tpu.dot_dimension_numbers<[1], [0], [0], [1], [0, 0, 1, 1], [], []>} : vector<16x16xbf16>, vector<16x32xbf16>, vector<16x32xf32> -> vector<16x32xf32>
    %8 = arith.addf %3, %7 : vector<16x32xf32>
    %c0_6 = arith.constant 0 : index
    %c0_7 = arith.constant 0 : index
    %9 = vector.load %arg7[%c0_6, %c0_7] : memref<16x32xf32, #tpu.memory_space<vmem>>, vector<16x32xf32>
    tpu.vector_store %arg7[%c0_6, %c0_7], %8 {strides = array<i32>} : memref<16x32xf32, #tpu.memory_space<vmem>>, vector<16x32xf32>,
    %c0_i32_8 = arith.constant 0 : i32
    %10 = arith.cmpi eq, %arg2, %c0_i32_8 : i32
    %11 = arith.extui %10 : i1 to i32
    %c0_i32_9 = arith.constant 0 : i32
    %12 = arith.cmpi ne, %11, %c0_i32_9 : i32
    scf.if %12 {
      %c0_10 = arith.constant 0 : index
      %c0_11 = arith.constant 0 : index
      %13 = vector.load %arg7[%c0_10, %c0_11] : memref<16x32xf32, #tpu.memory_space<vmem>>, vector<16x32xf32>
      %c0_12 = arith.constant 0 : index
      %c0_13 = arith.constant 0 : index
      %14 = vector.load %arg5[%c0_12, %c0_13] : memref<1x32xf32, #tpu.memory_space<vmem>>, vector<1x32xf32>
      %15 = vector.broadcast %14 : vector<1x32xf32> to vector<16x32xf32>
      %16 = arith.addf %13, %15 : vector<16x32xf32>
      %c0_14 = arith.constant 0 : index
      %c0_15 = arith.constant 0 : index
      %17 = vector.load %arg6[%c0_14, %c0_15] : memref<16x32xf32, #tpu.memory_space<vmem>>, vector<16x32xf32>
      tpu.vector_store %arg6[%c0_14, %c0_15], %16 {strides = array<i32>} : memref<16x32xf32, #tpu.memory_space<vmem>>, vector<16x32xf32>,
    } else {
    }
    return
  }
  func.func @transform_0(%arg0: i32, %arg1: i32, %arg2: i32) -> (i32, i32) {
    %c0_i32 = arith.constant 0 : i32
    return %arg0, %arg2 : i32, i32
  }
  func.func @transform_1(%arg0: i32, %arg1: i32, %arg2: i32) -> (i32, i32) {
    %c0_i32 = arith.constant 0 : i32
    return %arg2, %arg1 : i32, i32
  }
  func.func @transform_2(%arg0: i32, %arg1: i32, %arg2: i32) -> (i32, i32) {
    %c0_i32 = arith.constant 0 : i32
    %c0_i32_0 = arith.constant 0 : i32
    return %c0_i32, %arg1 : i32, i32
  }
  func.func @transform_3(%arg0: i32, %arg1: i32, %arg2: i32) -> (i32, i32) {
    %c0_i32 = arith.constant 0 : i32
    return %arg0, %arg1 : i32, i32
  }
}

module attributes {stable_mosaic.version = 11 : i64} {
  func.func @_rmsnorm_kernel(%arg0: i32, %arg1: memref<16x32xf32, #tpu.memory_space<vmem>>, %arg2: memref<1x32xf32, #tpu.memory_space<vmem>>, %arg3: memref<16x32xf32, #tpu.memory_space<vmem>>) attributes {dimension_semantics = [#tpu.dimension_semantics<parallel>], iteration_bounds = array<i64: 1>, scalar_prefetch = 0 : i64, scratch_operands = 0 : i64, tpu.core_type = #tpu.core_type<tc>, window_params = [{transform_indices = @transform_0, window_bounds = array<i64: 16, 32>}, {pipeline_mode = #tpu.pipeline_mode<synchronous>, transform_indices = @transform_1, window_bounds = array<i64: 1, 32>}, {transform_indices = @transform_2, window_bounds = array<i64: 16, 32>}]} {
    %c0 = arith.constant 0 : index
    %c0_0 = arith.constant 0 : index
    %0 = vector.load %arg1[%c0, %c0_0] : memref<16x32xf32, #tpu.memory_space<vmem>>, vector<16x32xf32>
    %1 = arith.mulf %0, %0 : vector<16x32xf32>
    %cst = arith.constant dense<0.000000e+00> : vector<16xf32>
    %2 = vector.multi_reduction <add>, %1, %cst [1] : vector<16x32xf32> to vector<16xf32>
    %3 = vector.shape_cast %2 : vector<16xf32> to vector<16x1xf32>
    %cst_1 = arith.constant 3.200000e+01 : f32
    %4 = vector.broadcast %cst_1 : f32 to vector<16x1xf32>
    %5 = arith.divf %3, %4 : vector<16x1xf32>
    %c0_2 = arith.constant 0 : index
    %c0_3 = arith.constant 0 : index
    %6 = vector.load %arg2[%c0_2, %c0_3] : memref<1x32xf32, #tpu.memory_space<vmem>>, vector<1x32xf32>
    %cst_4 = arith.constant 9.99999997E-7 : f32
    %7 = vector.broadcast %cst_4 : f32 to vector<16x1xf32>
    %8 = arith.addf %5, %7 : vector<16x1xf32>
    %9 = math.rsqrt %8 : vector<16x1xf32>
    %10 = vector.broadcast %9 : vector<16x1xf32> to vector<16x32xf32>
    %11 = arith.mulf %0, %10 : vector<16x32xf32>
    %12 = vector.broadcast %6 : vector<1x32xf32> to vector<16x32xf32>
    %13 = arith.mulf %12, %11 : vector<16x32xf32>
    %c0_5 = arith.constant 0 : index
    %c0_6 = arith.constant 0 : index
    %14 = vector.load %arg3[%c0_5, %c0_6] : memref<16x32xf32, #tpu.memory_space<vmem>>, vector<16x32xf32>
    tpu.vector_store %arg3[%c0_5, %c0_6], %13 {strides = array<i32>} : memref<16x32xf32, #tpu.memory_space<vmem>>, vector<16x32xf32>,
    return
  }
  func.func @transform_0(%arg0: i32) -> (i32, i32) {
    %c0_i32 = arith.constant 0 : i32
    %c0_i32_0 = arith.constant 0 : i32
    return %arg0, %c0_i32 : i32, i32
  }
  func.func @transform_1(%arg0: i32) -> (i32, i32) {
    %c0_i32 = arith.constant 0 : i32
    %c0_i32_0 = arith.constant 0 : i32
    %c0_i32_1 = arith.constant 0 : i32
    return %c0_i32, %c0_i32_0 : i32, i32
  }
  func.func @transform_2(%arg0: i32) -> (i32, i32) {
    %c0_i32 = arith.constant 0 : i32
    %c0_i32_0 = arith.constant 0 : i32
    return %arg0, %c0_i32 : i32, i32
  }
}

module attributes {stable_mosaic.version = 11 : i64} {
  func.func @_ff_block_kernel(%arg0: i32, %arg1: memref<16x32xf32, #tpu.memory_space<vmem>>, %arg2: memref<1x32xf32, #tpu.memory_space<vmem>>, %arg3: memref<32x128xbf16, #tpu.memory_space<vmem>>, %arg4: memref<64x32xbf16, #tpu.memory_space<vmem>>, %arg5: memref<16x32xf32, #tpu.memory_space<vmem>>) attributes {dimension_semantics = [#tpu.dimension_semantics<parallel>], iteration_bounds = array<i64: 1>, scalar_prefetch = 0 : i64, scratch_operands = 0 : i64, tpu.core_type = #tpu.core_type<tc>, window_params = [{transform_indices = @transform_0, window_bounds = array<i64: 16, 32>}, {pipeline_mode = #tpu.pipeline_mode<synchronous>, transform_indices = @transform_1, window_bounds = array<i64: 1, 32>}, {pipeline_mode = #tpu.pipeline_mode<synchronous>, transform_indices = @transform_2, window_bounds = array<i64: 32, 128>}, {pipeline_mode = #tpu.pipeline_mode<synchronous>, transform_indices = @transform_3, window_bounds = array<i64: 64, 32>}, {transform_indices = @transform_4, window_bounds = array<i64: 16, 32>}]} {
    %c0 = arith.constant 0 : index
    %c0_0 = arith.constant 0 : index
    %0 = vector.load %arg1[%c0, %c0_0] : memref<16x32xf32, #tpu.memory_space<vmem>>, vector<16x32xf32>
    %1 = arith.mulf %0, %0 : vector<16x32xf32>
    %cst = arith.constant dense<0.000000e+00> : vector<16xf32>
    %2 = vector.multi_reduction <add>, %1, %cst [1] : vector<16x32xf32> to vector<16xf32>
    %3 = vector.shape_cast %2 : vector<16xf32> to vector<16x1xf32>
    %cst_1 = arith.constant 3.200000e+01 : f32
    %4 = vector.broadcast %cst_1 : f32 to vector<16x1xf32>
    %5 = arith.divf %3, %4 : vector<16x1xf32>
    %c0_2 = arith.constant 0 : index
    %c0_3 = arith.constant 0 : index
    %6 = vector.load %arg2[%c0_2, %c0_3] : memref<1x32xf32, #tpu.memory_space<vmem>>, vector<1x32xf32>
    %cst_4 = arith.constant 9.99999997E-7 : f32
    %7 = vector.broadcast %cst_4 : f32 to vector<16x1xf32>
    %8 = arith.addf %5, %7 : vector<16x1xf32>
    %9 = math.rsqrt %8 : vector<16x1xf32>
    %10 = vector.broadcast %9 : vector<16x1xf32> to vector<16x32xf32>
    %11 = arith.mulf %0, %10 : vector<16x32xf32>
    %12 = vector.broadcast %6 : vector<1x32xf32> to vector<16x32xf32>
    %13 = arith.mulf %12, %11 : vector<16x32xf32>
    %14 = arith.truncf %13 : vector<16x32xf32> to vector<16x32xbf16>
    %c0_5 = arith.constant 0 : index
    %c0_6 = arith.constant 0 : index
    %15 = vector.load %arg3[%c0_5, %c0_6] : memref<32x128xbf16, #tpu.memory_space<vmem>>, vector<32x128xbf16>
    %cst_7 = arith.constant dense<0.000000e+00> : vector<16x128xf32>
    %16 = tpu.matmul %14, %15, %cst_7 {dimension_numbers = #tpu.dot_dimension_numbers<[1], [0], [0], [1], [0, 0, 1, 1], [], []>} : vector<16x32xbf16>, vector<32x128xbf16>, vector<16x128xf32> -> vector<16x128xf32>
    %17 = vector.extract_strided_slice %16 {offsets = [0, 0], sizes = [16, 64], strides = [1, 1]} : vector<16x128xf32> to vector<16x64xf32>
    %18 = vector.extract_strided_slice %16 {offsets = [0, 64], sizes = [16, 64], strides = [1, 1]} : vector<16x128xf32> to vector<16x64xf32>
    %cst_8 = arith.constant 5.000000e-01 : f32
    %19 = vector.broadcast %cst_8 : f32 to vector<16x64xf32>
    %20 = arith.mulf %19, %17 : vector<16x64xf32>
    %21 = arith.mulf %17, %17 : vector<16x64xf32>
    %22 = arith.mulf %21, %17 : vector<16x64xf32>
    %cst_9 = arith.constant 4.471500e-02 : f32
    %23 = vector.broadcast %cst_9 : f32 to vector<16x64xf32>
    %24 = arith.mulf %23, %22 : vector<16x64xf32>
    %25 = arith.addf %17, %24 : vector<16x64xf32>
    %cst_10 = arith.constant 0.797884583 : f32
    %26 = vector.broadcast %cst_10 : f32 to vector<16x64xf32>
    %27 = arith.mulf %26, %25 : vector<16x64xf32>
    %28 = math.tanh %27 : vector<16x64xf32>
    %cst_11 = arith.constant 1.000000e+00 : f32
    %29 = vector.broadcast %cst_11 : f32 to vector<16x64xf32>
    %30 = arith.addf %29, %28 : vector<16x64xf32>
    %31 = arith.mulf %20, %30 : vector<16x64xf32>
    %32 = arith.mulf %31, %18 : vector<16x64xf32>
    %33 = arith.truncf %32 : vector<16x64xf32> to vector<16x64xbf16>
    %c0_12 = arith.constant 0 : index
    %c0_13 = arith.constant 0 : index
    %34 = vector.load %arg4[%c0_12, %c0_13] : memref<64x32xbf16, #tpu.memory_space<vmem>>, vector<64x32xbf16>
    %cst_14 = arith.constant dense<0.000000e+00> : vector<16x32xf32>
    %35 = tpu.matmul %33, %34, %cst_14 {dimension_numbers = #tpu.dot_dimension_numbers<[1], [0], [0], [1], [0, 0, 1, 1], [], []>} : vector<16x64xbf16>, vector<64x32xbf16>, vector<16x32xf32> -> vector<16x32xf32>
    %36 = arith.addf %0, %35 : vector<16x32xf32>
    %c0_15 = arith.constant 0 : index
    %c0_16 = arith.constant 0 : index
    %37 = vector.load %arg5[%c0_15, %c0_16] : memref<16x32xf32, #tpu.memory_space<vmem>>, vector<16x32xf32>
    tpu.vector_store %arg5[%c0_15, %c0_16], %36 {strides = array<i32>} : memref<16x32xf32, #tpu.memory_space<vmem>>, vector<16x32xf32>,
    return
  }
  func.func @transform_0(%arg0: i32) -> (i32, i32) {
    %c0_i32 = arith.constant 0 : i32
    %c0_i32_0 = arith.constant 0 : i32
    return %arg0, %c0_i32 : i32, i32
  }
  func.func @transform_1(%arg0: i32) -> (i32, i32) {
    %c0_i32 = arith.constant 0 : i32
    %c0_i32_0 = arith.constant 0 : i32
    %c0_i32_1 = arith.constant 0 : i32
    return %c0_i32, %c0_i32_0 : i32, i32
  }
  func.func @transform_2(%arg0: i32) -> (i32, i32) {
    %c0_i32 = arith.constant 0 : i32
    %c0_i32_0 = arith.constant 0 : i32
    %c0_i32_1 = arith.constant 0 : i32
    return %c0_i32, %c0_i32_0 : i32, i32
  }
  func.func @transform_3(%arg0: i32) -> (i32, i32) {
    %c0_i32 = arith.constant 0 : i32
    %c0_i32_0 = arith.constant 0 : i32
    %c0_i32_1 = arith.constant 0 : i32
    return %c0_i32, %c0_i32_0 : i32, i32
  }
  func.func @transform_4(%arg0: i32) -> (i32, i32) {
    %c0_i32 = arith.constant 0 : i32
    %c0_i32_0 = arith.constant 0 : i32
    return %arg0, %c0_i32 : i32, i32
  }
}

module attributes {stable_mosaic.version = 11 : i64} {
  func.func @_linear_kernel(%arg0: i32, %arg1: i32, %arg2: i32, %arg3: memref<16x32xf32, #tpu.memory_space<vmem>>, %arg4: memref<32x64xbf16, #tpu.memory_space<vmem>>, %arg5: memref<16x64xf32, #tpu.memory_space<vmem>>, %arg6: memref<16x64xf32, #tpu.memory_space<vmem>>) attributes {dimension_semantics = [#tpu.dimension_semantics<parallel>, #tpu.dimension_semantics<parallel>, #tpu.dimension_semantics<arbitrary>], iteration_bounds = array<i64: 1, 1, 1>, scalar_prefetch = 0 : i64, scratch_operands = 1 : i64, tpu.core_type = #tpu.core_type<tc>, window_params = [{transform_indices = @transform_0, window_bounds = array<i64: 16, 32>}, {transform_indices = @transform_1, window_bounds = array<i64: 32, 64>}, {transform_indices = @transform_2, window_bounds = array<i64: 16, 64>}]} {
    %c0_i32 = arith.constant 0 : i32
    %0 = arith.cmpi eq, %arg2, %c0_i32 : i32
    %1 = arith.extui %0 : i1 to i32
    %c0_i32_0 = arith.constant 0 : i32
    %2 = arith.cmpi ne, %1, %c0_i32_0 : i32
    scf.if %2 {
      %cst_10 = arith.constant 0.000000e+00 : f32
      %13 = vector.broadcast %cst_10 : f32 to vector<16x64xf32>
      %c0_11 = arith.constant 0 : index
      %c0_12 = arith.constant 0 : index
      %14 = vector.load %arg6[%c0_11, %c0_12] : memref<16x64xf32, #tpu.memory_space<vmem>>, vector<16x64xf32>
      tpu.vector_store %arg6[%c0_11, %c0_12], %13 {strides = array<i32>} : memref<16x64xf32, #tpu.memory_space<vmem>>, vector<16x64xf32>,
    } else {
    }
    %c0 = arith.constant 0 : index
    %c0_1 = arith.constant 0 : index
    %3 = vector.load %arg6[%c0, %c0_1] : memref<16x64xf32, #tpu.memory_space<vmem>>, vector<16x64xf32>
    %c0_2 = arith.constant 0 : index
    %c0_3 = arith.constant 0 : index
    %4 = vector.load %arg3[%c0_2, %c0_3] : memref<16x32xf32, #tpu.memory_space<vmem>>, vector<16x32xf32>
    %5 = arith.truncf %4 : vector<16x32xf32> to vector<16x32xbf16>
    %c0_4 = arith.constant 0 : index
    %c0_5 = arith.constant 0 : index
    %6 = vector.load %arg4[%c0_4, %c0_5] : memref<32x64xbf16, #tpu.memory_space<vmem>>, vector<32x64xbf16>
    %cst = arith.constant dense<0.000000e+00> : vector<16x64xf32>
    %7 = tpu.matmul %5, %6, %cst {dimension_numbers = #tpu.dot_dimension_numbers<[1], [0], [0], [1], [0, 0, 1, 1], [], []>} : vector<16x32xbf16>, vector<32x64xbf16>, vector<16x64xf32> -> vector<16x64xf32>
    %8 = arith.addf %3, %7 : vector<16x64xf32>
    %c0_6 = arith.constant 0 : index
    %c0_7 = arith.constant 0 : index
    %9 = vector.load %arg6[%c0_6, %c0_7] : memref<16x64xf32, #tpu.memory_space<vmem>>, vector<16x64xf32>
    tpu.vector_store %arg6[%c0_6, %c0_7], %8 {strides = array<i32>} : memref<16x64xf32, #tpu.memory_space<vmem>>, vector<16x64xf32>,
    %c0_i32_8 = arith.constant 0 : i32
    %10 = arith.cmpi eq, %arg2, %c0_i32_8 : i32
    %11 = arith.extui %10 : i1 to i32
    %c0_i32_9 = arith.constant 0 : i32
    %12 = arith.cmpi ne, %11, %c0_i32_9 : i32
    scf.if %12 {
      %c0_10 = arith.constant 0 : index
      %c0_11 = arith.constant 0 : index
      %13 = vector.load %arg6[%c0_10, %c0_11] : memref<16x64xf32, #tpu.memory_space<vmem>>, vector<16x64xf32>
      %c0_12 = arith.constant 0 : index
      %c0_13 = arith.constant 0 : index
      %14 = vector.load %arg5[%c0_12, %c0_13] : memref<16x64xf32, #tpu.memory_space<vmem>>, vector<16x64xf32>
      tpu.vector_store %arg5[%c0_12, %c0_13], %13 {strides = array<i32>} : memref<16x64xf32, #tpu.memory_space<vmem>>, vector<16x64xf32>,
    } else {
    }
    return
  }
  func.func @transform_0(%arg0: i32, %arg1: i32, %arg2: i32) -> (i32, i32) {
    %c0_i32 = arith.constant 0 : i32
    return %arg0, %arg2 : i32, i32
  }
  func.func @transform_1(%arg0: i32, %arg1: i32, %arg2: i32) -> (i32, i32) {
    %c0_i32 = arith.constant 0 : i32
    return %arg2, %arg1 : i32, i32
  }
  func.func @transform_2(%arg0: i32, %arg1: i32, %arg2: i32) -> (i32, i32) {
    %c0_i32 = arith.constant 0 : i32
    return %arg0, %arg1 : i32, i32
  }
}

module attributes {stable_mosaic.version = 11 : i64} {
  func.func @_attn_block_kernel(%arg0: i32, %arg1: memref<1x8x32xf32, #tpu.memory_space<vmem>>, %arg2: memref<1x32xf32, #tpu.memory_space<vmem>>, %arg3: memref<32x96xbf16, #tpu.memory_space<vmem>>, %arg4: memref<32x32xbf16, #tpu.memory_space<vmem>>, %arg5: memref<4x8x8xf32, #tpu.memory_space<vmem>>, %arg6: memref<1x8x8xf32, #tpu.memory_space<vmem>>, %arg7: memref<1x8x32xf32, #tpu.memory_space<vmem>>, %arg8: memref<8x32xf32, #tpu.memory_space<vmem>>) attributes {dimension_semantics = [#tpu.dimension_semantics<parallel>], iteration_bounds = array<i64: 2>, scalar_prefetch = 0 : i64, scratch_operands = 1 : i64, tpu.core_type = #tpu.core_type<tc>, window_params = [{transform_indices = @transform_0, window_bounds = array<i64: 1, 8, 32>}, {pipeline_mode = #tpu.pipeline_mode<synchronous>, transform_indices = @transform_1, window_bounds = array<i64: 1, 32>}, {pipeline_mode = #tpu.pipeline_mode<synchronous>, transform_indices = @transform_2, window_bounds = array<i64: 32, 96>}, {pipeline_mode = #tpu.pipeline_mode<synchronous>, transform_indices = @transform_3, window_bounds = array<i64: 32, 32>}, {pipeline_mode = #tpu.pipeline_mode<synchronous>, transform_indices = @transform_4, window_bounds = array<i64: 4, 8, 8>}, {transform_indices = @transform_5, window_bounds = array<i64: 1, 8, 8>}, {transform_indices = @transform_6, window_bounds = array<i64: 1, 8, 32>}]} {
    %c0 = arith.constant 0 : index
    %c0_0 = arith.constant 0 : index
    %c0_1 = arith.constant 0 : index
    %0 = vector.load %arg1[%c0, %c0_0, %c0_1] : memref<1x8x32xf32, #tpu.memory_space<vmem>>, vector<1x8x32xf32>
    %1 = vector.shape_cast %0 : vector<1x8x32xf32> to vector<8x32xf32>
    %2 = arith.mulf %1, %1 : vector<8x32xf32>
    %cst = arith.constant dense<0.000000e+00> : vector<8xf32>
    %3 = vector.multi_reduction <add>, %2, %cst [1] : vector<8x32xf32> to vector<8xf32>
    %4 = vector.shape_cast %3 : vector<8xf32> to vector<8x1xf32>
    %cst_2 = arith.constant 3.200000e+01 : f32
    %5 = vector.broadcast %cst_2 : f32 to vector<8x1xf32>
    %6 = arith.divf %4, %5 : vector<8x1xf32>
    %c0_3 = arith.constant 0 : index
    %c0_4 = arith.constant 0 : index
    %7 = vector.load %arg2[%c0_3, %c0_4] : memref<1x32xf32, #tpu.memory_space<vmem>>, vector<1x32xf32>
    %cst_5 = arith.constant 9.99999997E-7 : f32
    %8 = vector.broadcast %cst_5 : f32 to vector<8x1xf32>
    %9 = arith.addf %6, %8 : vector<8x1xf32>
    %10 = math.rsqrt %9 : vector<8x1xf32>
    %11 = vector.broadcast %10 : vector<8x1xf32> to vector<8x32xf32>
    %12 = arith.mulf %1, %11 : vector<8x32xf32>
    %13 = vector.broadcast %7 : vector<1x32xf32> to vector<8x32xf32>
    %14 = arith.mulf %13, %12 : vector<8x32xf32>
    %c0_6 = arith.constant 0 : index
    %c0_7 = arith.constant 0 : index
    %15 = vector.load %arg3[%c0_6, %c0_7] : memref<32x96xbf16, #tpu.memory_space<vmem>>, vector<32x96xbf16>
    %16 = arith.truncf %14 : vector<8x32xf32> to vector<8x32xbf16>
    %cst_8 = arith.constant dense<0.000000e+00> : vector<8x96xf32>
    %17 = tpu.matmul %16, %15, %cst_8 {dimension_numbers = #tpu.dot_dimension_numbers<[1], [0], [0], [1], [0, 0, 1, 1], [], []>} : vector<8x32xbf16>, vector<32x96xbf16>, vector<8x96xf32> -> vector<8x96xf32>
    %18 = vector.extract_strided_slice %17 {offsets = [0, 0], sizes = [8, 32], strides = [1, 1]} : vector<8x96xf32> to vector<8x32xf32>
    %19 = vector.extract_strided_slice %17 {offsets = [0, 32], sizes = [8, 32], strides = [1, 1]} : vector<8x96xf32> to vector<8x32xf32>
    %20 = vector.extract_strided_slice %17 {offsets = [0, 64], sizes = [8, 32], strides = [1, 1]} : vector<8x96xf32> to vector<8x32xf32>
    %c0_9 = arith.constant 0 : index
    %c0_10 = arith.constant 0 : index
    %c0_11 = arith.constant 0 : index
    %21 = vector.load %arg6[%c0_9, %c0_10, %c0_11] : memref<1x8x8xf32, #tpu.memory_space<vmem>>, vector<1x8x8xf32>
    %22 = vector.shape_cast %21 : vector<1x8x8xf32> to vector<8x8xf32>
    %23 = vector.extract_strided_slice %18 {offsets = [0, 0], sizes = [8, 8], strides = [1, 1]} : vector<8x32xf32> to vector<8x8xf32>
    %24 = arith.truncf %23 : vector<8x8xf32> to vector<8x8xbf16>
    %25 = vector.extract_strided_slice %19 {offsets = [0, 0], sizes = [8, 8], strides = [1, 1]} : vector<8x32xf32> to vector<8x8xf32>
    %26 = arith.truncf %25 : vector<8x8xf32> to vector<8x8xbf16>
    %27 = vector.extract_strided_slice %20 {offsets = [0, 0], sizes = [8, 8], strides = [1, 1]} : vector<8x32xf32> to vector<8x8xf32>
    %28 = arith.truncf %27 : vector<8x8xf32> to vector<8x8xbf16>
    %cst_12 = arith.constant dense<0.000000e+00> : vector<8x8xf32>
    %29 = tpu.matmul %24, %26, %cst_12 {dimension_numbers = #tpu.dot_dimension_numbers<[1], [1], [0], [0], [0, 0, 1, 0], [], []>} : vector<8x8xbf16>, vector<8x8xbf16>, vector<8x8xf32> -> vector<8x8xf32>
    %30 = arith.addf %29, %22 : vector<8x8xf32>
    %c0_13 = arith.constant 0 : index
    %c0_14 = arith.constant 0 : index
    %c0_15 = arith.constant 0 : index
    %31 = vector.load %arg5[%c0_13, %c0_14, %c0_15] : memref<4x8x8xf32, #tpu.memory_space<vmem>>, vector<1x8x8xf32>
    %32 = vector.shape_cast %31 : vector<1x8x8xf32> to vector<8x8xf32>
    %33 = arith.addf %30, %32 : vector<8x8xf32>
    %cst_16 = arith.constant dense<0xFF800000> : vector<8xf32>
    %34 = vector.multi_reduction <maximumf>, %33, %cst_16 [1] : vector<8x8xf32> to vector<8xf32>
    %35 = vector.shape_cast %34 : vector<8xf32> to vector<8x1xf32>
    %36 = vector.broadcast %35 : vector<8x1xf32> to vector<8x8xf32>
    %37 = arith.subf %33, %36 : vector<8x8xf32>
    %38 = math.exp %37 : vector<8x8xf32>
    %cst_17 = arith.constant dense<0.000000e+00> : vector<8xf32>
    %39 = vector.multi_reduction <add>, %38, %cst_17 [1] : vector<8x8xf32> to vector<8xf32>
    %40 = vector.shape_cast %39 : vector<8xf32> to vector<8x1xf32>
    %41 = tpu.reciprocal %40 {approx = true} : vector<8x1xf32> -> vector<8x1xf32>
    %42 = vector.broadcast %41 : vector<8x1xf32> to vector<8x8xf32>
    %43 = arith.mulf %38, %42 : vector<8x8xf32>
    %44 = arith.truncf %43 : vector<8x8xf32> to vector<8x8xbf16>
    %cst_18 = arith.constant dense<0.000000e+00> : vector<8x8xf32>
    %45 = tpu.matmul %44, %28, %cst_18 {dimension_numbers = #tpu.dot_dimension_numbers<[1], [0], [0], [1], [0, 0, 1, 1], [], []>} : vector<8x8xbf16>, vector<8x8xbf16>, vector<8x8xf32> -> vector<8x8xf32>
    %c0_19 = arith.constant 0 : index
    %c0_20 = arith.constant 0 : index
    %46 = vector.load %arg8[%c0_19, %c0_20] : memref<8x32xf32, #tpu.memory_space<vmem>>, vector<8x8xf32>
    tpu.vector_store %arg8[%c0_19, %c0_20], %45 {strides = array<i32>} : memref<8x32xf32, #tpu.memory_space<vmem>>, vector<8x8xf32>,
    %47 = vector.extract_strided_slice %18 {offsets = [0, 8], sizes = [8, 8], strides = [1, 1]} : vector<8x32xf32> to vector<8x8xf32>
    %48 = arith.truncf %47 : vector<8x8xf32> to vector<8x8xbf16>
    %49 = vector.extract_strided_slice %19 {offsets = [0, 8], sizes = [8, 8], strides = [1, 1]} : vector<8x32xf32> to vector<8x8xf32>
    %50 = arith.truncf %49 : vector<8x8xf32> to vector<8x8xbf16>
    %51 = vector.extract_strided_slice %20 {offsets = [0, 8], sizes = [8, 8], strides = [1, 1]} : vector<8x32xf32> to vector<8x8xf32>
    %52 = arith.truncf %51 : vector<8x8xf32> to vector<8x8xbf16>
    %cst_21 = arith.constant dense<0.000000e+00> : vector<8x8xf32>
    %53 = tpu.matmul %48, %50, %cst_21 {dimension_numbers = #tpu.dot_dimension_numbers<[1], [1], [0], [0], [0, 0, 1, 0], [], []>} : vector<8x8xbf16>, vector<8x8xbf16>, vector<8x8xf32> -> vector<8x8xf32>
    %54 = arith.addf %53, %22 : vector<8x8xf32>
    %c1 = arith.constant 1 : index
    %c0_22 = arith.constant 0 : index
    %c0_23 = arith.constant 0 : index
    %55 = vector.load %arg5[%c1, %c0_22, %c0_23] : memref<4x8x8xf32, #tpu.memory_space<vmem>>, vector<1x8x8xf32>
    %56 = vector.shape_cast %55 : vector<1x8x8xf32> to vector<8x8xf32>
    %57 = arith.addf %54, %56 : vector<8x8xf32>
    %cst_24 = arith.constant dense<0xFF800000> : vector<8xf32>
    %58 = vector.multi_reduction <maximumf>, %57, %cst_24 [1] : vector<8x8xf32> to vector<8xf32>
    %59 = vector.shape_cast %58 : vector<8xf32> to vector<8x1xf32>
    %60 = vector.broadcast %59 : vector<8x1xf32> to vector<8x8xf32>
    %61 = arith.subf %57, %60 : vector<8x8xf32>
    %62 = math.exp %61 : vector<8x8xf32>
    %cst_25 = arith.constant dense<0.000000e+00> : vector<8xf32>
    %63 = vector.multi_reduction <add>, %62, %cst_25 [1] : vector<8x8xf32> to vector<8xf32>
    %64 = vector.shape_cast %63 : vector<8xf32> to vector<8x1xf32>
    %65 = tpu.reciprocal %64 {approx = true} : vector<8x1xf32> -> vector<8x1xf32>
    %66 = vector.broadcast %65 : vector<8x1xf32> to vector<8x8xf32>
    %67 = arith.mulf %62, %66 : vector<8x8xf32>
    %68 = arith.truncf %67 : vector<8x8xf32> to vector<8x8xbf16>
    %cst_26 = arith.constant dense<0.000000e+00> : vector<8x8xf32>
    %69 = tpu.matmul %68, %52, %cst_26 {dimension_numbers = #tpu.dot_dimension_numbers<[1], [0], [0], [1], [0, 0, 1, 1], [], []>} : vector<8x8xbf16>, vector<8x8xbf16>, vector<8x8xf32> -> vector<8x8xf32>
    %c0_27 = arith.constant 0 : index
    %c8 = arith.constant 8 : index
    %70 = vector.load %arg8[%c0_27, %c8] : memref<8x32xf32, #tpu.memory_space<vmem>>, vector<8x8xf32>
    tpu.vector_store %arg8[%c0_27, %c8], %69 {strides = array<i32>} : memref<8x32xf32, #tpu.memory_space<vmem>>, vector<8x8xf32>,
    %71 = vector.extract_strided_slice %18 {offsets = [0, 16], sizes = [8, 8], strides = [1, 1]} : vector<8x32xf32> to vector<8x8xf32>
    %72 = arith.truncf %71 : vector<8x8xf32> to vector<8x8xbf16>
    %73 = vector.extract_strided_slice %19 {offsets = [0, 16], sizes = [8, 8], strides = [1, 1]} : vector<8x32xf32> to vector<8x8xf32>
    %74 = arith.truncf %73 : vector<8x8xf32> to vector<8x8xbf16>
    %75 = vector.extract_strided_slice %20 {offsets = [0, 16], sizes = [8, 8], strides = [1, 1]} : vector<8x32xf32> to vector<8x8xf32>
    %76 = arith.truncf %75 : vector<8x8xf32> to vector<8x8xbf16>
    %cst_28 = arith.constant dense<0.000000e+00> : vector<8x8xf32>
    %77 = tpu.matmul %72, %74, %cst_28 {dimension_numbers = #tpu.dot_dimension_numbers<[1], [1], [0], [0], [0, 0, 1, 0], [], []>} : vector<8x8xbf16>, vector<8x8xbf16>, vector<8x8xf32> -> vector<8x8xf32>
    %78 = arith.addf %77, %22 : vector<8x8xf32>
    %c2 = arith.constant 2 : index
    %c0_29 = arith.constant 0 : index
    %c0_30 = arith.constant 0 : index
    %79 = vector.load %arg5[%c2, %c0_29, %c0_30] : memref<4x8x8xf32, #tpu.memory_space<vmem>>, vector<1x8x8xf32>
    %80 = vector.shape_cast %79 : vector<1x8x8xf32> to vector<8x8xf32>
    %81 = arith.addf %78, %80 : vector<8x8xf32>
    %cst_31 = arith.constant dense<0xFF800000> : vector<8xf32>
    %82 = vector.multi_reduction <maximumf>, %81, %cst_31 [1] : vector<8x8xf32> to vector<8xf32>
    %83 = vector.shape_cast %82 : vector<8xf32> to vector<8x1xf32>
    %84 = vector.broadcast %83 : vector<8x1xf32> to vector<8x8xf32>
    %85 = arith.subf %81, %84 : vector<8x8xf32>
    %86 = math.exp %85 : vector<8x8xf32>
    %cst_32 = arith.constant dense<0.000000e+00> : vector<8xf32>
    %87 = vector.multi_reduction <add>, %86, %cst_32 [1] : vector<8x8xf32> to vector<8xf32>
    %88 = vector.shape_cast %87 : vector<8xf32> to vector<8x1xf32>
    %89 = tpu.reciprocal %88 {approx = true} : vector<8x1xf32> -> vector<8x1xf32>
    %90 = vector.broadcast %89 : vector<8x1xf32> to vector<8x8xf32>
    %91 = arith.mulf %86, %90 : vector<8x8xf32>
    %92 = arith.truncf %91 : vector<8x8xf32> to vector<8x8xbf16>
    %cst_33 = arith.constant dense<0.000000e+00> : vector<8x8xf32>
    %93 = tpu.matmul %92, %76, %cst_33 {dimension_numbers = #tpu.dot_dimension_numbers<[1], [0], [0], [1], [0, 0, 1, 1], [], []>} : vector<8x8xbf16>, vector<8x8xbf16>, vector<8x8xf32> -> vector<8x8xf32>
    %c0_34 = arith.constant 0 : index
    %c16 = arith.constant 16 : index
    %94 = vector.load %arg8[%c0_34, %c16] : memref<8x32xf32, #tpu.memory_space<vmem>>, vector<8x8xf32>
    tpu.vector_store %arg8[%c0_34, %c16], %93 {strides = array<i32>} : memref<8x32xf32, #tpu.memory_space<vmem>>, vector<8x8xf32>,
    %95 = vector.extract_strided_slice %18 {offsets = [0, 24], sizes = [8, 8], strides = [1, 1]} : vector<8x32xf32> to vector<8x8xf32>
    %96 = arith.truncf %95 : vector<8x8xf32> to vector<8x8xbf16>
    %97 = vector.extract_strided_slice %19 {offsets = [0, 24], sizes = [8, 8], strides = [1, 1]} : vector<8x32xf32> to vector<8x8xf32>
    %98 = arith.truncf %97 : vector<8x8xf32> to vector<8x8xbf16>
    %99 = vector.extract_strided_slice %20 {offsets = [0, 24], sizes = [8, 8], strides = [1, 1]} : vector<8x32xf32> to vector<8x8xf32>
    %100 = arith.truncf %99 : vector<8x8xf32> to vector<8x8xbf16>
    %cst_35 = arith.constant dense<0.000000e+00> : vector<8x8xf32>
    %101 = tpu.matmul %96, %98, %cst_35 {dimension_numbers = #tpu.dot_dimension_numbers<[1], [1], [0], [0], [0, 0, 1, 0], [], []>} : vector<8x8xbf16>, vector<8x8xbf16>, vector<8x8xf32> -> vector<8x8xf32>
    %102 = arith.addf %101, %22 : vector<8x8xf32>
    %c3 = arith.constant 3 : index
    %c0_36 = arith.constant 0 : index
    %c0_37 = arith.constant 0 : index
    %103 = vector.load %arg5[%c3, %c0_36, %c0_37] : memref<4x8x8xf32, #tpu.memory_space<vmem>>, vector<1x8x8xf32>
    %104 = vector.shape_cast %103 : vector<1x8x8xf32> to vector<8x8xf32>
    %105 = arith.addf %102, %104 : vector<8x8xf32>
    %cst_38 = arith.constant dense<0xFF800000> : vector<8xf32>
    %106 = vector.multi_reduction <maximumf>, %105, %cst_38 [1] : vector<8x8xf32> to vector<8xf32>
    %107 = vector.shape_cast %106 : vector<8xf32> to vector<8x1xf32>
    %108 = vector.broadcast %107 : vector<8x1xf32> to vector<8x8xf32>
    %109 = arith.subf %105, %108 : vector<8x8xf32>
    %110 = math.exp %109 : vector<8x8xf32>
    %cst_39 = arith.constant dense<0.000000e+00> : vector<8xf32>
    %111 = vector.multi_reduction <add>, %110, %cst_39 [1] : vector<8x8xf32> to vector<8xf32>
    %112 = vector.shape_cast %111 : vector<8xf32> to vector<8x1xf32>
    %113 = tpu.reciprocal %112 {approx = true} : vector<8x1xf32> -> vector<8x1xf32>
    %114 = vector.broadcast %113 : vector<8x1xf32> to vector<8x8xf32>
    %115 = arith.mulf %110, %114 : vector<8x8xf32>
    %116 = arith.truncf %115 : vector<8x8xf32> to vector<8x8xbf16>
    %cst_40 = arith.constant dense<0.000000e+00> : vector<8x8xf32>
    %117 = tpu.matmul %116, %100, %cst_40 {dimension_numbers = #tpu.dot_dimension_numbers<[1], [0], [0], [1], [0, 0, 1, 1], [], []>} : vector<8x8xbf16>, vector<8x8xbf16>, vector<8x8xf32> -> vector<8x8xf32>
    %c0_41 = arith.constant 0 : index
    %c24 = arith.constant 24 : index
    %118 = vector.load %arg8[%c0_41, %c24] : memref<8x32xf32, #tpu.memory_space<vmem>>, vector<8x8xf32>
    tpu.vector_store %arg8[%c0_41, %c24], %117 {strides = array<i32>} : memref<8x32xf32, #tpu.memory_space<vmem>>, vector<8x8xf32>,
    %c0_42 = arith.constant 0 : index
    %c0_43 = arith.constant 0 : index
    %119 = vector.load %arg8[%c0_42, %c0_43] : memref<8x32xf32, #tpu.memory_space<vmem>>, vector<8x32xf32>
    %120 = arith.truncf %119 : vector<8x32xf32> to vector<8x32xbf16>
    %c0_44 = arith.constant 0 : index
    %c0_45 = arith.constant 0 : index
    %121 = vector.load %arg4[%c0_44, %c0_45] : memref<32x32xbf16, #tpu.memory_space<vmem>>, vector<32x32xbf16>
    %cst_46 = arith.constant dense<0.000000e+00> : vector<8x32xf32>
    %122 = tpu.matmul %120, %121, %cst_46 {dimension_numbers = #tpu.dot_dimension_numbers<[1], [0], [0], [1], [0, 0, 1, 1], [], []>} : vector<8x32xbf16>, vector<32x32xbf16>, vector<8x32xf32> -> vector<8x32xf32>
    %123 = arith.addf %1, %122 : vector<8x32xf32>
    %c0_47 = arith.constant 0 : index
    %c0_48 = arith.constant 0 : index
    %c0_49 = arith.constant 0 : index
    %124 = vector.load %arg7[%c0_47, %c0_48, %c0_49] : memref<1x8x32xf32, #tpu.memory_space<vmem>>, vector<1x8x32xf32>
    %125 = vector.shape_cast %124 : vector<1x8x32xf32> to vector<8x32xf32>
    %126 = vector.shape_cast %123 : vector<8x32xf32> to vector<1x8x32xf32>
    tpu.vector_store %arg7[%c0_47, %c0_48, %c0_49], %126 {strides = array<i32>} : memref<1x8x32xf32, #tpu.memory_space<vmem>>, vector<1x8x32xf32>,
    return
  }
  func.func @transform_0(%arg0: i32) -> (i32, i32, i32) {
    %c0_i32 = arith.constant 0 : i32
    %c0_i32_0 = arith.constant 0 : i32
    %c0_i32_1 = arith.constant 0 : i32
    return %arg0, %c0_i32, %c0_i32_0 : i32, i32, i32
  }
  func.func @transform_1(%arg0: i32) -> (i32, i32) {
    %c0_i32 = arith.constant 0 : i32
    %c0_i32_0 = arith.constant 0 : i32
    %c0_i32_1 = arith.constant 0 : i32
    return %c0_i32, %c0_i32_0 : i32, i32
  }
  func.func @transform_2(%arg0: i32) -> (i32, i32) {
    %c0_i32 = arith.constant 0 : i32
    %c0_i32_0 = arith.constant 0 : i32
    %c0_i32_1 = arith.constant 0 : i32
    return %c0_i32, %c0_i32_0 : i32, i32
  }
  func.func @transform_3(%arg0: i32) -> (i32, i32) {
    %c0_i32 = arith.constant 0 : i32
    %c0_i32_0 = arith.constant 0 : i32
    %c0_i32_1 = arith.constant 0 : i32
    return %c0_i32, %c0_i32_0 : i32, i32
  }
  func.func @transform_4(%arg0: i32) -> (i32, i32, i32) {
    %c0_i32 = arith.constant 0 : i32
    %c0_i32_0 = arith.constant 0 : i32
    %c0_i32_1 = arith.constant 0 : i32
    %c0_i32_2 = arith.constant 0 : i32
    return %c0_i32, %c0_i32_0, %c0_i32_1 : i32, i32, i32
  }
  func.func @transform_5(%arg0: i32) -> (i32, i32, i32) {
    %c0_i32 = arith.constant 0 : i32
    %c0_i32_0 = arith.constant 0 : i32
    %c0_i32_1 = arith.constant 0 : i32
    return %arg0, %c0_i32, %c0_i32_0 : i32, i32, i32
  }
  func.func @transform_6(%arg0: i32) -> (i32, i32, i32) {
    %c0_i32 = arith.constant 0 : i32
    %c0_i32_0 = arith.constant 0 : i32
    %c0_i32_1 = arith.constant 0 : i32
    return %arg0, %c0_i32, %c0_i32_0 : i32, i32, i32
  }
}

module attributes {stable_mosaic.version = 11 : i64} {
  func.func @_attn_block_kernel(%arg0: i32, %arg1: memref<1x8x32xf32, #tpu.memory_space<vmem>>, %arg2: memref<1x8x32xf32, #tpu.memory_space<vmem>>, %arg3: memref<1x32xf32, #tpu.memory_space<vmem>>, %arg4: memref<32x96xbf16, #tpu.memory_space<vmem>>, %arg5: memref<32x32xbf16, #tpu.memory_space<vmem>>, %arg6: memref<1x1x8xf32, #tpu.memory_space<vmem>>, %arg7: memref<1x8x32xf32, #tpu.memory_space<vmem>>, %arg8: memref<8x32xf32, #tpu.memory_space<vmem>>) attributes {dimension_semantics = [#tpu.dimension_semantics<parallel>], iteration_bounds = array<i64: 2>, scalar_prefetch = 0 : i64, scratch_operands = 1 : i64, tpu.core_type = #tpu.core_type<tc>, window_params = [{transform_indices = @transform_0, window_bounds = array<i64: 1, 8, 32>}, {transform_indices = @transform_1, window_bounds = array<i64: 1, 8, 32>}, {pipeline_mode = #tpu.pipeline_mode<synchronous>, transform_indices = @transform_2, window_bounds = array<i64: 1, 32>}, {pipeline_mode = #tpu.pipeline_mode<synchronous>, transform_indices = @transform_3, window_bounds = array<i64: 32, 96>}, {pipeline_mode = #tpu.pipeline_mode<synchronous>, transform_indices = @transform_4, window_bounds = array<i64: 32, 32>}, {transform_indices = @transform_5, window_bounds = array<i64: 1, 1, 8>}, {transform_indices = @transform_6, window_bounds = array<i64: 1, 8, 32>}]} {
    %c0 = arith.constant 0 : index
    %c0_0 = arith.constant 0 : index
    %c0_1 = arith.constant 0 : index
    %0 = vector.load %arg1[%c0, %c0_0, %c0_1] : memref<1x8x32xf32, #tpu.memory_space<vmem>>, vector<1x8x32xf32>
    %1 = vector.shape_cast %0 : vector<1x8x32xf32> to vector<8x32xf32>
    %2 = arith.mulf %1, %1 : vector<8x32xf32>
    %cst = arith.constant dense<0.000000e+00> : vector<8xf32>
    %3 = vector.multi_reduction <add>, %2, %cst [1] : vector<8x32xf32> to vector<8xf32>
    %4 = vector.shape_cast %3 : vector<8xf32> to vector<8x1xf32>
    %cst_2 = arith.constant 3.200000e+01 : f32
    %5 = vector.broadcast %cst_2 : f32 to vector<8x1xf32>
    %6 = arith.divf %4, %5 : vector<8x1xf32>
    %c0_3 = arith.constant 0 : index
    %c0_4 = arith.constant 0 : index
    %7 = vector.load %arg3[%c0_3, %c0_4] : memref<1x32xf32, #tpu.memory_space<vmem>>, vector<1x32xf32>
    %cst_5 = arith.constant 9.99999997E-7 : f32
    %8 = vector.broadcast %cst_5 : f32 to vector<8x1xf32>
    %9 = arith.addf %6, %8 : vector<8x1xf32>
    %10 = math.rsqrt %9 : vector<8x1xf32>
    %11 = vector.broadcast %10 : vector<8x1xf32> to vector<8x32xf32>
    %12 = arith.mulf %1, %11 : vector<8x32xf32>
    %13 = vector.broadcast %7 : vector<1x32xf32> to vector<8x32xf32>
    %14 = arith.mulf %13, %12 : vector<8x32xf32>
    %c0_6 = arith.constant 0 : index
    %c0_7 = arith.constant 0 : index
    %15 = vector.load %arg4[%c0_6, %c0_7] : memref<32x96xbf16, #tpu.memory_space<vmem>>, vector<32x96xbf16>
    %c0_8 = arith.constant 0 : index
    %c0_9 = arith.constant 0 : index
    %c0_10 = arith.constant 0 : index
    %16 = vector.load %arg2[%c0_8, %c0_9, %c0_10] : memref<1x8x32xf32, #tpu.memory_space<vmem>>, vector<1x8x32xf32>
    %17 = vector.shape_cast %16 : vector<1x8x32xf32> to vector<8x32xf32>
    %18 = arith.truncf %14 : vector<8x32xf32> to vector<8x32xbf16>
    %19 = vector.extract_strided_slice %15 {offsets = [0, 0], sizes = [32, 32], strides = [1, 1]} : vector<32x96xbf16> to vector<32x32xbf16>
    %cst_11 = arith.constant dense<0.000000e+00> : vector<8x32xf32>
    %20 = tpu.matmul %18, %19, %cst_11 {dimension_numbers = #tpu.dot_dimension_numbers<[1], [0], [0], [1], [0, 0, 1, 1], [], []>} : vector<8x32xbf16>, vector<32x32xbf16>, vector<8x32xf32> -> vector<8x32xf32>
    %21 = arith.truncf %17 : vector<8x32xf32> to vector<8x32xbf16>
    %22 = vector.extract_strided_slice %15 {offsets = [0, 32], sizes = [32, 64], strides = [1, 1]} : vector<32x96xbf16> to vector<32x64xbf16>
    %cst_12 = arith.constant dense<0.000000e+00> : vector<8x64xf32>
    %23 = tpu.matmul %21, %22, %cst_12 {dimension_numbers = #tpu.dot_dimension_numbers<[1], [0], [0], [1], [0, 0, 1, 1], [], []>} : vector<8x32xbf16>, vector<32x64xbf16>, vector<8x64xf32> -> vector<8x64xf32>
    %24 = vector.extract_strided_slice %23 {offsets = [0, 0], sizes = [8, 32], strides = [1, 1]} : vector<8x64xf32> to vector<8x32xf32>
    %25 = vector.extract_strided_slice %23 {offsets = [0, 32], sizes = [8, 32], strides = [1, 1]} : vector<8x64xf32> to vector<8x32xf32>
    %c0_13 = arith.constant 0 : index
    %c0_14 = arith.constant 0 : index
    %c0_15 = arith.constant 0 : index
    %26 = vector.load %arg6[%c0_13, %c0_14, %c0_15] : memref<1x1x8xf32, #tpu.memory_space<vmem>>, vector<1x1x8xf32>
    %27 = vector.shape_cast %26 : vector<1x1x8xf32> to vector<1x8xf32>
    %28 = vector.extract_strided_slice %20 {offsets = [0, 0], sizes = [8, 8], strides = [1, 1]} : vector<8x32xf32> to vector<8x8xf32>
    %29 = arith.truncf %28 : vector<8x8xf32> to vector<8x8xbf16>
    %30 = vector.extract_strided_slice %24 {offsets = [0, 0], sizes = [8, 8], strides = [1, 1]} : vector<8x32xf32> to vector<8x8xf32>
    %31 = arith.truncf %30 : vector<8x8xf32> to vector<8x8xbf16>
    %32 = vector.extract_strided_slice %25 {offsets = [0, 0], sizes = [8, 8], strides = [1, 1]} : vector<8x32xf32> to vector<8x8xf32>
    %33 = arith.truncf %32 : vector<8x8xf32> to vector<8x8xbf16>
    %cst_16 = arith.constant dense<0.000000e+00> : vector<8x8xf32>
    %34 = tpu.matmul %29, %31, %cst_16 {dimension_numbers = #tpu.dot_dimension_numbers<[1], [1], [0], [0], [0, 0, 1, 0], [], []>} : vector<8x8xbf16>, vector<8x8xbf16>, vector<8x8xf32> -> vector<8x8xf32>
    %35 = vector.broadcast %27 : vector<1x8xf32> to vector<8x8xf32>
    %36 = arith.addf %34, %35 : vector<8x8xf32>
    %cst_17 = arith.constant dense<0xFF800000> : vector<8xf32>
    %37 = vector.multi_reduction <maximumf>, %36, %cst_17 [1] : vector<8x8xf32> to vector<8xf32>
    %38 = vector.shape_cast %37 : vector<8xf32> to vector<8x1xf32>
    %39 = vector.broadcast %38 : vector<8x1xf32> to vector<8x8xf32>
    %40 = arith.subf %36, %39 : vector<8x8xf32>
    %41 = math.exp %40 : vector<8x8xf32>
    %cst_18 = arith.constant dense<0.000000e+00> : vector<8xf32>
    %42 = vector.multi_reduction <add>, %41, %cst_18 [1] : vector<8x8xf32> to vector<8xf32>
    %43 = vector.shape_cast %42 : vector<8xf32> to vector<8x1xf32>
    %44 = tpu.reciprocal %43 {approx = true} : vector<8x1xf32> -> vector<8x1xf32>
    %45 = vector.broadcast %44 : vector<8x1xf32> to vector<8x8xf32>
    %46 = arith.mulf %41, %45 : vector<8x8xf32>
    %47 = arith.truncf %46 : vector<8x8xf32> to vector<8x8xbf16>
    %cst_19 = arith.constant dense<0.000000e+00> : vector<8x8xf32>
    %48 = tpu.matmul %47, %33, %cst_19 {dimension_numbers = #tpu.dot_dimension_numbers<[1], [0], [0], [1], [0, 0, 1, 1], [], []>} : vector<8x8xbf16>, vector<8x8xbf16>, vector<8x8xf32> -> vector<8x8xf32>
    %c0_20 = arith.constant 0 : index
    %c0_21 = arith.constant 0 : index
    %49 = vector.load %arg8[%c0_20, %c0_21] : memref<8x32xf32, #tpu.memory_space<vmem>>, vector<8x8xf32>
    tpu.vector_store %arg8[%c0_20, %c0_21], %48 {strides = array<i32>} : memref<8x32xf32, #tpu.memory_space<vmem>>, vector<8x8xf32>,
    %50 = vector.extract_strided_slice %20 {offsets = [0, 8], sizes = [8, 8], strides = [1, 1]} : vector<8x32xf32> to vector<8x8xf32>
    %51 = arith.truncf %50 : vector<8x8xf32> to vector<8x8xbf16>
    %52 = vector.extract_strided_slice %24 {offsets = [0, 8], sizes = [8, 8], strides = [1, 1]} : vector<8x32xf32> to vector<8x8xf32>
    %53 = arith.truncf %52 : vector<8x8xf32> to vector<8x8xbf16>
    %54 = vector.extract_strided_slice %25 {offsets = [0, 8], sizes = [8, 8], strides = [1, 1]} : vector<8x32xf32> to vector<8x8xf32>
    %55 = arith.truncf %54 : vector<8x8xf32> to vector<8x8xbf16>
    %cst_22 = arith.constant dense<0.000000e+00> : vector<8x8xf32>
    %56 = tpu.matmul %51, %53, %cst_22 {dimension_numbers = #tpu.dot_dimension_numbers<[1], [1], [0], [0], [0, 0, 1, 0], [], []>} : vector<8x8xbf16>, vector<8x8xbf16>, vector<8x8xf32> -> vector<8x8xf32>
    %57 = vector.broadcast %27 : vector<1x8xf32> to vector<8x8xf32>
    %58 = arith.addf %56, %57 : vector<8x8xf32>
    %cst_23 = arith.constant dense<0xFF800000> : vector<8xf32>
    %59 = vector.multi_reduction <maximumf>, %58, %cst_23 [1] : vector<8x8xf32> to vector<8xf32>
    %60 = vector.shape_cast %59 : vector<8xf32> to vector<8x1xf32>
    %61 = vector.broadcast %60 : vector<8x1xf32> to vector<8x8xf32>
    %62 = arith.subf %58, %61 : vector<8x8xf32>
    %63 = math.exp %62 : vector<8x8xf32>
    %cst_24 = arith.constant dense<0.000000e+00> : vector<8xf32>
    %64 = vector.multi_reduction <add>, %63, %cst_24 [1] : vector<8x8xf32> to vector<8xf32>
    %65 = vector.shape_cast %64 : vector<8xf32> to vector<8x1xf32>
    %66 = tpu.reciprocal %65 {approx = true} : vector<8x1xf32> -> vector<8x1xf32>
    %67 = vector.broadcast %66 : vector<8x1xf32> to vector<8x8xf32>
    %68 = arith.mulf %63, %67 : vector<8x8xf32>
    %69 = arith.truncf %68 : vector<8x8xf32> to vector<8x8xbf16>
    %cst_25 = arith.constant dense<0.000000e+00> : vector<8x8xf32>
    %70 = tpu.matmul %69, %55, %cst_25 {dimension_numbers = #tpu.dot_dimension_numbers<[1], [0], [0], [1], [0, 0, 1, 1], [], []>} : vector<8x8xbf16>, vector<8x8xbf16>, vector<8x8xf32> -> vector<8x8xf32>
    %c0_26 = arith.constant 0 : index
    %c8 = arith.constant 8 : index
    %71 = vector.load %arg8[%c0_26, %c8] : memref<8x32xf32, #tpu.memory_space<vmem>>, vector<8x8xf32>
    tpu.vector_store %arg8[%c0_26, %c8], %70 {strides = array<i32>} : memref<8x32xf32, #tpu.memory_space<vmem>>, vector<8x8xf32>,
    %72 = vector.extract_strided_slice %20 {offsets = [0, 16], sizes = [8, 8], strides = [1, 1]} : vector<8x32xf32> to vector<8x8xf32>
    %73 = arith.truncf %72 : vector<8x8xf32> to vector<8x8xbf16>
    %74 = vector.extract_strided_slice %24 {offsets = [0, 16], sizes = [8, 8], strides = [1, 1]} : vector<8x32xf32> to vector<8x8xf32>
    %75 = arith.truncf %74 : vector<8x8xf32> to vector<8x8xbf16>
    %76 = vector.extract_strided_slice %25 {offsets = [0, 16], sizes = [8, 8], strides = [1, 1]} : vector<8x32xf32> to vector<8x8xf32>
    %77 = arith.truncf %76 : vector<8x8xf32> to vector<8x8xbf16>
    %cst_27 = arith.constant dense<0.000000e+00> : vector<8x8xf32>
    %78 = tpu.matmul %73, %75, %cst_27 {dimension_numbers = #tpu.dot_dimension_numbers<[1], [1], [0], [0], [0, 0, 1, 0], [], []>} : vector<8x8xbf16>, vector<8x8xbf16>, vector<8x8xf32> -> vector<8x8xf32>
    %79 = vector.broadcast %27 : vector<1x8xf32> to vector<8x8xf32>
    %80 = arith.addf %78, %79 : vector<8x8xf32>
    %cst_28 = arith.constant dense<0xFF800000> : vector<8xf32>
    %81 = vector.multi_reduction <maximumf>, %80, %cst_28 [1] : vector<8x8xf32> to vector<8xf32>
    %82 = vector.shape_cast %81 : vector<8xf32> to vector<8x1xf32>
    %83 = vector.broadcast %82 : vector<8x1xf32> to vector<8x8xf32>
    %84 = arith.subf %80, %83 : vector<8x8xf32>
    %85 = math.exp %84 : vector<8x8xf32>
    %cst_29 = arith.constant dense<0.000000e+00> : vector<8xf32>
    %86 = vector.multi_reduction <add>, %85, %cst_29 [1] : vector<8x8xf32> to vector<8xf32>
    %87 = vector.shape_cast %86 : vector<8xf32> to vector<8x1xf32>
    %88 = tpu.reciprocal %87 {approx = true} : vector<8x1xf32> -> vector<8x1xf32>
    %89 = vector.broadcast %88 : vector<8x1xf32> to vector<8x8xf32>
    %90 = arith.mulf %85, %89 : vector<8x8xf32>
    %91 = arith.truncf %90 : vector<8x8xf32> to vector<8x8xbf16>
    %cst_30 = arith.constant dense<0.000000e+00> : vector<8x8xf32>
    %92 = tpu.matmul %91, %77, %cst_30 {dimension_numbers = #tpu.dot_dimension_numbers<[1], [0], [0], [1], [0, 0, 1, 1], [], []>} : vector<8x8xbf16>, vector<8x8xbf16>, vector<8x8xf32> -> vector<8x8xf32>
    %c0_31 = arith.constant 0 : index
    %c16 = arith.constant 16 : index
    %93 = vector.load %arg8[%c0_31, %c16] : memref<8x32xf32, #tpu.memory_space<vmem>>, vector<8x8xf32>
    tpu.vector_store %arg8[%c0_31, %c16], %92 {strides = array<i32>} : memref<8x32xf32, #tpu.memory_space<vmem>>, vector<8x8xf32>,
    %94 = vector.extract_strided_slice %20 {offsets = [0, 24], sizes = [8, 8], strides = [1, 1]} : vector<8x32xf32> to vector<8x8xf32>
    %95 = arith.truncf %94 : vector<8x8xf32> to vector<8x8xbf16>
    %96 = vector.extract_strided_slice %24 {offsets = [0, 24], sizes = [8, 8], strides = [1, 1]} : vector<8x32xf32> to vector<8x8xf32>
    %97 = arith.truncf %96 : vector<8x8xf32> to vector<8x8xbf16>
    %98 = vector.extract_strided_slice %25 {offsets = [0, 24], sizes = [8, 8], strides = [1, 1]} : vector<8x32xf32> to vector<8x8xf32>
    %99 = arith.truncf %98 : vector<8x8xf32> to vector<8x8xbf16>
    %cst_32 = arith.constant dense<0.000000e+00> : vector<8x8xf32>
    %100 = tpu.matmul %95, %97, %cst_32 {dimension_numbers = #tpu.dot_dimension_numbers<[1], [1], [0], [0], [0, 0, 1, 0], [], []>} : vector<8x8xbf16>, vector<8x8xbf16>, vector<8x8xf32> -> vector<8x8xf32>
    %101 = vector.broadcast %27 : vector<1x8xf32> to vector<8x8xf32>
    %102 = arith.addf %100, %101 : vector<8x8xf32>
    %cst_33 = arith.constant dense<0xFF800000> : vector<8xf32>
    %103 = vector.multi_reduction <maximumf>, %102, %cst_33 [1] : vector<8x8xf32> to vector<8xf32>
    %104 = vector.shape_cast %103 : vector<8xf32> to vector<8x1xf32>
    %105 = vector.broadcast %104 : vector<8x1xf32> to vector<8x8xf32>
    %106 = arith.subf %102, %105 : vector<8x8xf32>
    %107 = math.exp %106 : vector<8x8xf32>
    %cst_34 = arith.constant dense<0.000000e+00> : vector<8xf32>
    %108 = vector.multi_reduction <add>, %107, %cst_34 [1] : vector<8x8xf32> to vector<8xf32>
    %109 = vector.shape_cast %108 : vector<8xf32> to vector<8x1xf32>
    %110 = tpu.reciprocal %109 {approx = true} : vector<8x1xf32> -> vector<8x1xf32>
    %111 = vector.broadcast %110 : vector<8x1xf32> to vector<8x8xf32>
    %112 = arith.mulf %107, %111 : vector<8x8xf32>
    %113 = arith.truncf %112 : vector<8x8xf32> to vector<8x8xbf16>
    %cst_35 = arith.constant dense<0.000000e+00> : vector<8x8xf32>
    %114 = tpu.matmul %113, %99, %cst_35 {dimension_numbers = #tpu.dot_dimension_numbers<[1], [0], [0], [1], [0, 0, 1, 1], [], []>} : vector<8x8xbf16>, vector<8x8xbf16>, vector<8x8xf32> -> vector<8x8xf32>
    %c0_36 = arith.constant 0 : index
    %c24 = arith.constant 24 : index
    %115 = vector.load %arg8[%c0_36, %c24] : memref<8x32xf32, #tpu.memory_space<vmem>>, vector<8x8xf32>
    tpu.vector_store %arg8[%c0_36, %c24], %114 {strides = array<i32>} : memref<8x32xf32, #tpu.memory_space<vmem>>, vector<8x8xf32>,
    %c0_37 = arith.constant 0 : index
    %c0_38 = arith.constant 0 : index
    %116 = vector.load %arg8[%c0_37, %c0_38] : memref<8x32xf32, #tpu.memory_space<vmem>>, vector<8x32xf32>
    %117 = arith.truncf %116 : vector<8x32xf32> to vector<8x32xbf16>
    %c0_39 = arith.constant 0 : index
    %c0_40 = arith.constant 0 : index
    %118 = vector.load %arg5[%c0_39, %c0_40] : memref<32x32xbf16, #tpu.memory_space<vmem>>, vector<32x32xbf16>
    %cst_41 = arith.constant dense<0.000000e+00> : vector<8x32xf32>
    %119 = tpu.matmul %117, %118, %cst_41 {dimension_numbers = #tpu.dot_dimension_numbers<[1], [0], [0], [1], [0, 0, 1, 1], [], []>} : vector<8x32xbf16>, vector<32x32xbf16>, vector<8x32xf32> -> vector<8x32xf32>
    %120 = arith.addf %1, %119 : vector<8x32xf32>
    %c0_42 = arith.constant 0 : index
    %c0_43 = arith.constant 0 : index
    %c0_44 = arith.constant 0 : index
    %121 = vector.load %arg7[%c0_42, %c0_43, %c0_44] : memref<1x8x32xf32, #tpu.memory_space<vmem>>, vector<1x8x32xf32>
    %122 = vector.shape_cast %121 : vector<1x8x32xf32> to vector<8x32xf32>
    %123 = vector.shape_cast %120 : vector<8x32xf32> to vector<1x8x32xf32>
    tpu.vector_store %arg7[%c0_42, %c0_43, %c0_44], %123 {strides = array<i32>} : memref<1x8x32xf32, #tpu.memory_space<vmem>>, vector<1x8x32xf32>,
    return
  }
  func.func @transform_0(%arg0: i32) -> (i32, i32, i32) {
    %c0_i32 = arith.constant 0 : i32
    %c0_i32_0 = arith.constant 0 : i32
    %c0_i32_1 = arith.constant 0 : i32
    return %arg0, %c0_i32, %c0_i32_0 : i32, i32, i32
  }
  func.func @transform_1(%arg0: i32) -> (i32, i32, i32) {
    %c0_i32 = arith.constant 0 : i32
    %c0_i32_0 = arith.constant 0 : i32
    %c0_i32_1 = arith.constant 0 : i32
    return %arg0, %c0_i32, %c0_i32_0 : i32, i32, i32
  }
  func.func @transform_2(%arg0: i32) -> (i32, i32) {
    %c0_i32 = arith.constant 0 : i32
    %c0_i32_0 = arith.constant 0 : i32
    %c0_i32_1 = arith.constant 0 : i32
    return %c0_i32, %c0_i32_0 : i32, i32
  }
  func.func @transform_3(%arg0: i32) -> (i32, i32) {
    %c0_i32 = arith.constant 0 : i32
    %c0_i32_0 = arith.constant 0 : i32
    %c0_i32_1 = arith.constant 0 : i32
    return %c0_i32, %c0_i32_0 : i32, i32
  }
  func.func @transform_4(%arg0: i32) -> (i32, i32) {
    %c0_i32 = arith.constant 0 : i32
    %c0_i32_0 = arith.constant 0 : i32
    %c0_i32_1 = arith.constant 0 : i32
    return %c0_i32, %c0_i32_0 : i32, i32
  }
  func.func @transform_5(%arg0: i32) -> (i32, i32, i32) {
    %c0_i32 = arith.constant 0 : i32
    %c0_i32_0 = arith.constant 0 : i32
    %c0_i32_1 = arith.constant 0 : i32
    return %arg0, %c0_i32, %c0_i32_0 : i32, i32, i32
  }
  func.func @transform_6(%arg0: i32) -> (i32, i32, i32) {
    %c0_i32 = arith.constant 0 : i32
    %c0_i32_0 = arith.constant 0 : i32
    %c0_i32_1 = arith.constant 0 : i32
    return %arg0, %c0_i32, %c0_i32_0 : i32, i32, i32
  }
}

</mosaic_0001>

<llo_original>
// kernel: _lambda_.19
$region0: #{_lambda_.19}
  #allocation0 [shape = 'u32[]', space=smem, size = 0x4, offset = 0x4, fixed_abs, tag = 'smem constant byte address 0x4 - core index']
  #allocation1 [shape = 'u32[144,128]{1,0:T(1,128)}', space=vmem, size = 0x12000, scoped, tag = 'internal scratch']
  %s0 = inlined_call_operand.vmem [shape: f32[16,32], index: 0, kind: input, shape index: {}]
  %s1 = inlined_call_operand.vmem [shape: f32[1,32], index: 1, kind: input, shape index: {}]
  %s2 = inlined_call_operand.vmem [shape: f32[16,32], index: 2, kind: output, shape index: {}]
  %s3 = sld [smem:[#allocation0]]
  $region18: #{_lambda_.19} parent=0
    _
  %s5 = ssub.s32 1, %s3
  %s6 = scalar_select 0, %s5, %s3
  // Predicated region
  $region2: #{_lambda_.19} parent=0 // pred_check
    _
  $region3: #{_lambda_.19} parent=0 // pred_check_branch
    %8 = sbr.rel (0) target = $region5
  $region4: #{_lambda_.19} parent=0 // pred_region
    _
  $region5: #{_lambda_.19} parent=0 // pred_fallthru
    _
  // Predicated region
  $region6: #{_lambda_.19} parent=0 // pred_check
    _
  $region7: #{_lambda_.19} parent=0 // pred_check_branch
    %10 = sbr.rel (0) target = $region9
  $region8: #{_lambda_.19} parent=0 // pred_region
    _
  $region9: #{_lambda_.19} parent=0 // pred_fallthru
    _
  %v11 = vld [vmem:[%s0] sm:$0xff]
  %v12 = vld [vmem:[%s0 + $0x8] sm:$0xff]
  %v13 = vmul.f32 %v11, %v11
  %v14 = vmul.f32 %v12, %v12
  %vm15 = vcmask 261120
  %v16 = vsel %vm15, %v13, 0.0
  %17 = vadd.xlane.f32.xlu0 %v16
  %v18 = vpop.xlane.xlu0 %17
  %v19 = vsel %vm15, %v14, 0.0
  %20 = vadd.xlane.f32.xlu0 %v19
  %v21 = vpop.xlane.xlu0 %20
  %v22 = vrcp.pop 32.0
  %v23 = vmul.f32 %v18, %v22
  %v24 = vmul.f32 %v21, %v22
  %v25 = vld [vmem:[%s1] sm:$0x1]
  %v26 = vadd.f32 %v23, 1e-06
  %v27 = vadd.f32 %v24, 1e-06
  %v28 = vrsqrt.pop %v26
  %v29 = vrsqrt.pop %v27
  %v30 = vmul.f32 %v11, %v28
  %v31 = vmul.f32 %v12, %v29
  %v33 = vlaneseq
  %v34 = vshrl.u32 %v33, 7
  %v35 = vsub.s32 0, %v34
  %v36 = vrot.slane %v25, %v35
  %v38 = vmul.f32 %v36, %v30
  %v39 = vmul.f32 %v36, %v31
  %40 = vst.msk [vmem:[%s2] sm:$0xff] %vm15, %v38
  %41 = vst.msk [vmem:[%s2 + $0x8] sm:$0xff] %vm15, %v39
  // Predicated region
  $region10: #{_lambda_.19} parent=0 // pred_check
    _
  $region11: #{_lambda_.19} parent=0 // pred_check_branch
    %43 = sbr.rel (0) target = $region13
  $region12: #{_lambda_.19} parent=0 // pred_region
    _
  $region13: #{_lambda_.19} parent=0 // pred_fallthru
    _
  // Predicated region
  $region14: #{_lambda_.19} parent=0 // pred_check
    _
  $region15: #{_lambda_.19} parent=0 // pred_check_branch
    %45 = sbr.rel (0) target = $region17
  $region16: #{_lambda_.19} parent=0 // pred_region
    _
  $region17: #{_lambda_.19} parent=0 // pred_fallthru
    _

// kernel: _lambda_.14
$region0: #{_lambda_.14}
  #allocation0 [shape = 'u32[]', space=smem, size = 0x4, offset = 0x4, fixed_abs, tag = 'smem constant byte address 0x4 - core index']
  #allocation1 [shape = 'u32[144,128]{1,0:T(1,128)}', space=vmem, size = 0x12000, scoped, tag = 'internal scratch']
  #allocation2 [shape = 'f32[16,32]{1,0:T(8,128)}', space=vmem, size = 0x2000, scoped, tag = 'scratch operand']
  %s0 = inlined_call_operand.vmem [shape: f32[16,16], index: 0, kind: input, shape index: {}]
  %s1 = inlined_call_operand.vmem [shape: bf16[16,32], index: 1, kind: input, shape index: {}]
  %s2 = inlined_call_operand.vmem [shape: f32[1,32], index: 2, kind: input, shape index: {}]
  %s3 = inlined_call_operand.vmem [shape: f32[16,32], index: 3, kind: output, shape index: {}]
  %s4 = sld [smem:[#allocation0]]
  $region30: #{_lambda_.14} parent=0
    _
  %s6 = ssub.s32 1, %s4
  %s7 = scalar_select 0, %s6, %s4
  // Predicated region
  $region2: #{_lambda_.14} parent=0 // pred_check
    _
  $region3: #{_lambda_.14} parent=0 // pred_check_branch
    %9 = sbr.rel (0) target = $region5
  $region4: #{_lambda_.14} parent=0 // pred_region
    _
  $region5: #{_lambda_.14} parent=0 // pred_fallthru
    _
  // Predicated region
  $region6: #{_lambda_.14} parent=0 // pred_check
    _
  $region7: #{_lambda_.14} parent=0 // pred_check_branch
    %11 = sbr.rel (0) target = $region9
  $region8: #{_lambda_.14} parent=0 // pred_region
    _
  $region9: #{_lambda_.14} parent=0 // pred_fallthru
    _
  // Predicated region
  $region10: #{_lambda_.14} parent=0 // pred_check
    _
  $region11: #{_lambda_.14} parent=0 // pred_check_branch
    %13 = sbr.rel (0) target = $region13
  $region12: #{_lambda_.14} parent=0 // pred_region
    _
  $region13: #{_lambda_.14} parent=0 // pred_fallthru
    _
  %p15 = scmp.eq.s32.totalorder 0, 0
  // Predicated region
  $region14: #{_lambda_.14} parent=0 // pred_check
    %p16 = pneg %p15
  $region15: #{_lambda_.14} parent=0 // pred_check_branch
    %18 = sbr.rel (%p16) target = $region17
  $region16: #{_lambda_.14} parent=0 // pred_region
    %vm19 = vcmask 261120
    %20 = vst.msk [vmem:[#allocation2] sm:$0xff] %vm19, 0.0
    %21 = vst.msk [vmem:[#allocation2 + $0x8] sm:$0xff] %vm19, 0.0
  $region17: #{_lambda_.14} parent=0 // pred_fallthru
    _
  %v22 = vld [vmem:[#allocation2] sm:$0xff]
  %v23 = vld [vmem:[#allocation2 + $0x8] sm:$0xff]
  %v24 = vld [vmem:[%s0] sm:$0xff]
  %v25 = vld [vmem:[%s0 + $0x8] sm:$0xff]
  %v26 = vpack.c.bf16 %v25, %v24
  %v27 = vld [vmem:[%s1] sm:$0xf]
  %v28 = vld [vmem:[%s1 + $0x4] sm:$0xf]
  %v31 = vunpack.c.l.b16 %v27
  %v32 = vunpack.c.l.b16 %v28
  %v33 = vpack.c.b16 %v32, %v31
  %vm35 = vcmask 130048
  %v37 = vsel %vm35, %v26, 0
  %39 = vmatprep.subr.bf16.mxu0 0
  %40 = vmatpush1.bf16.msra.mxu0 %v33
  %41 = vmatprep.subr.bf16.mxu0 0
  %42 = vmatpush1.bf16.msra.mxu0 0
  %43 = vmatprep.subr.bf16.mxu0 0
  %44 = vmatpush1.bf16.msra.mxu0 0
  %45 = vmatprep.subr.bf16.mxu0 0
  %46 = vmatpush1.bf16.msra.mxu0 0
  %47 = vmatprep.subr.bf16.mxu0 0
  %48 = vmatpush1.bf16.msra.mxu0 0
  %49 = vmatprep.subr.bf16.mxu0 0
  %50 = vmatpush1.bf16.msra.mxu0 0
  %51 = vmatprep.subr.bf16.mxu0 0
  %52 = vmatpush1.bf16.msra.mxu0 0
  %53 = vmatprep.subr.bf16.mxu0 0
  %54 = vmatpush1.bf16.msra.mxu0 0
  %55 = vmatprep.subr.bf16.mxu0 0
  %56 = vmatpush1.bf16.msra.mxu0 0
  %57 = vmatprep.subr.bf16.mxu0 0
  %58 = vmatpush1.bf16.msra.mxu0 0
  %59 = vmatprep.subr.bf16.mxu0 0
  %60 = vmatpush1.bf16.msra.mxu0 0
  %61 = vmatprep.subr.bf16.mxu0 0
  %62 = vmatpush1.bf16.msra.mxu0 0
  %63 = vmatprep.subr.bf16.mxu0 0
  %64 = vmatpush1.bf16.msra.mxu0 0
  %65 = vmatprep.subr.bf16.mxu0 0
  %66 = vmatpush1.bf16.msra.mxu0 0
  %67 = vmatprep.subr.bf16.mxu0 0
  %68 = vmatpush1.bf16.msra.mxu0 0
  %69 = vmatprep.subr.bf16.mxu0 0
  %70 = vmatpush1.bf16.msra.mxu0 0
  %71 = vmatprep.mubr.bf16.mxu0 0
  %72 = vmatmul.mubr.bf16.gmra.mrb[0].mxu0 %v37
  %v73 = vpop.f32.mrb[0].mxu0
  %v74 = vadd.f32 0.0, %v73
  %v75 = vpop.f32.mrb[0].mxu0
  %v76 = vpop.f32.mrb[0].mxu0
  %v77 = vadd.f32 0.0, %v76
  %v78 = vpop.f32.mrb[0].mxu0
  %79 = vdwg.mxu0
  %v80 = vadd.f32 %v22, %v74
  %v81 = vadd.f32 %v23, %v77
  %vm82 = vcmask 261120
  %83 = vst.msk [vmem:[#allocation2] sm:$0xff] %vm82, %v80
  %84 = vst.msk [vmem:[#allocation2 + $0x8] sm:$0xff] %vm82, %v81
  // Predicated region
  $region18: #{_lambda_.14} parent=0 // pred_check
    %p85 = pneg %p15
  $region19: #{_lambda_.14} parent=0 // pred_check_branch
    %87 = sbr.rel (%p85) target = $region21
  $region20: #{_lambda_.14} parent=0 // pred_region
    %v88 = vld [vmem:[#allocation2] sm:$0xff]
    %v89 = vld [vmem:[#allocation2 + $0x8] sm:$0xff]
    %v90 = vld [vmem:[%s2] sm:$0x1]
    %v92 = vlaneseq
    %v93 = vshrl.u32 %v92, 7
    %v94 = vsub.s32 0, %v93
    %v95 = vrot.slane %v90, %v94
    %v97 = vadd.f32 %v88, %v95
    %v98 = vadd.f32 %v89, %v95
    %99 = vst.msk [vmem:[%s3] sm:$0xff] %vm82, %v97
    %100 = vst.msk [vmem:[%s3 + $0x8] sm:$0xff] %vm82, %v98
  $region21: #{_lambda_.14} parent=0 // pred_fallthru
    _
  // Predicated region
  $region22: #{_lambda_.14} parent=0 // pred_check
    _
  $region23: #{_lambda_.14} parent=0 // pred_check_branch
    %102 = sbr.rel (0) target = $region25
  $region24: #{_lambda_.14} parent=0 // pred_region
    _
  $region25: #{_lambda_.14} parent=0 // pred_fallthru
    _
  // Predicated region
  $region26: #{_lambda_.14} parent=0 // pred_check
    _
  $region27: #{_lambda_.14} parent=0 // pred_check_branch
    %104 = sbr.rel (0) target = $region29
  $region28: #{_lambda_.14} parent=0 // pred_region
    _
  $region29: #{_lambda_.14} parent=0 // pred_fallthru
    _

// kernel: _lambda_.15
$region0: #{_lambda_.15}
  #allocation0 [shape = 'u32[]', space=smem, size = 0x4, offset = 0x4, fixed_abs, tag = 'smem constant byte address 0x4 - core index']
  #allocation1 [shape = 'u32[144,128]{1,0:T(1,128)}', space=vmem, size = 0x12000, scoped, tag = 'internal scratch']
  #allocation2 [shape = 'f32[8,32]{1,0:T(8,128)}', space=vmem, size = 0x1000, scoped, tag = 'scratch operand']
  %s0 = inlined_call_operand.vmem [shape: f32[2,8,32], index: 0, kind: input, shape index: {}]
  %s1 = inlined_call_operand.vmem [shape: f32[1,32], index: 1, kind: input, shape index: {}]
  %s2 = inlined_call_operand.vmem [shape: bf16[32,96], index: 2, kind: input, shape index: {}]
  %s3 = inlined_call_operand.vmem [shape: bf16[32,32], index: 3, kind: input, shape index: {}]
  %s4 = inlined_call_operand.vmem [shape: f32[4,8,8], index: 4, kind: input, shape index: {}]
  %s5 = inlined_call_operand.vmem [shape: f32[2,1,8], index: 5, kind: input, shape index: {}]
  %s6 = inlined_call_operand.vmem [shape: f32[2,8,32], index: 6, kind: output, shape index: {}]
  %s7 = sld [smem:[#allocation0]]
  $region57: #{_lambda_.15} parent=0
    _
  %s9 = ssub.s32 1, %s7
  %s10 = scalar_select 0, %s9, %s7
  loop: start=0, step=1, limit=4
  $region2: #{_lambda_.15} parent=0 // loop_pre_header
    _
  $region3: #{_lambda_.15} parent=0 // loop_header
    %s12 = sphi 0, %s16
    %p13 = scmp.ge.s32.totalorder %s12, 4
    %s22 = sphi 0, %s24
    %s25 = sphi 0, %s22
    %s26 = sphi 0, %s25
    %s42 = sphi 0, %s26
    %s46 = sphi 0, %s46
    %s48 = sphi 0, %s46
    %s49 = sphi 0, %s48
    %s63 = sphi 0, %s49
    %s67 = sphi 0, %s67
    %s69 = sphi 0, %s67
    %s70 = sphi 0, %s69
    %s84 = sphi 0, %s70
    %s88 = sphi 0, %s88
    %s90 = sphi 0, %s88
    %s91 = sphi 0, %s90
    %s105 = sphi 0, %s91
    %s109 = sphi 0, %s109
    %s111 = sphi 0, %s109
    %s112 = sphi 0, %s111
    %s126 = sphi 0, %s112
    %s132 = sphi 0, %s134
    %s135 = sphi 0, %s132
    %s136 = sphi 0, %s135
    %s152 = sphi 0, %s136
    %s158 = sphi 0, %s160
    %s161 = sphi 0, %s158
    %s162 = sphi 0, %s161
    %s178 = sphi 0, %s162
  $region4: #{_lambda_.15} parent=0 // loop_header_branch
    %15 = sbr.rel (%p13) target = $region8
  $region5: #{_lambda_.15} parent=0 // loop_body
    %s17 = ssub.s32 %s12, 1
    %s18 = ssub.s32 %s12, 2
    %s19 = sadd.s32 %s12, 1
    %s20 = ssub.s32 %s12, %s19
    %p21 = scmp.eq.s32.totalorder %s20, 0
    %s23 = sadd.s32 %s22, 1
    %s24 = scalar_select %p21, %s22, %s23
    %p27 = pneg %p21
    %p28 = scmp.eq.s32.totalorder %s12, 1
    %p29 = por %p27, %p28
    %p30 = scmp.ne.s32.totalorder %s22, %s25
    %p31 = scmp.eq.s32.totalorder %s12, 0
    %p32 = por %p30, %p31
    %p33 = scmp.ne.s32.totalorder %s22, %s25
    %p34 = scmp.eq.s32.totalorder %s17, 1
    %p35 = por %p33, %p34
    %p36 = scmp.ne.s32.totalorder %s25, %s26
    %p37 = scmp.eq.s32.totalorder %s17, 0
    %p38 = por %p36, %p37
    %p39 = scmp.ne.s32.totalorder %s25, %s26
    %p40 = scmp.eq.s32.totalorder %s18, 1
    %p41 = por %p39, %p40
    %p43 = scmp.ne.s32.totalorder %s26, %s42
    %p44 = scmp.eq.s32.totalorder %s18, 0
    %p45 = por %p43, %p44
    %s47 = sadd.s32 %s46, 1
    %p50 = scmp.eq.s32.totalorder %s12, 1
    %p51 = scmp.ne.s32.totalorder %s46, %s48
    %p52 = scmp.eq.s32.totalorder %s12, 0
    %p53 = por %p51, %p52
    %p54 = scmp.ne.s32.totalorder %s46, %s48
    %p55 = scmp.eq.s32.totalorder %s17, 1
    %p56 = por %p54, %p55
    %p57 = scmp.ne.s32.totalorder %s48, %s49
    %p58 = scmp.eq.s32.totalorder %s17, 0
    %p59 = por %p57, %p58
    %p60 = scmp.ne.s32.totalorder %s48, %s49
    %p61 = scmp.eq.s32.totalorder %s18, 1
    %p62 = por %p60, %p61
    %p64 = scmp.ne.s32.totalorder %s49, %s63
    %p65 = scmp.eq.s32.totalorder %s18, 0
    %p66 = por %p64, %p65
    %s68 = sadd.s32 %s67, 1
    %p71 = scmp.eq.s32.totalorder %s12, 1
    %p72 = scmp.ne.s32.totalorder %s67, %s69
    %p73 = scmp.eq.s32.totalorder %s12, 0
    %p74 = por %p72, %p73
    %p75 = scmp.ne.s32.totalorder %s67, %s69
    %p76 = scmp.eq.s32.totalorder %s17, 1
    %p77 = por %p75, %p76
    %p78 = scmp.ne.s32.totalorder %s69, %s70
    %p79 = scmp.eq.s32.totalorder %s17, 0
    %p80 = por %p78, %p79
    %p81 = scmp.ne.s32.totalorder %s69, %s70
    %p82 = scmp.eq.s32.totalorder %s18, 1
    %p83 = por %p81, %p82
    %p85 = scmp.ne.s32.totalorder %s70, %s84
    %p86 = scmp.eq.s32.totalorder %s18, 0
    %p87 = por %p85, %p86
    %s89 = sadd.s32 %s88, 1
    %p92 = scmp.eq.s32.totalorder %s12, 1
    %p93 = scmp.ne.s32.totalorder %s88, %s90
    %p94 = scmp.eq.s32.totalorder %s12, 0
    %p95 = por %p93, %p94
    %p96 = scmp.ne.s32.totalorder %s88, %s90
    %p97 = scmp.eq.s32.totalorder %s17, 1
    %p98 = por %p96, %p97
    %p99 = scmp.ne.s32.totalorder %s90, %s91
    %p100 = scmp.eq.s32.totalorder %s17, 0
    %p101 = por %p99, %p100
    %p102 = scmp.ne.s32.totalorder %s90, %s91
    %p103 = scmp.eq.s32.totalorder %s18, 1
    %p104 = por %p102, %p103
    %p106 = scmp.ne.s32.totalorder %s91, %s105
    %p107 = scmp.eq.s32.totalorder %s18, 0
    %p108 = por %p106, %p107
    %s110 = sadd.s32 %s109, 1
    %p113 = scmp.eq.s32.totalorder %s12, 1
    %p114 = scmp.ne.s32.totalorder %s109, %s111
    %p115 = scmp.eq.s32.totalorder %s12, 0
    %p116 = por %p114, %p115
    %p117 = scmp.ne.s32.totalorder %s109, %s111
    %p118 = scmp.eq.s32.totalorder %s17, 1
    %p119 = por %p117, %p118
    %p120 = scmp.ne.s32.totalorder %s111, %s112
    %p121 = scmp.eq.s32.totalorder %s17, 0
    %p122 = por %p120, %p121
    %p123 = scmp.ne.s32.totalorder %s111, %s112
    %p124 = scmp.eq.s32.totalorder %s18, 1
    %p125 = por %p123, %p124
    %p127 = scmp.ne.s32.totalorder %s112, %s126
    %p128 = scmp.eq.s32.totalorder %s18, 0
    %p129 = por %p127, %p128
    %s130 = ssub.s32 %s12, %s19
    %p131 = scmp.eq.s32.totalorder %s130, 0
    %s133 = sadd.s32 %s132, 1
    %s134 = scalar_select %p131, %s132, %s133
    %p137 = pneg %p131
    %p138 = scmp.eq.s32.totalorder %s12, 1
    %p139 = por %p137, %p138
    %p140 = scmp.ne.s32.totalorder %s132, %s135
    %p141 = scmp.eq.s32.totalorder %s12, 0
    %p142 = por %p140, %p141
    %p143 = scmp.ne.s32.totalorder %s132, %s135
    %p144 = scmp.eq.s32.totalorder %s17, 1
    %p145 = por %p143, %p144
    %p146 = scmp.ne.s32.totalorder %s135, %s136
    %p147 = scmp.eq.s32.totalorder %s17, 0
    %p148 = por %p146, %p147
    %p149 = scmp.ne.s32.totalorder %s135, %s136
    %p150 = scmp.eq.s32.totalorder %s18, 1
    %p151 = por %p149, %p150
    %p153 = scmp.ne.s32.totalorder %s136, %s152
    %p154 = scmp.eq.s32.totalorder %s18, 0
    %p155 = por %p153, %p154
    %s156 = ssub.s32 %s12, %s19
    %p157 = scmp.eq.s32.totalorder %s156, 0
    %s159 = sadd.s32 %s158, 1
    %s160 = scalar_select %p157, %s158, %s159
    %p163 = pneg %p157
    %p164 = scmp.eq.s32.totalorder %s12, 1
    %p165 = por %p163, %p164
    %p166 = scmp.ne.s32.totalorder %s158, %s161
    %p167 = scmp.eq.s32.totalorder %s12, 0
    %p168 = por %p166, %p167
    %p169 = scmp.ne.s32.totalorder %s158, %s161
    %p170 = scmp.eq.s32.totalorder %s17, 1
    %p171 = por %p169, %p170
    %p172 = scmp.ne.s32.totalorder %s161, %s162
    %p173 = scmp.eq.s32.totalorder %s17, 0
    %p174 = por %p172, %p173
    %p175 = scmp.ne.s32.totalorder %s161, %s162
    %p176 = scmp.eq.s32.totalorder %s18, 1
    %p177 = por %p175, %p176
    %p179 = scmp.ne.s32.totalorder %s162, %s178
    %p180 = scmp.eq.s32.totalorder %s18, 0
    %p181 = por %p179, %p180
    %p182 = scmp.le.s32.totalorder 1, %s12
    %p183 = scmp.lt.s32.totalorder %s12, 3
    %p184 = pnand %p182, %p183
    %p185 = pneg %p184
    // Predicated region
    $region9: #{_lambda_.15} parent=5 // pred_check
      _
    $region10: #{_lambda_.15} parent=5 // pred_check_branch
      %187 = sbr.rel (%p184) target = $region12
    $region11: #{_lambda_.15} parent=5 // pred_region
      %s188 = ssub.s32 %s12, 1
      // Predicated region
      $region13: #{_lambda_.15} parent=11 // pred_check
        %p189 = pneg %p59
      $region14: #{_lambda_.15} parent=11 // pred_check_branch
        %191 = sbr.rel (%p189) target = $region16
      $region15: #{_lambda_.15} parent=11 // pred_region
        _
      $region16: #{_lambda_.15} parent=11 // pred_fallthru
        _
      // Predicated region
      $region17: #{_lambda_.15} parent=11 // pred_check
        %p192 = pneg %p80
      $region18: #{_lambda_.15} parent=11 // pred_check_branch
        %194 = sbr.rel (%p192) target = $region20
      $region19: #{_lambda_.15} parent=11 // pred_region
        _
      $region20: #{_lambda_.15} parent=11 // pred_fallthru
        _
      // Predicated region
      $region21: #{_lambda_.15} parent=11 // pred_check
        %p195 = pneg %p101
      $region22: #{_lambda_.15} parent=11 // pred_check_branch
        %197 = sbr.rel (%p195) target = $region24
      $region23: #{_lambda_.15} parent=11 // pred_region
        _
      $region24: #{_lambda_.15} parent=11 // pred_fallthru
        _
      // Predicated region
      $region25: #{_lambda_.15} parent=11 // pred_check
        %p198 = pneg %p122
      $region26: #{_lambda_.15} parent=11 // pred_check_branch
        %200 = sbr.rel (%p198) target = $region28
      $region27: #{_lambda_.15} parent=11 // pred_region
        _
      $region28: #{_lambda_.15} parent=11 // pred_fallthru
        _
    $region12: #{_lambda_.15} parent=5 // pred_fallthru
      _
    %p201 = scmp.lt.s32.totalorder %s12, 2
    // Predicated region
    $region29: #{_lambda_.15} parent=5 // pred_check
      %p202 = pneg %p201
    $region30: #{_lambda_.15} parent=5 // pred_check_branch
      %204 = sbr.rel (%p202) target = $region32
    $region31: #{_lambda_.15} parent=5 // pred_region
      // Predicated region
      $region33: #{_lambda_.15} parent=31 // pred_check
        %p205 = pneg %p32
      $region34: #{_lambda_.15} parent=31 // pred_check_branch
        %207 = sbr.rel (%p205) target = $region36
      $region35: #{_lambda_.15} parent=31 // pred_region
        %p208 = scmp.lt.s32.totalorder %s12, 1
        %s209 = scalar_select %p208, %s12, 1
        %s210 = smul.addr %s209, 8
        %s211 = scalar_lea.vmem %s0, %s210
      $region36: #{_lambda_.15} parent=31 // pred_fallthru
        _
      // Predicated region
      $region37: #{_lambda_.15} parent=31 // pred_check
        %p212 = pneg %p142
      $region38: #{_lambda_.15} parent=31 // pred_check_branch
        %214 = sbr.rel (%p212) target = $region40
      $region39: #{_lambda_.15} parent=31 // pred_region
        %p215 = scmp.lt.s32.totalorder %s12, 1
        %s216 = scalar_select %p215, %s12, 1
        %s217 = scalar_lea.vmem %s5, %s216
      $region40: #{_lambda_.15} parent=31 // pred_fallthru
        _
    $region32: #{_lambda_.15} parent=5 // pred_fallthru
      _
    %p218 = scmp.le.s32.totalorder 1, %s12
    %p219 = scmp.lt.s32.totalorder %s12, 3
    %p220 = pnand %p218, %p219
    %p221 = pneg %p220
    // Predicated region
    $region41: #{_lambda_.15} parent=5 // pred_check
      _
    $region42: #{_lambda_.15} parent=5 // pred_check_branch
      %223 = sbr.rel (%p220) target = $region44
    $region43: #{_lambda_.15} parent=5 // pred_region
      %s224 = ssub.s32 %s12, 1
      %p225 = scmp.lt.s32.totalorder %s17, 1
      %s226 = scalar_select %p225, %s17, 1
      %s227 = smul.addr %s226, 8
      %s228 = scalar_lea.vmem %s0, %s227
      %p229 = pneg %p38
      %p230 = pneg %p35
      %p231 = pneg %p59
      %p232 = pneg %p56
      %p233 = pneg %p80
      %p234 = pneg %p77
      %p235 = pneg %p101
      %p236 = pneg %p98
      %p237 = pneg %p122
      %p238 = pneg %p119
      %p239 = scmp.lt.s32.totalorder %s17, 1
      %s240 = scalar_select %p239, %s17, 1
      %s241 = scalar_lea.vmem %s5, %s240
      %p242 = pneg %p148
      %p243 = pneg %p145
      %p244 = pneg %p174
      %p245 = pneg %p171
      %p246 = scmp.lt.s32.totalorder %s17, 1
      %s247 = scalar_select %p246, %s17, 1
      %s248 = smul.addr %s247, 8
      %s249 = scalar_lea.vmem %s6, %s248
      %p250 = scmp.lt.s32.totalorder %s17, 1
      %s251 = scalar_select %p250, %s17, 1
      %s252 = smul.addr %s251, 8
      %s253 = scalar_lea.vmem %s0, %s252
      %p254 = scmp.lt.s32.totalorder %s17, 1
      %s255 = scalar_select %p254, %s17, 1
      %s256 = scalar_lea.vmem %s5, %s255
      %p257 = scmp.lt.s32.totalorder %s17, 1
      %s258 = scalar_select %p257, %s17, 1
      %s259 = smul.addr %s258, 8
      %s260 = scalar_lea.vmem %s6, %s259
      %v262 = vld [vmem:[%s253] sm:$0xff]
      %v263 = vmul.f32 %v262, %v262
      %vm264 = vcmask 261120
      %v265 = vsel %vm264, %v263, 0.0
      %266 = vadd.xlane.f32.xlu0 %v265
      %v267 = vpop.xlane.xlu0 %266
      %v268 = vrcp.pop 32.0
      %v269 = vmul.f32 %v267, %v268
      %v270 = vld [vmem:[%s1] sm:$0x1]
      %v271 = vadd.f32 %v269, 1e-06
      %v272 = vrsqrt.pop %v271
      %v273 = vmul.f32 %v262, %v272
      %v275 = vlaneseq
      %v276 = vshrl.u32 %v275, 7
      %v277 = vsub.s32 0, %v276
      %v278 = vrot.slane %v270, %v277
      %v280 = vmul.f32 %v278, %v273
      %v281 = vld [vmem:[%s2] sm:$0xf]
      %v282 = vld [vmem:[%s2 + $0x4] sm:$0xf]
      %v283 = vld [vmem:[%s2 + $0x8] sm:$0xf]
      %v284 = vld [vmem:[%s2 + $0xc] sm:$0xf]
      %v285 = vpack.c.bf16 %v280, %v280
      %v290 = vunpack.c.l.b16 %v281
      %v291 = vunpack.c.l.b16 %v282
      %v292 = vunpack.c.l.b16 %v283
      %v293 = vunpack.c.l.b16 %v284
      %v294 = vpack.c.b16 %v291, %v290
      %v295 = vpack.c.b16 %v293, %v292
      %v299 = vsel %vm264, %v285, 0
      %301 = vmatprep.subr.bf16.mxu0 0
      %302 = vmatpush1.bf16.msra.mxu0 %v294
      %303 = vmatprep.subr.bf16.mxu0 0
      %304 = vmatpush1.bf16.msra.mxu0 %v295
      %305 = vmatprep.subr.bf16.mxu0 0
      %306 = vmatpush1.bf16.msra.mxu0 0
      %307 = vmatprep.subr.bf16.mxu0 0
      %308 = vmatpush1.bf16.msra.mxu0 0
      %309 = vmatprep.subr.bf16.mxu0 0
      %310 = vmatpush1.bf16.msra.mxu0 0
      %311 = vmatprep.subr.bf16.mxu0 0
      %312 = vmatpush1.bf16.msra.mxu0 0
      %313 = vmatprep.subr.bf16.mxu0 0
      %314 = vmatpush1.bf16.msra.mxu0 0
      %315 = vmatprep.subr.bf16.mxu0 0
      %316 = vmatpush1.bf16.msra.mxu0 0
      %317 = vmatprep.subr.bf16.mxu0 0
      %318 = vmatpush1.bf16.msra.mxu0 0
      %319 = vmatprep.subr.bf16.mxu0 0
      %320 = vmatpush1.bf16.msra.mxu0 0
      %321 = vmatprep.subr.bf16.mxu0 0
      %322 = vmatpush1.bf16.msra.mxu0 0
      %323 = vmatprep.subr.bf16.mxu0 0
      %324 = vmatpush1.bf16.msra.mxu0 0
      %325 = vmatprep.subr.bf16.mxu0 0
      %326 = vmatpush1.bf16.msra.mxu0 0
      %327 = vmatprep.subr.bf16.mxu0 0
      %328 = vmatpush1.bf16.msra.mxu0 0
      %329 = vmatprep.subr.bf16.mxu0 0
      %330 = vmatpush1.bf16.msra.mxu0 0
      %331 = vmatprep.subr.bf16.mxu0 0
      %332 = vmatpush1.bf16.msra.mxu0 0
      %333 = vmatprep.mubr.bf16.mxu0 0
      %334 = vmatmul.mubr.bf16.gmra.mrb[0].mxu0 %v299
      %v335 = vpop.f32.mrb[0].mxu0
      %v336 = vadd.f32 0.0, %v335
      %v337 = vpop.f32.mrb[0].mxu0
      %v338 = vpop.f32.mrb[0].mxu0
      %v339 = vpop.f32.mrb[0].mxu0
      %340 = vdwg.mxu0
      %v341 = vld [vmem:[%s256] sm:$0x1]
      %v342 = vpack.c.bf16 %v336, %v336
      %v344 = vlaneseq
      %v345 = vshrl.u32 %v344, 7
      %v346 = vsub.s32 0, %v345
      %v347 = vrot.slane %v341, %v346
      %350 = vrot.lane.b32.xlu0 %v342, 96
      %v351 = vpop.permute.xlu0 %350
      %vm352 = vcmask 64512
      %v354 = vsel %vm352, %v342, 0
      %v357 = vsel %vm352, %v351, 0
      %359 = vmatprep.subr.bf16.mxu0 0
      %360 = vmatpush1.bf16.xpose.msra.mxu0 %v357
      %361 = vmatprep.subr.bf16.mxu0 0
      %362 = vmatpush1.bf16.xpose.msra.mxu0 0
      %363 = vmatprep.subr.bf16.mxu0 0
      %364 = vmatpush1.bf16.xpose.msra.mxu0 0
      %365 = vmatprep.subr.bf16.mxu0 0
      %366 = vmatpush1.bf16.xpose.msra.mxu0 0
      %367 = vmatprep.subr.bf16.mxu0 0
      %368 = vmatpush1.bf16.xpose.msra.mxu0 0
      %369 = vmatprep.subr.bf16.mxu0 0
      %370 = vmatpush1.bf16.xpose.msra.mxu0 0
      %371 = vmatprep.subr.bf16.mxu0 0
      %372 = vmatpush1.bf16.xpose.msra.mxu0 0
      %373 = vmatprep.subr.bf16.mxu0 0
      %374 = vmatpush1.bf16.xpose.msra.mxu0 0
      %375 = vmatprep.subr.bf16.mxu0 0
      %376 = vmatpush1.bf16.xpose.msra.mxu0 0
      %377 = vmatprep.subr.bf16.mxu0 0
      %378 = vmatpush1.bf16.xpose.msra.mxu0 0
      %379 = vmatprep.subr.bf16.mxu0 0
      %380 = vmatpush1.bf16.xpose.msra.mxu0 0
      %381 = vmatprep.subr.bf16.mxu0 0
      %382 = vmatpush1.bf16.xpose.msra.mxu0 0
      %383 = vmatprep.subr.bf16.mxu0 0
      %384 = vmatpush1.bf16.xpose.msra.mxu0 0
      %385 = vmatprep.subr.bf16.mxu0 0
      %386 = vmatpush1.bf16.xpose.msra.mxu0 0
      %387 = vmatprep.subr.bf16.mxu0 0
      %388 = vmatpush1.bf16.xpose.msra.mxu0 0
      %389 = vmatprep.subr.bf16.mxu0 0
      %390 = vmatpush1.bf16.xpose.msra.mxu0 0
      %391 = vmatprep.mubr.bf16.mxu0 0
      %392 = vmatmul.mubr.bf16.gmra.mrb[0].mxu0 %v354
      %v393 = vpop.f32.mrb[0].mxu0
      %v394 = vadd.f32 %v347, %v393
      %v395 = vpop.f32.mrb[0].mxu0
      %v396 = vpop.f32.mrb[0].mxu0
      %v397 = vpop.f32.mrb[0].mxu0
      %398 = vdwg.mxu0
      %v399 = vld [vmem:[%s4] sm:$0xff]
      %v400 = vadd.f32 %v394, %v399
      %v401 = vsel %vm352, %v400, -inf
      %402 = vmax.xlane.f32.xlu0 %v401
      %v403 = vpop.xlane.xlu0 %402
      %v404 = vsub.f32 %v400, %v403
      %v405 = vmul.f32 %v404, 1.442695
      %v406 = vpow.pop %v405
      %v407 = vsel %vm352, %v406, 0.0
      %408 = vadd.xlane.f32.xlu0 %v407
      %v409 = vpop.xlane.xlu0 %408
      %v410 = vrcp.pop %v409
      %v411 = vmul.f32 %v406, %v410
      %v412 = vpack.c.bf16 %v411, %v411
      %413 = vrot.lane.b32.xlu0 %v342, 64
      %v414 = vpop.permute.xlu0 %413
      %v416 = vsel %vm352, %v412, 0
      %vm418 = vcmask 1043456
      %v420 = vsel %vm418, %v414, 0
      %422 = vmatprep.subr.bf16.mxu0 0
      %423 = vmatpush1.bf16.msra.mxu0 %v420
      %424 = vmatprep.subr.bf16.mxu0 0
      %425 = vmatpush1.bf16.msra.mxu0 0
      %426 = vmatprep.subr.bf16.mxu0 0
      %427 = vmatpush1.bf16.msra.mxu0 0
      %428 = vmatprep.subr.bf16.mxu0 0
      %429 = vmatpush1.bf16.msra.mxu0 0
      %430 = vmatprep.subr.bf16.mxu0 0
      %431 = vmatpush1.bf16.msra.mxu0 0
      %432 = vmatprep.subr.bf16.mxu0 0
      %433 = vmatpush1.bf16.msra.mxu0 0
      %434 = vmatprep.subr.bf16.mxu0 0
      %435 = vmatpush1.bf16.msra.mxu0 0
      %436 = vmatprep.subr.bf16.mxu0 0
      %437 = vmatpush1.bf16.msra.mxu0 0
      %438 = vmatprep.subr.bf16.mxu0 0
      %439 = vmatpush1.bf16.msra.mxu0 0
      %440 = vmatprep.subr.bf16.mxu0 0
      %441 = vmatpush1.bf16.msra.mxu0 0
      %442 = vmatprep.subr.bf16.mxu0 0
      %443 = vmatpush1.bf16.msra.mxu0 0
      %444 = vmatprep.subr.bf16.mxu0 0
      %445 = vmatpush1.bf16.msra.mxu0 0
      %446 = vmatprep.subr.bf16.mxu0 0
      %447 = vmatpush1.bf16.msra.mxu0 0
      %448 = vmatprep.subr.bf16.mxu0 0
      %449 = vmatpush1.bf16.msra.mxu0 0
      %450 = vmatprep.subr.bf16.mxu0 0
      %451 = vmatpush1.bf16.msra.mxu0 0
      %452 = vmatprep.subr.bf16.mxu0 0
      %453 = vmatpush1.bf16.msra.mxu0 0
      %454 = vmatprep.mubr.bf16.mxu0 0
      %455 = vmatmul.mubr.bf16.gmra.mrb[0].mxu0 %v416
      %v456 = vpop.f32.mrb[0].mxu0
      %v457 = vadd.f32 0.0, %v456
      %v458 = vpop.f32.mrb[0].mxu0
      %v459 = vpop.f32.mrb[0].mxu0
      %v460 = vpop.f32.mrb[0].mxu0
      %461 = vdwg.mxu0
      %462 = vst.msk [vmem:[#allocation2] sm:$0xff] %vm352, %v457
      %463 = vrot.lane.b32.xlu0 %v342, 120
      %v464 = vpop.permute.xlu0 %463
      %465 = vrot.lane.b32.xlu0 %v342, 88
      %v466 = vpop.permute.xlu0 %465
      %v468 = vsel %vm352, %v464, 0
      %v471 = vsel %vm352, %v466, 0
      %473 = vmatprep.subr.bf16.mxu0 0
      %474 = vmatpush1.bf16.xpose.msra.mxu0 %v471
      %475 = vmatprep.subr.bf16.mxu0 0
      %476 = vmatpush1.bf16.xpose.msra.mxu0 0
      %477 = vmatprep.subr.bf16.mxu0 0
      %478 = vmatpush1.bf16.xpose.msra.mxu0 0
      %479 = vmatprep.subr.bf16.mxu0 0
      %480 = vmatpush1.bf16.xpose.msra.mxu0 0
      %481 = vmatprep.subr.bf16.mxu0 0
      %482 = vmatpush1.bf16.xpose.msra.mxu0 0
      %483 = vmatprep.subr.bf16.mxu0 0
      %484 = vmatpush1.bf16.xpose.msra.mxu0 0
      %485 = vmatprep.subr.bf16.mxu0 0
      %486 = vmatpush1.bf16.xpose.msra.mxu0 0
      %487 = vmatprep.subr.bf16.mxu0 0
      %488 = vmatpush1.bf16.xpose.msra.mxu0 0
      %489 = vmatprep.subr.bf16.mxu0 0
      %490 = vmatpush1.bf16.xpose.msra.mxu0 0
      %491 = vmatprep.subr.bf16.mxu0 0
      %492 = vmatpush1.bf16.xpose.msra.mxu0 0
      %493 = vmatprep.subr.bf16.mxu0 0
      %494 = vmatpush1.bf16.xpose.msra.mxu0 0
      %495 = vmatprep.subr.bf16.mxu0 0
      %496 = vmatpush1.bf16.xpose.msra.mxu0 0
      %497 = vmatprep.subr.bf16.mxu0 0
      %498 = vmatpush1.bf16.xpose.msra.mxu0 0
      %499 = vmatprep.subr.bf16.mxu0 0
      %500 = vmatpush1.bf16.xpose.msra.mxu0 0
      %501 = vmatprep.subr.bf16.mxu0 0
      %502 = vmatpush1.bf16.xpose.msra.mxu0 0
      %503 = vmatprep.subr.bf16.mxu0 0
      %504 = vmatpush1.bf16.xpose.msra.mxu0 0
      %505 = vmatprep.mubr.bf16.mxu0 0
      %506 = vmatmul.mubr.bf16.gmra.mrb[0].mxu0 %v468
      %v507 = vpop.f32.mrb[0].mxu0
      %v508 = vadd.f32 %v347, %v507
      %v509 = vpop.f32.mrb[0].mxu0
      %v510 = vpop.f32.mrb[0].mxu0
      %v511 = vpop.f32.mrb[0].mxu0
      %512 = vdwg.mxu0
      %s513 = scalar_lea.vmem %s4, 8
      %v514 = vld [vmem:[%s513] sm:$0xff]
      %v515 = vadd.f32 %v508, %v514
      %v516 = vsel %vm352, %v515, -inf
      %517 = vmax.xlane.f32.xlu0 %v516
      %v518 = vpop.xlane.xlu0 %517
      %v519 = vsub.f32 %v515, %v518
      %v520 = vmul.f32 %v519, 1.442695
      %v521 = vpow.pop %v520
      %v522 = vsel %vm352, %v521, 0.0
      %523 = vadd.xlane.f32.xlu0 %v522
      %v524 = vpop.xlane.xlu0 %523
      %v525 = vrcp.pop %v524
      %v526 = vmul.f32 %v521, %v525
      %v527 = vpack.c.bf16 %v526, %v526
      %528 = vrot.lane.b32.xlu0 %v342, 56
      %v529 = vpop.permute.xlu0 %528
      %v531 = vsel %vm352, %v527, 0
      %v534 = vsel %vm418, %v529, 0
      %536 = vmatprep.subr.bf16.mxu0 0
      %537 = vmatpush1.bf16.msra.mxu0 %v534
      %538 = vmatprep.subr.bf16.mxu0 0
      %539 = vmatpush1.bf16.msra.mxu0 0
      %540 = vmatprep.subr.bf16.mxu0 0
      %541 = vmatpush1.bf16.msra.mxu0 0
      %542 = vmatprep.subr.bf16.mxu0 0
      %543 = vmatpush1.bf16.msra.mxu0 0
      %544 = vmatprep.subr.bf16.mxu0 0
      %545 = vmatpush1.bf16.msra.mxu0 0
      %546 = vmatprep.subr.bf16.mxu0 0
      %547 = vmatpush1.bf16.msra.mxu0 0
      %548 = vmatprep.subr.bf16.mxu0 0
      %549 = vmatpush1.bf16.msra.mxu0 0
      %550 = vmatprep.subr.bf16.mxu0 0
      %551 = vmatpush1.bf16.msra.mxu0 0
      %552 = vmatprep.subr.bf16.mxu0 0
      %553 = vmatpush1.bf16.msra.mxu0 0
      %554 = vmatprep.subr.bf16.mxu0 0
      %555 = vmatpush1.bf16.msra.mxu0 0
      %556 = vmatprep.subr.bf16.mxu0 0
      %557 = vmatpush1.bf16.msra.mxu0 0
      %558 = vmatprep.subr.bf16.mxu0 0
      %559 = vmatpush1.bf16.msra.mxu0 0
      %560 = vmatprep.subr.bf16.mxu0 0
      %561 = vmatpush1.bf16.msra.mxu0 0
      %562 = vmatprep.subr.bf16.mxu0 0
      %563 = vmatpush1.bf16.msra.mxu0 0
      %564 = vmatprep.subr.bf16.mxu0 0
      %565 = vmatpush1.bf16.msra.mxu0 0
      %566 = vmatprep.subr.bf16.mxu0 0
      %567 = vmatpush1.bf16.msra.mxu0 0
      %568 = vmatprep.mubr.bf16.mxu0 0
      %569 = vmatmul.mubr.bf16.gmra.mrb[0].mxu0 %v531
      %v570 = vpop.f32.mrb[0].mxu0
      %v571 = vadd.f32 0.0, %v570
      %v572 = vpop.f32.mrb[0].mxu0
      %v573 = vpop.f32.mrb[0].mxu0
      %v574 = vpop.f32.mrb[0].mxu0
      %575 = vdwg.mxu0
      %577 = vrot.lane.b32.xlu0 %v571, 8
      %v578 = vpop.permute.xlu0 %577
      %vm580 = vcmask 130112
      %581 = vst.msk [vmem:[#allocation2] sm:$0xff] %vm580, %v578
      %582 = vrot.lane.b32.xlu0 %v342, 112
      %v583 = vpop.permute.xlu0 %582
      %584 = vrot.lane.b32.xlu0 %v342, 80
      %v585 = vpop.permute.xlu0 %584
      %v587 = vsel %vm352, %v583, 0
      %v590 = vsel %vm352, %v585, 0
      %592 = vmatprep.subr.bf16.mxu0 0
      %593 = vmatpush1.bf16.xpose.msra.mxu0 %v590
      %594 = vmatprep.subr.bf16.mxu0 0
      %595 = vmatpush1.bf16.xpose.msra.mxu0 0
      %596 = vmatprep.subr.bf16.mxu0 0
      %597 = vmatpush1.bf16.xpose.msra.mxu0 0
      %598 = vmatprep.subr.bf16.mxu0 0
      %599 = vmatpush1.bf16.xpose.msra.mxu0 0
      %600 = vmatprep.subr.bf16.mxu0 0
      %601 = vmatpush1.bf16.xpose.msra.mxu0 0
      %602 = vmatprep.subr.bf16.mxu0 0
      %603 = vmatpush1.bf16.xpose.msra.mxu0 0
      %604 = vmatprep.subr.bf16.mxu0 0
      %605 = vmatpush1.bf16.xpose.msra.mxu0 0
      %606 = vmatprep.subr.bf16.mxu0 0
      %607 = vmatpush1.bf16.xpose.msra.mxu0 0
      %608 = vmatprep.subr.bf16.mxu0 0
      %609 = vmatpush1.bf16.xpose.msra.mxu0 0
      %610 = vmatprep.subr.bf16.mxu0 0
      %611 = vmatpush1.bf16.xpose.msra.mxu0 0
      %612 = vmatprep.subr.bf16.mxu0 0
      %613 = vmatpush1.bf16.xpose.msra.mxu0 0
      %614 = vmatprep.subr.bf16.mxu0 0
      %615 = vmatpush1.bf16.xpose.msra.mxu0 0
      %616 = vmatprep.subr.bf16.mxu0 0
      %617 = vmatpush1.bf16.xpose.msra.mxu0 0
      %618 = vmatprep.subr.bf16.mxu0 0
      %619 = vmatpush1.bf16.xpose.msra.mxu0 0
      %620 = vmatprep.subr.bf16.mxu0 0
      %621 = vmatpush1.bf16.xpose.msra.mxu0 0
      %622 = vmatprep.subr.bf16.mxu0 0
      %623 = vmatpush1.bf16.xpose.msra.mxu0 0
      %624 = vmatprep.mubr.bf16.mxu0 0
      %625 = vmatmul.mubr.bf16.gmra.mrb[0].mxu0 %v587
      %v626 = vpop.f32.mrb[0].mxu0
      %v627 = vadd.f32 %v347, %v626
      %v628 = vpop.f32.mrb[0].mxu0
      %v629 = vpop.f32.mrb[0].mxu0
      %v630 = vpop.f32.mrb[0].mxu0
      %631 = vdwg.mxu0
      %s632 = scalar_lea.vmem %s4, 16
      %v633 = vld [vmem:[%s632] sm:$0xff]
      %v634 = vadd.f32 %v627, %v633
      %v635 = vsel %vm352, %v634, -inf
      %636 = vmax.xlane.f32.xlu0 %v635
      %v637 = vpop.xlane.xlu0 %636
      %v638 = vsub.f32 %v634, %v637
      %v639 = vmul.f32 %v638, 1.442695
      %v640 = vpow.pop %v639
      %v641 = vsel %vm352, %v640, 0.0
      %642 = vadd.xlane.f32.xlu0 %v641
      %v643 = vpop.xlane.xlu0 %642
      %v644 = vrcp.pop %v643
      %v645 = vmul.f32 %v640, %v644
      %v646 = vpack.c.bf16 %v645, %v645
      %647 = vrot.lane.b32.xlu0 %v342, 48
      %v648 = vpop.permute.xlu0 %647
      %v650 = vsel %vm352, %v646, 0
      %v653 = vsel %vm418, %v648, 0
      %655 = vmatprep.subr.bf16.mxu0 0
      %656 = vmatpush1.bf16.msra.mxu0 %v653
      %657 = vmatprep.subr.bf16.mxu0 0
      %658 = vmatpush1.bf16.msra.mxu0 0
      %659 = vmatprep.subr.bf16.mxu0 0
      %660 = vmatpush1.bf16.msra.mxu0 0
      %661 = vmatprep.subr.bf16.mxu0 0
      %662 = vmatpush1.bf16.msra.mxu0 0
      %663 = vmatprep.subr.bf16.mxu0 0
      %664 = vmatpush1.bf16.msra.mxu0 0
      %665 = vmatprep.subr.bf16.mxu0 0
      %666 = vmatpush1.bf16.msra.mxu0 0
      %667 = vmatprep.subr.bf16.mxu0 0
      %668 = vmatpush1.bf16.msra.mxu0 0
      %669 = vmatprep.subr.bf16.mxu0 0
      %670 = vmatpush1.bf16.msra.mxu0 0
      %671 = vmatprep.subr.bf16.mxu0 0
      %672 = vmatpush1.bf16.msra.mxu0 0
      %673 = vmatprep.subr.bf16.mxu0 0
      %674 = vmatpush1.bf16.msra.mxu0 0
      %675 = vmatprep.subr.bf16.mxu0 0
      %676 = vmatpush1.bf16.msra.mxu0 0
      %677 = vmatprep.subr.bf16.mxu0 0
      %678 = vmatpush1.bf16.msra.mxu0 0
      %679 = vmatprep.subr.bf16.mxu0 0
      %680 = vmatpush1.bf16.msra.mxu0 0
      %681 = vmatprep.subr.bf16.mxu0 0
      %682 = vmatpush1.bf16.msra.mxu0 0
      %683 = vmatprep.subr.bf16.mxu0 0
      %684 = vmatpush1.bf16.msra.mxu0 0
      %685 = vmatprep.subr.bf16.mxu0 0
      %686 = vmatpush1.bf16.msra.mxu0 0
      %687 = vmatprep.mubr.bf16.mxu0 0
      %688 = vmatmul.mubr.bf16.gmra.mrb[0].mxu0 %v650
      %v689 = vpop.f32.mrb[0].mxu0
      %v690 = vadd.f32 0.0, %v689
      %v691 = vpop.f32.mrb[0].mxu0
      %v692 = vpop.f32.mrb[0].mxu0
      %v693 = vpop.f32.mrb[0].mxu0
      %694 = vdwg.mxu0
      %696 = vrot.lane.b32.xlu0 %v690, 16
      %v697 = vpop.permute.xlu0 %696
      %vm699 = vcmask 195712
      %700 = vst.msk [vmem:[#allocation2] sm:$0xff] %vm699, %v697
      %701 = vrot.lane.b32.xlu0 %v342, 104
      %v702 = vpop.permute.xlu0 %701
      %703 = vrot.lane.b32.xlu0 %v342, 72
      %v704 = vpop.permute.xlu0 %703
      %v706 = vsel %vm352, %v702, 0
      %v709 = vsel %vm352, %v704, 0
      %711 = vmatprep.subr.bf16.mxu0 0
      %712 = vmatpush1.bf16.xpose.msra.mxu0 %v709
      %713 = vmatprep.subr.bf16.mxu0 0
      %714 = vmatpush1.bf16.xpose.msra.mxu0 0
      %715 = vmatprep.subr.bf16.mxu0 0
      %716 = vmatpush1.bf16.xpose.msra.mxu0 0
      %717 = vmatprep.subr.bf16.mxu0 0
      %718 = vmatpush1.bf16.xpose.msra.mxu0 0
      %719 = vmatprep.subr.bf16.mxu0 0
      %720 = vmatpush1.bf16.xpose.msra.mxu0 0
      %721 = vmatprep.subr.bf16.mxu0 0
      %722 = vmatpush1.bf16.xpose.msra.mxu0 0
      %723 = vmatprep.subr.bf16.mxu0 0
      %724 = vmatpush1.bf16.xpose.msra.mxu0 0
      %725 = vmatprep.subr.bf16.mxu0 0
      %726 = vmatpush1.bf16.xpose.msra.mxu0 0
      %727 = vmatprep.subr.bf16.mxu0 0
      %728 = vmatpush1.bf16.xpose.msra.mxu0 0
      %729 = vmatprep.subr.bf16.mxu0 0
      %730 = vmatpush1.bf16.xpose.msra.mxu0 0
      %731 = vmatprep.subr.bf16.mxu0 0
      %732 = vmatpush1.bf16.xpose.msra.mxu0 0
      %733 = vmatprep.subr.bf16.mxu0 0
      %734 = vmatpush1.bf16.xpose.msra.mxu0 0
      %735 = vmatprep.subr.bf16.mxu0 0
      %736 = vmatpush1.bf16.xpose.msra.mxu0 0
      %737 = vmatprep.subr.bf16.mxu0 0
      %738 = vmatpush1.bf16.xpose.msra.mxu0 0
      %739 = vmatprep.subr.bf16.mxu0 0
      %740 = vmatpush1.bf16.xpose.msra.mxu0 0
      %741 = vmatprep.subr.bf16.mxu0 0
      %742 = vmatpush1.bf16.xpose.msra.mxu0 0
      %743 = vmatprep.mubr.bf16.mxu0 0
      %744 = vmatmul.mubr.bf16.gmra.mrb[0].mxu0 %v706
      %v745 = vpop.f32.mrb[0].mxu0
      %v746 = vadd.f32 %v347, %v745
      %v747 = vpop.f32.mrb[0].mxu0
      %v748 = vpop.f32.mrb[0].mxu0
      %v749 = vpop.f32.mrb[0].mxu0
      %750 = vdwg.mxu0
      %s751 = scalar_lea.vmem %s4, 24
      %v752 = vld [vmem:[%s751] sm:$0xff]
      %v753 = vadd.f32 %v746, %v752
      %v754 = vsel %vm352, %v753, -inf
      %755 = vmax.xlane.f32.xlu0 %v754
      %v756 = vpop.xlane.xlu0 %755
      %v757 = vsub.f32 %v753, %v756
      %v758 = vmul.f32 %v757, 1.442695
      %v759 = vpow.pop %v758
      %v760 = vsel %vm352, %v759, 0.0
      %761 = vadd.xlane.f32.xlu0 %v760
      %v762 = vpop.xlane.xlu0 %761
      %v763 = vrcp.pop %v762
      %v764 = vmul.f32 %v759, %v763
      %v765 = vpack.c.bf16 %v764, %v764
      %766 = vrot.lane.b32.xlu0 %v342, 40
      %v767 = vpop.permute.xlu0 %766
      %v769 = vsel %vm352, %v765, 0
      %v772 = vsel %vm418, %v767, 0
      %774 = vmatprep.subr.bf16.mxu0 0
      %775 = vmatpush1.bf16.msra.mxu0 %v772
      %776 = vmatprep.subr.bf16.mxu0 0
      %777 = vmatpush1.bf16.msra.mxu0 0
      %778 = vmatprep.subr.bf16.mxu0 0
      %779 = vmatpush1.bf16.msra.mxu0 0
      %780 = vmatprep.subr.bf16.mxu0 0
      %781 = vmatpush1.bf16.msra.mxu0 0
      %782 = vmatprep.subr.bf16.mxu0 0
      %783 = vmatpush1.bf16.msra.mxu0 0
      %784 = vmatprep.subr.bf16.mxu0 0
      %785 = vmatpush1.bf16.msra.mxu0 0
      %786 = vmatprep.subr.bf16.mxu0 0
      %787 = vmatpush1.bf16.msra.mxu0 0
      %788 = vmatprep.subr.bf16.mxu0 0
      %789 = vmatpush1.bf16.msra.mxu0 0
      %790 = vmatprep.subr.bf16.mxu0 0
      %791 = vmatpush1.bf16.msra.mxu0 0
      %792 = vmatprep.subr.bf16.mxu0 0
      %793 = vmatpush1.bf16.msra.mxu0 0
      %794 = vmatprep.subr.bf16.mxu0 0
      %795 = vmatpush1.bf16.msra.mxu0 0
      %796 = vmatprep.subr.bf16.mxu0 0
      %797 = vmatpush1.bf16.msra.mxu0 0
      %798 = vmatprep.subr.bf16.mxu0 0
      %799 = vmatpush1.bf16.msra.mxu0 0
      %800 = vmatprep.subr.bf16.mxu0 0
      %801 = vmatpush1.bf16.msra.mxu0 0
      %802 = vmatprep.subr.bf16.mxu0 0
      %803 = vmatpush1.bf16.msra.mxu0 0
      %804 = vmatprep.subr.bf16.mxu0 0
      %805 = vmatpush1.bf16.msra.mxu0 0
      %806 = vmatprep.mubr.bf16.mxu0 0
      %807 = vmatmul.mubr.bf16.gmra.mrb[0].mxu0 %v769
      %v808 = vpop.f32.mrb[0].mxu0
      %v809 = vadd.f32 0.0, %v808
      %v810 = vpop.f32.mrb[0].mxu0
      %v811 = vpop.f32.mrb[0].mxu0
      %v812 = vpop.f32.mrb[0].mxu0
      %813 = vdwg.mxu0
      %815 = vrot.lane.b32.xlu0 %v809, 24
      %v816 = vpop.permute.xlu0 %815
      %vm818 = vcmask 261312
      %819 = vst.msk [vmem:[#allocation2] sm:$0xff] %vm818, %v816
      %v820 = vld [vmem:[#allocation2] sm:$0xff]
      %v821 = vpack.c.bf16 %v820, %v820
      %v822 = vld [vmem:[%s3] sm:$0xf]
      %v823 = vld [vmem:[%s3 + $0x4] sm:$0xf]
      %v824 = vld [vmem:[%s3 + $0x8] sm:$0xf]
      %v825 = vld [vmem:[%s3 + $0xc] sm:$0xf]
      %v830 = vunpack.c.l.b16 %v822
      %v831 = vunpack.c.l.b16 %v823
      %v832 = vunpack.c.l.b16 %v824
      %v833 = vunpack.c.l.b16 %v825
      %v834 = vpack.c.b16 %v831, %v830
      %v835 = vpack.c.b16 %v833, %v832
      %v839 = vsel %vm264, %v821, 0
      %841 = vmatprep.subr.bf16.mxu0 0
      %842 = vmatpush1.bf16.msra.mxu0 %v834
      %843 = vmatprep.subr.bf16.mxu0 0
      %844 = vmatpush1.bf16.msra.mxu0 %v835
      %845 = vmatprep.subr.bf16.mxu0 0
      %846 = vmatpush1.bf16.msra.mxu0 0
      %847 = vmatprep.subr.bf16.mxu0 0
      %848 = vmatpush1.bf16.msra.mxu0 0
      %849 = vmatprep.subr.bf16.mxu0 0
      %850 = vmatpush1.bf16.msra.mxu0 0
      %851 = vmatprep.subr.bf16.mxu0 0
      %852 = vmatpush1.bf16.msra.mxu0 0
      %853 = vmatprep.subr.bf16.mxu0 0
      %854 = vmatpush1.bf16.msra.mxu0 0
      %855 = vmatprep.subr.bf16.mxu0 0
      %856 = vmatpush1.bf16.msra.mxu0 0
      %857 = vmatprep.subr.bf16.mxu0 0
      %858 = vmatpush1.bf16.msra.mxu0 0
      %859 = vmatprep.subr.bf16.mxu0 0
      %860 = vmatpush1.bf16.msra.mxu0 0
      %861 = vmatprep.subr.bf16.mxu0 0
      %862 = vmatpush1.bf16.msra.mxu0 0
      %863 = vmatprep.subr.bf16.mxu0 0
      %864 = vmatpush1.bf16.msra.mxu0 0
      %865 = vmatprep.subr.bf16.mxu0 0
      %866 = vmatpush1.bf16.msra.mxu0 0
      %867 = vmatprep.subr.bf16.mxu0 0
      %868 = vmatpush1.bf16.msra.mxu0 0
      %869 = vmatprep.subr.bf16.mxu0 0
      %870 = vmatpush1.bf16.msra.mxu0 0
      %871 = vmatprep.subr.bf16.mxu0 0
      %872 = vmatpush1.bf16.msra.mxu0 0
      %873 = vmatprep.mubr.bf16.mxu0 0
      %874 = vmatmul.mubr.bf16.gmra.mrb[0].mxu0 %v839
      %v875 = vpop.f32.mrb[0].mxu0
      %v876 = vadd.f32 0.0, %v875
      %v877 = vpop.f32.mrb[0].mxu0
      %v878 = vpop.f32.mrb[0].mxu0
      %v879 = vpop.f32.mrb[0].mxu0
      %880 = vdwg.mxu0
      %v881 = vadd.f32 %v262, %v876
      %882 = vst.msk [vmem:[%s260] sm:$0xff] %vm264, %v881
      %p883 = scmp.lt.s32.totalorder %s17, 1
      %s884 = scalar_select %p883, %s17, 1
      %s885 = smul.addr %s884, 8
      %s886 = scalar_lea.vmem %s6, %s885
      // Predicated region
      $region45: #{_lambda_.15} parent=43 // pred_check
        %p887 = pneg %p171
      $region46: #{_lambda_.15} parent=43 // pred_check_branch
        %889 = sbr.rel (%p887) target = $region48
      $region47: #{_lambda_.15} parent=43 // pred_region
        _
      $region48: #{_lambda_.15} parent=43 // pred_fallthru
        _
    $region44: #{_lambda_.15} parent=5 // pred_fallthru
      _
    %p890 = scmp.le.s32.totalorder 2, %s12
    // Predicated region
    $region49: #{_lambda_.15} parent=5 // pred_check
      %p891 = pneg %p890
    $region50: #{_lambda_.15} parent=5 // pred_check_branch
      %893 = sbr.rel (%p891) target = $region52
    $region51: #{_lambda_.15} parent=5 // pred_region
      %s894 = ssub.s32 %s12, 2
      // Predicated region
      $region53: #{_lambda_.15} parent=51 // pred_check
        %p895 = pneg %p177
      $region54: #{_lambda_.15} parent=51 // pred_check_branch
        %897 = sbr.rel (%p895) target = $region56
      $region55: #{_lambda_.15} parent=51 // pred_region
        %p898 = scmp.lt.s32.totalorder %s18, 1
        %s899 = scalar_select %p898, %s18, 1
        %s900 = smul.addr %s899, 8
        %s901 = scalar_lea.vmem %s6, %s900
      $region56: #{_lambda_.15} parent=51 // pred_fallthru
        _
    $region52: #{_lambda_.15} parent=5 // pred_fallthru
      _
  $region6: #{_lambda_.15} parent=0 // loop_footer
    %s16 = sadd.s32 1, %s12
  $region7: #{_lambda_.15} parent=0 // loop_footer_branch
    %11 = sbr.rel target = $region3
  $region8: #{_lambda_.15} parent=0 // loop_exit
    _

// kernel: _lambda_.16
$region0: #{_lambda_.16}
  #allocation0 [shape = 'u32[]', space=smem, size = 0x4, offset = 0x4, fixed_abs, tag = 'smem constant byte address 0x4 - core index']
  #allocation1 [shape = 'u32[144,128]{1,0:T(1,128)}', space=vmem, size = 0x12000, scoped, tag = 'internal scratch']
  %s0 = inlined_call_operand.vmem [shape: f32[16,32], index: 0, kind: input, shape index: {}]
  %s1 = inlined_call_operand.vmem [shape: f32[1,32], index: 1, kind: input, shape index: {}]
  %s2 = inlined_call_operand.vmem [shape: bf16[32,128], index: 2, kind: input, shape index: {}]
  %s3 = inlined_call_operand.vmem [shape: bf16[64,32], index: 3, kind: input, shape index: {}]
  %s4 = inlined_call_operand.vmem [shape: f32[16,32], index: 4, kind: output, shape index: {}]
  %s5 = sld [smem:[#allocation0]]
  $region26: #{_lambda_.16} parent=0
    _
  %s7 = ssub.s32 1, %s5
  %s8 = scalar_select 0, %s7, %s5
  // Predicated region
  $region2: #{_lambda_.16} parent=0 // pred_check
    _
  $region3: #{_lambda_.16} parent=0 // pred_check_branch
    %10 = sbr.rel (0) target = $region5
  $region4: #{_lambda_.16} parent=0 // pred_region
    _
  $region5: #{_lambda_.16} parent=0 // pred_fallthru
    _
  // Predicated region
  $region6: #{_lambda_.16} parent=0 // pred_check
    _
  $region7: #{_lambda_.16} parent=0 // pred_check_branch
    %12 = sbr.rel (0) target = $region9
  $region8: #{_lambda_.16} parent=0 // pred_region
    _
  $region9: #{_lambda_.16} parent=0 // pred_fallthru
    _
  // Predicated region
  $region10: #{_lambda_.16} parent=0 // pred_check
    _
  $region11: #{_lambda_.16} parent=0 // pred_check_branch
    %14 = sbr.rel (0) target = $region13
  $region12: #{_lambda_.16} parent=0 // pred_region
    _
  $region13: #{_lambda_.16} parent=0 // pred_fallthru
    _
  // Predicated region
  $region14: #{_lambda_.16} parent=0 // pred_check
    _
  $region15: #{_lambda_.16} parent=0 // pred_check_branch
    %16 = sbr.rel (0) target = $region17
  $region16: #{_lambda_.16} parent=0 // pred_region
    _
  $region17: #{_lambda_.16} parent=0 // pred_fallthru
    _
  %v18 = vld [vmem:[%s0] sm:$0xff]
  %v19 = vld [vmem:[%s0 + $0x8] sm:$0xff]
  %v20 = vmul.f32 %v18, %v18
  %v21 = vmul.f32 %v19, %v19
  %vm22 = vcmask 261120
  %v23 = vsel %vm22, %v20, 0.0
  %24 = vadd.xlane.f32.xlu0 %v23
  %v25 = vpop.xlane.xlu0 %24
  %v26 = vsel %vm22, %v21, 0.0
  %27 = vadd.xlane.f32.xlu0 %v26
  %v28 = vpop.xlane.xlu0 %27
  %v29 = vrcp.pop 32.0
  %v30 = vmul.f32 %v25, %v29
  %v31 = vmul.f32 %v28, %v29
  %v32 = vld [vmem:[%s1] sm:$0x1]
  %v33 = vadd.f32 %v30, 1e-06
  %v34 = vadd.f32 %v31, 1e-06
  %v35 = vrsqrt.pop %v33
  %v36 = vrsqrt.pop %v34
  %v37 = vmul.f32 %v18, %v35
  %v38 = vmul.f32 %v19, %v36
  %v40 = vlaneseq
  %v41 = vshrl.u32 %v40, 7
  %v42 = vsub.s32 0, %v41
  %v43 = vrot.slane %v32, %v42
  %v45 = vmul.f32 %v43, %v37
  %v46 = vmul.f32 %v43, %v38
  %v47 = vpack.c.bf16 %v46, %v45
  %v48 = vld [vmem:[%s2] sm:$0xf]
  %v49 = vld [vmem:[%s2 + $0x4] sm:$0xf]
  %v50 = vld [vmem:[%s2 + $0x8] sm:$0xf]
  %v51 = vld [vmem:[%s2 + $0xc] sm:$0xf]
  %v56 = vunpack.c.l.b16 %v48
  %v57 = vunpack.c.l.b16 %v49
  %v58 = vunpack.c.l.b16 %v50
  %v59 = vunpack.c.l.b16 %v51
  %v60 = vpack.c.b16 %v57, %v56
  %v61 = vpack.c.b16 %v59, %v58
  %v65 = vsel %vm22, %v47, 0
  %67 = vmatprep.subr.bf16.mxu0 0
  %68 = vmatpush1.bf16.msra.mxu0 %v60
  %69 = vmatprep.subr.bf16.mxu0 0
  %70 = vmatpush1.bf16.msra.mxu0 %v61
  %71 = vmatprep.subr.bf16.mxu0 0
  %72 = vmatpush1.bf16.msra.mxu0 0
  %73 = vmatprep.subr.bf16.mxu0 0
  %74 = vmatpush1.bf16.msra.mxu0 0
  %75 = vmatprep.subr.bf16.mxu0 0
  %76 = vmatpush1.bf16.msra.mxu0 0
  %77 = vmatprep.subr.bf16.mxu0 0
  %78 = vmatpush1.bf16.msra.mxu0 0
  %79 = vmatprep.subr.bf16.mxu0 0
  %80 = vmatpush1.bf16.msra.mxu0 0
  %81 = vmatprep.subr.bf16.mxu0 0
  %82 = vmatpush1.bf16.msra.mxu0 0
  %83 = vmatprep.subr.bf16.mxu0 0
  %84 = vmatpush1.bf16.msra.mxu0 0
  %85 = vmatprep.subr.bf16.mxu0 0
  %86 = vmatpush1.bf16.msra.mxu0 0
  %87 = vmatprep.subr.bf16.mxu0 0
  %88 = vmatpush1.bf16.msra.mxu0 0
  %89 = vmatprep.subr.bf16.mxu0 0
  %90 = vmatpush1.bf16.msra.mxu0 0
  %91 = vmatprep.subr.bf16.mxu0 0
  %92 = vmatpush1.bf16.msra.mxu0 0
  %93 = vmatprep.subr.bf16.mxu0 0
  %94 = vmatpush1.bf16.msra.mxu0 0
  %95 = vmatprep.subr.bf16.mxu0 0
  %96 = vmatpush1.bf16.msra.mxu0 0
  %97 = vmatprep.subr.bf16.mxu0 0
  %98 = vmatpush1.bf16.msra.mxu0 0
  %99 = vmatprep.mubr.bf16.mxu0 0
  %100 = vmatmul.mubr.bf16.gmra.mrb[0].mxu0 %v65
  %v101 = vpop.f32.mrb[0].mxu0
  %v102 = vadd.f32 0.0, %v101
  %v103 = vpop.f32.mrb[0].mxu0
  %v104 = vpop.f32.mrb[0].mxu0
  %v105 = vadd.f32 0.0, %v104
  %v106 = vpop.f32.mrb[0].mxu0
  %107 = vdwg.mxu0
  %v108 = vmul.f32 %v102, 0.5
  %v109 = vmul.f32 %v105, 0.5
  %v110 = vmul.f32 %v102, %v102
  %v111 = vmul.f32 %v105, %v105
  %v112 = vmul.f32 %v110, %v102
  %v113 = vmul.f32 %v111, %v105
  %v114 = vmul.f32 %v112, 0.044715
  %v115 = vmul.f32 %v113, 0.044715
  %v116 = vadd.f32 %v102, %v114
  %v117 = vadd.f32 %v105, %v115
  %v118 = vmul.f32 %v116, 0.7978846
  %v119 = vmul.f32 %v117, 0.7978846
  %v120 = vtanh.pop %v118
  %v121 = vtanh.pop %v119
  %v122 = vadd.f32 %v120, 1.0
  %v123 = vadd.f32 %v121, 1.0
  %v124 = vmul.f32 %v108, %v122
  %v125 = vmul.f32 %v109, %v123
  %128 = vrot.lane.b32.xlu0 %v102, 64
  %v129 = vpop.permute.xlu0 %128
  %130 = vrot.lane.b32.xlu0 %v105, 64
  %v131 = vpop.permute.xlu0 %130
  %v134 = vmul.f32 %v124, %v129
  %v135 = vmul.f32 %v125, %v131
  %v136 = vpack.c.bf16 %v135, %v134
  %v137 = vld [vmem:[%s3] sm:$0xf]
  %v138 = vld [vmem:[%s3 + $0x4] sm:$0xf]
  %v139 = vld [vmem:[%s3 + $0x8] sm:$0xf]
  %v140 = vld [vmem:[%s3 + $0xc] sm:$0xf]
  %v141 = vld [vmem:[%s3 + $0x10] sm:$0xf]
  %v142 = vld [vmem:[%s3 + $0x14] sm:$0xf]
  %v143 = vld [vmem:[%s3 + $0x18] sm:$0xf]
  %v144 = vld [vmem:[%s3 + $0x1c] sm:$0xf]
  %v153 = vunpack.c.l.b16 %v137
  %v154 = vunpack.c.l.b16 %v138
  %v155 = vunpack.c.l.b16 %v139
  %v156 = vunpack.c.l.b16 %v140
  %v157 = vunpack.c.l.b16 %v141
  %v158 = vunpack.c.l.b16 %v142
  %v159 = vunpack.c.l.b16 %v143
  %v160 = vunpack.c.l.b16 %v144
  %v161 = vpack.c.b16 %v154, %v153
  %v162 = vpack.c.b16 %v156, %v155
  %v163 = vpack.c.b16 %v158, %v157
  %v164 = vpack.c.b16 %v160, %v159
  %vm169 = vcmask 523264
  %v171 = vsel %vm169, %v136, 0
  %173 = vmatprep.subr.bf16.mxu0 0
  %174 = vmatpush1.bf16.msra.mxu0 %v161
  %175 = vmatprep.subr.bf16.mxu0 0
  %176 = vmatpush1.bf16.msra.mxu0 %v162
  %177 = vmatprep.subr.bf16.mxu0 0
  %178 = vmatpush1.bf16.msra.mxu0 %v163
  %179 = vmatprep.subr.bf16.mxu0 0
  %180 = vmatpush1.bf16.msra.mxu0 %v164
  %181 = vmatprep.subr.bf16.mxu0 0
  %182 = vmatpush1.bf16.msra.mxu0 0
  %183 = vmatprep.subr.bf16.mxu0 0
  %184 = vmatpush1.bf16.msra.mxu0 0
  %185 = vmatprep.subr.bf16.mxu0 0
  %186 = vmatpush1.bf16.msra.mxu0 0
  %187 = vmatprep.subr.bf16.mxu0 0
  %188 = vmatpush1.bf16.msra.mxu0 0
  %189 = vmatprep.subr.bf16.mxu0 0
  %190 = vmatpush1.bf16.msra.mxu0 0
  %191 = vmatprep.subr.bf16.mxu0 0
  %192 = vmatpush1.bf16.msra.mxu0 0
  %193 = vmatprep.subr.bf16.mxu0 0
  %194 = vmatpush1.bf16.msra.mxu0 0
  %195 = vmatprep.subr.bf16.mxu0 0
  %196 = vmatpush1.bf16.msra.mxu0 0
  %197 = vmatprep.subr.bf16.mxu0 0
  %198 = vmatpush1.bf16.msra.mxu0 0
  %199 = vmatprep.subr.bf16.mxu0 0
  %200 = vmatpush1.bf16.msra.mxu0 0
  %201 = vmatprep.subr.bf16.mxu0 0
  %202 = vmatpush1.bf16.msra.mxu0 0
  %203 = vmatprep.subr.bf16.mxu0 0
  %204 = vmatpush1.bf16.msra.mxu0 0
  %205 = vmatprep.mubr.bf16.mxu0 0
  %206 = vmatmul.mubr.bf16.gmra.mrb[0].mxu0 %v171
  %v207 = vpop.f32.mrb[0].mxu0
  %v208 = vadd.f32 0.0, %v207
  %v209 = vpop.f32.mrb[0].mxu0
  %v210 = vpop.f32.mrb[0].mxu0
  %v211 = vadd.f32 0.0, %v210
  %v212 = vpop.f32.mrb[0].mxu0
  %213 = vdwg.mxu0
  %v214 = vadd.f32 %v18, %v208
  %v215 = vadd.f32 %v19, %v211
  %216 = vst.msk [vmem:[%s4] sm:$0xff] %vm22, %v214
  %217 = vst.msk [vmem:[%s4 + $0x8] sm:$0xff] %vm22, %v215
  // Predicated region
  $region18: #{_lambda_.16} parent=0 // pred_check
    _
  $region19: #{_lambda_.16} parent=0 // pred_check_branch
    %219 = sbr.rel (0) target = $region21
  $region20: #{_lambda_.16} parent=0 // pred_region
    _
  $region21: #{_lambda_.16} parent=0 // pred_fallthru
    _
  // Predicated region
  $region22: #{_lambda_.16} parent=0 // pred_check
    _
  $region23: #{_lambda_.16} parent=0 // pred_check_branch
    %221 = sbr.rel (0) target = $region25
  $region24: #{_lambda_.16} parent=0 // pred_region
    _
  $region25: #{_lambda_.16} parent=0 // pred_fallthru
    _

// kernel: _lambda_.27
$region0: #{_lambda_.27}
  #allocation0 [shape = 'u32[]', space=smem, size = 0x4, offset = 0x4, fixed_abs, tag = 'smem constant byte address 0x4 - core index']
  #allocation1 [shape = 'u32[144,128]{1,0:T(1,128)}', space=vmem, size = 0x12000, scoped, tag = 'internal scratch']
  #allocation2 [shape = 'f32[16,64]{1,0:T(8,128)}', space=vmem, size = 0x2000, scoped, tag = 'scratch operand']
  %s0 = inlined_call_operand.vmem [shape: f32[16,32], index: 0, kind: input, shape index: {}]
  %s1 = inlined_call_operand.vmem [shape: bf16[32,64], index: 1, kind: input, shape index: {}]
  %s2 = inlined_call_operand.vmem [shape: f32[16,64], index: 2, kind: output, shape index: {}]
  %s3 = sld [smem:[#allocation0]]
  $region26: #{_lambda_.27} parent=0
    _
  %s5 = ssub.s32 1, %s3
  %s6 = scalar_select 0, %s5, %s3
  // Predicated region
  $region2: #{_lambda_.27} parent=0 // pred_check
    _
  $region3: #{_lambda_.27} parent=0 // pred_check_branch
    %8 = sbr.rel (0) target = $region5
  $region4: #{_lambda_.27} parent=0 // pred_region
    _
  $region5: #{_lambda_.27} parent=0 // pred_fallthru
    _
  // Predicated region
  $region6: #{_lambda_.27} parent=0 // pred_check
    _
  $region7: #{_lambda_.27} parent=0 // pred_check_branch
    %10 = sbr.rel (0) target = $region9
  $region8: #{_lambda_.27} parent=0 // pred_region
    _
  $region9: #{_lambda_.27} parent=0 // pred_fallthru
    _
  %p12 = scmp.eq.s32.totalorder 0, 0
  // Predicated region
  $region10: #{_lambda_.27} parent=0 // pred_check
    %p13 = pneg %p12
  $region11: #{_lambda_.27} parent=0 // pred_check_branch
    %15 = sbr.rel (%p13) target = $region13
  $region12: #{_lambda_.27} parent=0 // pred_region
    %vm16 = vcmask 523264
    %17 = vst.msk [vmem:[#allocation2] sm:$0xff] %vm16, 0.0
    %18 = vst.msk [vmem:[#allocation2 + $0x8] sm:$0xff] %vm16, 0.0
  $region13: #{_lambda_.27} parent=0 // pred_fallthru
    _
  %v19 = vld [vmem:[#allocation2] sm:$0xff]
  %v20 = vld [vmem:[#allocation2 + $0x8] sm:$0xff]
  %v21 = vld [vmem:[%s0] sm:$0xff]
  %v22 = vld [vmem:[%s0 + $0x8] sm:$0xff]
  %v23 = vpack.c.bf16 %v22, %v21
  %v24 = vld [vmem:[%s1] sm:$0xf]
  %v25 = vld [vmem:[%s1 + $0x4] sm:$0xf]
  %v26 = vld [vmem:[%s1 + $0x8] sm:$0xf]
  %v27 = vld [vmem:[%s1 + $0xc] sm:$0xf]
  %v32 = vunpack.c.l.b16 %v24
  %v33 = vunpack.c.l.b16 %v25
  %v34 = vunpack.c.l.b16 %v26
  %v35 = vunpack.c.l.b16 %v27
  %v36 = vpack.c.b16 %v33, %v32
  %v37 = vpack.c.b16 %v35, %v34
  %vm40 = vcmask 261120
  %v42 = vsel %vm40, %v23, 0
  %44 = vmatprep.subr.bf16.mxu0 0
  %45 = vmatpush1.bf16.msra.mxu0 %v36
  %46 = vmatprep.subr.bf16.mxu0 0
  %47 = vmatpush1.bf16.msra.mxu0 %v37
  %48 = vmatprep.subr.bf16.mxu0 0
  %49 = vmatpush1.bf16.msra.mxu0 0
  %50 = vmatprep.subr.bf16.mxu0 0
  %51 = vmatpush1.bf16.msra.mxu0 0
  %52 = vmatprep.subr.bf16.mxu0 0
  %53 = vmatpush1.bf16.msra.mxu0 0
  %54 = vmatprep.subr.bf16.mxu0 0
  %55 = vmatpush1.bf16.msra.mxu0 0
  %56 = vmatprep.subr.bf16.mxu0 0
  %57 = vmatpush1.bf16.msra.mxu0 0
  %58 = vmatprep.subr.bf16.mxu0 0
  %59 = vmatpush1.bf16.msra.mxu0 0
  %60 = vmatprep.subr.bf16.mxu0 0
  %61 = vmatpush1.bf16.msra.mxu0 0
  %62 = vmatprep.subr.bf16.mxu0 0
  %63 = vmatpush1.bf16.msra.mxu0 0
  %64 = vmatprep.subr.bf16.mxu0 0
  %65 = vmatpush1.bf16.msra.mxu0 0
  %66 = vmatprep.subr.bf16.mxu0 0
  %67 = vmatpush1.bf16.msra.mxu0 0
  %68 = vmatprep.subr.bf16.mxu0 0
  %69 = vmatpush1.bf16.msra.mxu0 0
  %70 = vmatprep.subr.bf16.mxu0 0
  %71 = vmatpush1.bf16.msra.mxu0 0
  %72 = vmatprep.subr.bf16.mxu0 0
  %73 = vmatpush1.bf16.msra.mxu0 0
  %74 = vmatprep.subr.bf16.mxu0 0
  %75 = vmatpush1.bf16.msra.mxu0 0
  %76 = vmatprep.mubr.bf16.mxu0 0
  %77 = vmatmul.mubr.bf16.gmra.mrb[0].mxu0 %v42
  %v78 = vpop.f32.mrb[0].mxu0
  %v79 = vadd.f32 0.0, %v78
  %v80 = vpop.f32.mrb[0].mxu0
  %v81 = vpop.f32.mrb[0].mxu0
  %v82 = vadd.f32 0.0, %v81
  %v83 = vpop.f32.mrb[0].mxu0
  %84 = vdwg.mxu0
  %v85 = vadd.f32 %v19, %v79
  %v86 = vadd.f32 %v20, %v82
  %vm87 = vcmask 523264
  %88 = vst.msk [vmem:[#allocation2] sm:$0xff] %vm87, %v85
  %89 = vst.msk [vmem:[#allocation2 + $0x8] sm:$0xff] %vm87, %v86
  // Predicated region
  $region14: #{_lambda_.27} parent=0 // pred_check
    %p90 = pneg %p12
  $region15: #{_lambda_.27} parent=0 // pred_check_branch
    %92 = sbr.rel (%p90) target = $region17
  $region16: #{_lambda_.27} parent=0 // pred_region
    %v93 = vld [vmem:[#allocation2] sm:$0xff]
    %v94 = vld [vmem:[#allocation2 + $0x8] sm:$0xff]
    %95 = vst.msk [vmem:[%s2] sm:$0xff] %vm87, %v93
    %96 = vst.msk [vmem:[%s2 + $0x8] sm:$0xff] %vm87, %v94
  $region17: #{_lambda_.27} parent=0 // pred_fallthru
    _
  // Predicated region
  $region18: #{_lambda_.27} parent=0 // pred_check
    _
  $region19: #{_lambda_.27} parent=0 // pred_check_branch
    %98 = sbr.rel (0) target = $region21
  $region20: #{_lambda_.27} parent=0 // pred_region
    _
  $region21: #{_lambda_.27} parent=0 // pred_fallthru
    _
  // Predicated region
  $region22: #{_lambda_.27} parent=0 // pred_check
    _
  $region23: #{_lambda_.27} parent=0 // pred_check_branch
    %100 = sbr.rel (0) target = $region25
  $region24: #{_lambda_.27} parent=0 // pred_region
    _
  $region25: #{_lambda_.27} parent=0 // pred_fallthru
    _

// kernel: _lambda_.21
$region0: #{_lambda_.21}
  #allocation0 [shape = 'u32[]', space=smem, size = 0x4, offset = 0x4, fixed_abs, tag = 'smem constant byte address 0x4 - core index']
  #allocation1 [shape = 'u32[144,128]{1,0:T(1,128)}', space=vmem, size = 0x12000, scoped, tag = 'internal scratch']
  #allocation2 [shape = 'f32[8,32]{1,0:T(8,128)}', space=vmem, size = 0x1000, scoped, tag = 'scratch operand']
  %s0 = inlined_call_operand.vmem [shape: f32[2,8,32], index: 0, kind: input, shape index: {}]
  %s1 = inlined_call_operand.vmem [shape: f32[2,8,32], index: 1, kind: input, shape index: {}]
  %s2 = inlined_call_operand.vmem [shape: f32[1,32], index: 2, kind: input, shape index: {}]
  %s3 = inlined_call_operand.vmem [shape: bf16[32,96], index: 3, kind: input, shape index: {}]
  %s4 = inlined_call_operand.vmem [shape: bf16[32,32], index: 4, kind: input, shape index: {}]
  %s5 = inlined_call_operand.vmem [shape: f32[2,1,8], index: 5, kind: input, shape index: {}]
  %s6 = inlined_call_operand.vmem [shape: f32[2,8,32], index: 6, kind: output, shape index: {}]
  %s7 = sld [smem:[#allocation0]]
  $region57: #{_lambda_.21} parent=0
    _
  %s9 = ssub.s32 1, %s7
  %s10 = scalar_select 0, %s9, %s7
  loop: start=0, step=1, limit=4
  $region2: #{_lambda_.21} parent=0 // loop_pre_header
    _
  $region3: #{_lambda_.21} parent=0 // loop_header
    %s12 = sphi 0, %s16
    %p13 = scmp.ge.s32.totalorder %s12, 4
    %s22 = sphi 0, %s24
    %s25 = sphi 0, %s22
    %s26 = sphi 0, %s25
    %s42 = sphi 0, %s26
    %s48 = sphi 0, %s50
    %s51 = sphi 0, %s48
    %s52 = sphi 0, %s51
    %s68 = sphi 0, %s52
    %s72 = sphi 0, %s72
    %s74 = sphi 0, %s72
    %s75 = sphi 0, %s74
    %s89 = sphi 0, %s75
    %s93 = sphi 0, %s93
    %s95 = sphi 0, %s93
    %s96 = sphi 0, %s95
    %s110 = sphi 0, %s96
    %s114 = sphi 0, %s114
    %s116 = sphi 0, %s114
    %s117 = sphi 0, %s116
    %s131 = sphi 0, %s117
    %s137 = sphi 0, %s139
    %s140 = sphi 0, %s137
    %s141 = sphi 0, %s140
    %s157 = sphi 0, %s141
    %s163 = sphi 0, %s165
    %s166 = sphi 0, %s163
    %s167 = sphi 0, %s166
    %s183 = sphi 0, %s167
  $region4: #{_lambda_.21} parent=0 // loop_header_branch
    %15 = sbr.rel (%p13) target = $region8
  $region5: #{_lambda_.21} parent=0 // loop_body
    %s17 = ssub.s32 %s12, 1
    %s18 = ssub.s32 %s12, 2
    %s19 = sadd.s32 %s12, 1
    %s20 = ssub.s32 %s12, %s19
    %p21 = scmp.eq.s32.totalorder %s20, 0
    %s23 = sadd.s32 %s22, 1
    %s24 = scalar_select %p21, %s22, %s23
    %p27 = pneg %p21
    %p28 = scmp.eq.s32.totalorder %s12, 1
    %p29 = por %p27, %p28
    %p30 = scmp.ne.s32.totalorder %s22, %s25
    %p31 = scmp.eq.s32.totalorder %s12, 0
    %p32 = por %p30, %p31
    %p33 = scmp.ne.s32.totalorder %s22, %s25
    %p34 = scmp.eq.s32.totalorder %s17, 1
    %p35 = por %p33, %p34
    %p36 = scmp.ne.s32.totalorder %s25, %s26
    %p37 = scmp.eq.s32.totalorder %s17, 0
    %p38 = por %p36, %p37
    %p39 = scmp.ne.s32.totalorder %s25, %s26
    %p40 = scmp.eq.s32.totalorder %s18, 1
    %p41 = por %p39, %p40
    %p43 = scmp.ne.s32.totalorder %s26, %s42
    %p44 = scmp.eq.s32.totalorder %s18, 0
    %p45 = por %p43, %p44
    %s46 = ssub.s32 %s12, %s19
    %p47 = scmp.eq.s32.totalorder %s46, 0
    %s49 = sadd.s32 %s48, 1
    %s50 = scalar_select %p47, %s48, %s49
    %p53 = pneg %p47
    %p54 = scmp.eq.s32.totalorder %s12, 1
    %p55 = por %p53, %p54
    %p56 = scmp.ne.s32.totalorder %s48, %s51
    %p57 = scmp.eq.s32.totalorder %s12, 0
    %p58 = por %p56, %p57
    %p59 = scmp.ne.s32.totalorder %s48, %s51
    %p60 = scmp.eq.s32.totalorder %s17, 1
    %p61 = por %p59, %p60
    %p62 = scmp.ne.s32.totalorder %s51, %s52
    %p63 = scmp.eq.s32.totalorder %s17, 0
    %p64 = por %p62, %p63
    %p65 = scmp.ne.s32.totalorder %s51, %s52
    %p66 = scmp.eq.s32.totalorder %s18, 1
    %p67 = por %p65, %p66
    %p69 = scmp.ne.s32.totalorder %s52, %s68
    %p70 = scmp.eq.s32.totalorder %s18, 0
    %p71 = por %p69, %p70
    %s73 = sadd.s32 %s72, 1
    %p76 = scmp.eq.s32.totalorder %s12, 1
    %p77 = scmp.ne.s32.totalorder %s72, %s74
    %p78 = scmp.eq.s32.totalorder %s12, 0
    %p79 = por %p77, %p78
    %p80 = scmp.ne.s32.totalorder %s72, %s74
    %p81 = scmp.eq.s32.totalorder %s17, 1
    %p82 = por %p80, %p81
    %p83 = scmp.ne.s32.totalorder %s74, %s75
    %p84 = scmp.eq.s32.totalorder %s17, 0
    %p85 = por %p83, %p84
    %p86 = scmp.ne.s32.totalorder %s74, %s75
    %p87 = scmp.eq.s32.totalorder %s18, 1
    %p88 = por %p86, %p87
    %p90 = scmp.ne.s32.totalorder %s75, %s89
    %p91 = scmp.eq.s32.totalorder %s18, 0
    %p92 = por %p90, %p91
    %s94 = sadd.s32 %s93, 1
    %p97 = scmp.eq.s32.totalorder %s12, 1
    %p98 = scmp.ne.s32.totalorder %s93, %s95
    %p99 = scmp.eq.s32.totalorder %s12, 0
    %p100 = por %p98, %p99
    %p101 = scmp.ne.s32.totalorder %s93, %s95
    %p102 = scmp.eq.s32.totalorder %s17, 1
    %p103 = por %p101, %p102
    %p104 = scmp.ne.s32.totalorder %s95, %s96
    %p105 = scmp.eq.s32.totalorder %s17, 0
    %p106 = por %p104, %p105
    %p107 = scmp.ne.s32.totalorder %s95, %s96
    %p108 = scmp.eq.s32.totalorder %s18, 1
    %p109 = por %p107, %p108
    %p111 = scmp.ne.s32.totalorder %s96, %s110
    %p112 = scmp.eq.s32.totalorder %s18, 0
    %p113 = por %p111, %p112
    %s115 = sadd.s32 %s114, 1
    %p118 = scmp.eq.s32.totalorder %s12, 1
    %p119 = scmp.ne.s32.totalorder %s114, %s116
    %p120 = scmp.eq.s32.totalorder %s12, 0
    %p121 = por %p119, %p120
    %p122 = scmp.ne.s32.totalorder %s114, %s116
    %p123 = scmp.eq.s32.totalorder %s17, 1
    %p124 = por %p122, %p123
    %p125 = scmp.ne.s32.totalorder %s116, %s117
    %p126 = scmp.eq.s32.totalorder %s17, 0
    %p127 = por %p125, %p126
    %p128 = scmp.ne.s32.totalorder %s116, %s117
    %p129 = scmp.eq.s32.totalorder %s18, 1
    %p130 = por %p128, %p129
    %p132 = scmp.ne.s32.totalorder %s117, %s131
    %p133 = scmp.eq.s32.totalorder %s18, 0
    %p134 = por %p132, %p133
    %s135 = ssub.s32 %s12, %s19
    %p136 = scmp.eq.s32.totalorder %s135, 0
    %s138 = sadd.s32 %s137, 1
    %s139 = scalar_select %p136, %s137, %s138
    %p142 = pneg %p136
    %p143 = scmp.eq.s32.totalorder %s12, 1
    %p144 = por %p142, %p143
    %p145 = scmp.ne.s32.totalorder %s137, %s140
    %p146 = scmp.eq.s32.totalorder %s12, 0
    %p147 = por %p145, %p146
    %p148 = scmp.ne.s32.totalorder %s137, %s140
    %p149 = scmp.eq.s32.totalorder %s17, 1
    %p150 = por %p148, %p149
    %p151 = scmp.ne.s32.totalorder %s140, %s141
    %p152 = scmp.eq.s32.totalorder %s17, 0
    %p153 = por %p151, %p152
    %p154 = scmp.ne.s32.totalorder %s140, %s141
    %p155 = scmp.eq.s32.totalorder %s18, 1
    %p156 = por %p154, %p155
    %p158 = scmp.ne.s32.totalorder %s141, %s157
    %p159 = scmp.eq.s32.totalorder %s18, 0
    %p160 = por %p158, %p159
    %s161 = ssub.s32 %s12, %s19
    %p162 = scmp.eq.s32.totalorder %s161, 0
    %s164 = sadd.s32 %s163, 1
    %s165 = scalar_select %p162, %s163, %s164
    %p168 = pneg %p162
    %p169 = scmp.eq.s32.totalorder %s12, 1
    %p170 = por %p168, %p169
    %p171 = scmp.ne.s32.totalorder %s163, %s166
    %p172 = scmp.eq.s32.totalorder %s12, 0
    %p173 = por %p171, %p172
    %p174 = scmp.ne.s32.totalorder %s163, %s166
    %p175 = scmp.eq.s32.totalorder %s17, 1
    %p176 = por %p174, %p175
    %p177 = scmp.ne.s32.totalorder %s166, %s167
    %p178 = scmp.eq.s32.totalorder %s17, 0
    %p179 = por %p177, %p178
    %p180 = scmp.ne.s32.totalorder %s166, %s167
    %p181 = scmp.eq.s32.totalorder %s18, 1
    %p182 = por %p180, %p181
    %p184 = scmp.ne.s32.totalorder %s167, %s183
    %p185 = scmp.eq.s32.totalorder %s18, 0
    %p186 = por %p184, %p185
    %p187 = scmp.le.s32.totalorder 1, %s12
    %p188 = scmp.lt.s32.totalorder %s12, 3
    %p189 = pnand %p187, %p188
    %p190 = pneg %p189
    // Predicated region
    $region9: #{_lambda_.21} parent=5 // pred_check
      _
    $region10: #{_lambda_.21} parent=5 // pred_check_branch
      %192 = sbr.rel (%p189) target = $region12
    $region11: #{_lambda_.21} parent=5 // pred_region
      %s193 = ssub.s32 %s12, 1
      // Predicated region
      $region13: #{_lambda_.21} parent=11 // pred_check
        %p194 = pneg %p85
      $region14: #{_lambda_.21} parent=11 // pred_check_branch
        %196 = sbr.rel (%p194) target = $region16
      $region15: #{_lambda_.21} parent=11 // pred_region
        _
      $region16: #{_lambda_.21} parent=11 // pred_fallthru
        _
      // Predicated region
      $region17: #{_lambda_.21} parent=11 // pred_check
        %p197 = pneg %p106
      $region18: #{_lambda_.21} parent=11 // pred_check_branch
        %199 = sbr.rel (%p197) target = $region20
      $region19: #{_lambda_.21} parent=11 // pred_region
        _
      $region20: #{_lambda_.21} parent=11 // pred_fallthru
        _
      // Predicated region
      $region21: #{_lambda_.21} parent=11 // pred_check
        %p200 = pneg %p127
      $region22: #{_lambda_.21} parent=11 // pred_check_branch
        %202 = sbr.rel (%p200) target = $region24
      $region23: #{_lambda_.21} parent=11 // pred_region
        _
      $region24: #{_lambda_.21} parent=11 // pred_fallthru
        _
    $region12: #{_lambda_.21} parent=5 // pred_fallthru
      _
    %p203 = scmp.lt.s32.totalorder %s12, 2
    // Predicated region
    $region25: #{_lambda_.21} parent=5 // pred_check
      %p204 = pneg %p203
    $region26: #{_lambda_.21} parent=5 // pred_check_branch
      %206 = sbr.rel (%p204) target = $region28
    $region27: #{_lambda_.21} parent=5 // pred_region
      // Predicated region
      $region29: #{_lambda_.21} parent=27 // pred_check
        %p207 = pneg %p32
      $region30: #{_lambda_.21} parent=27 // pred_check_branch
        %209 = sbr.rel (%p207) target = $region32
      $region31: #{_lambda_.21} parent=27 // pred_region
        %p210 = scmp.lt.s32.totalorder %s12, 1
        %s211 = scalar_select %p210, %s12, 1
        %s212 = smul.addr %s211, 8
        %s213 = scalar_lea.vmem %s0, %s212
      $region32: #{_lambda_.21} parent=27 // pred_fallthru
        _
      // Predicated region
      $region33: #{_lambda_.21} parent=27 // pred_check
        %p214 = pneg %p58
      $region34: #{_lambda_.21} parent=27 // pred_check_branch
        %216 = sbr.rel (%p214) target = $region36
      $region35: #{_lambda_.21} parent=27 // pred_region
        %p217 = scmp.lt.s32.totalorder %s12, 1
        %s218 = scalar_select %p217, %s12, 1
        %s219 = smul.addr %s218, 8
        %s220 = scalar_lea.vmem %s1, %s219
      $region36: #{_lambda_.21} parent=27 // pred_fallthru
        _
      // Predicated region
      $region37: #{_lambda_.21} parent=27 // pred_check
        %p221 = pneg %p147
      $region38: #{_lambda_.21} parent=27 // pred_check_branch
        %223 = sbr.rel (%p221) target = $region40
      $region39: #{_lambda_.21} parent=27 // pred_region
        %p224 = scmp.lt.s32.totalorder %s12, 1
        %s225 = scalar_select %p224, %s12, 1
        %s226 = scalar_lea.vmem %s5, %s225
      $region40: #{_lambda_.21} parent=27 // pred_fallthru
        _
    $region28: #{_lambda_.21} parent=5 // pred_fallthru
      _
    %p227 = scmp.le.s32.totalorder 1, %s12
    %p228 = scmp.lt.s32.totalorder %s12, 3
    %p229 = pnand %p227, %p228
    %p230 = pneg %p229
    // Predicated region
    $region41: #{_lambda_.21} parent=5 // pred_check
      _
    $region42: #{_lambda_.21} parent=5 // pred_check_branch
      %232 = sbr.rel (%p229) target = $region44
    $region43: #{_lambda_.21} parent=5 // pred_region
      %s233 = ssub.s32 %s12, 1
      %p234 = scmp.lt.s32.totalorder %s17, 1
      %s235 = scalar_select %p234, %s17, 1
      %s236 = smul.addr %s235, 8
      %s237 = scalar_lea.vmem %s0, %s236
      %p238 = pneg %p38
      %p239 = pneg %p35
      %p240 = scmp.lt.s32.totalorder %s17, 1
      %s241 = scalar_select %p240, %s17, 1
      %s242 = smul.addr %s241, 8
      %s243 = scalar_lea.vmem %s1, %s242
      %p244 = pneg %p64
      %p245 = pneg %p61
      %p246 = pneg %p85
      %p247 = pneg %p82
      %p248 = pneg %p106
      %p249 = pneg %p103
      %p250 = pneg %p127
      %p251 = pneg %p124
      %p252 = scmp.lt.s32.totalorder %s17, 1
      %s253 = scalar_select %p252, %s17, 1
      %s254 = scalar_lea.vmem %s5, %s253
      %p255 = pneg %p153
      %p256 = pneg %p150
      %p257 = pneg %p179
      %p258 = pneg %p176
      %p259 = scmp.lt.s32.totalorder %s17, 1
      %s260 = scalar_select %p259, %s17, 1
      %s261 = smul.addr %s260, 8
      %s262 = scalar_lea.vmem %s6, %s261
      %p263 = scmp.lt.s32.totalorder %s17, 1
      %s264 = scalar_select %p263, %s17, 1
      %s265 = smul.addr %s264, 8
      %s266 = scalar_lea.vmem %s0, %s265
      %p267 = scmp.lt.s32.totalorder %s17, 1
      %s268 = scalar_select %p267, %s17, 1
      %s269 = smul.addr %s268, 8
      %s270 = scalar_lea.vmem %s1, %s269
      %p271 = scmp.lt.s32.totalorder %s17, 1
      %s272 = scalar_select %p271, %s17, 1
      %s273 = scalar_lea.vmem %s5, %s272
      %p274 = scmp.lt.s32.totalorder %s17, 1
      %s275 = scalar_select %p274, %s17, 1
      %s276 = smul.addr %s275, 8
      %s277 = scalar_lea.vmem %s6, %s276
      %v279 = vld [vmem:[%s266] sm:$0xff]
      %v280 = vmul.f32 %v279, %v279
      %vm281 = vcmask 261120
      %v282 = vsel %vm281, %v280, 0.0
      %283 = vadd.xlane.f32.xlu0 %v282
      %v284 = vpop.xlane.xlu0 %283
      %v285 = vrcp.pop 32.0
      %v286 = vmul.f32 %v284, %v285
      %v287 = vld [vmem:[%s2] sm:$0x1]
      %v288 = vadd.f32 %v286, 1e-06
      %v289 = vrsqrt.pop %v288
      %v290 = vmul.f32 %v279, %v289
      %v292 = vlaneseq
      %v293 = vshrl.u32 %v292, 7
      %v294 = vsub.s32 0, %v293
      %v295 = vrot.slane %v287, %v294
      %v297 = vmul.f32 %v295, %v290
      %v298 = vld [vmem:[%s3] sm:$0xf]
      %v299 = vld [vmem:[%s3 + $0x4] sm:$0xf]
      %v300 = vld [vmem:[%s3 + $0x8] sm:$0xf]
      %v301 = vld [vmem:[%s3 + $0xc] sm:$0xf]
      %v302 = vld [vmem:[%s270] sm:$0xff]
      %v303 = vpack.c.bf16 %v297, %v297
      %v308 = vunpack.c.l.b16 %v298
      %v309 = vunpack.c.l.b16 %v299
      %v310 = vunpack.c.l.b16 %v300
      %v311 = vunpack.c.l.b16 %v301
      %v312 = vpack.c.b16 %v309, %v308
      %v313 = vpack.c.b16 %v311, %v310
      %v317 = vsel %vm281, %v303, 0
      %319 = vmatprep.subr.bf16.mxu0 0
      %320 = vmatpush1.bf16.msra.mxu0 %v312
      %321 = vmatprep.subr.bf16.mxu0 0
      %322 = vmatpush1.bf16.msra.mxu0 %v313
      %323 = vmatprep.subr.bf16.mxu0 0
      %324 = vmatpush1.bf16.msra.mxu0 0
      %325 = vmatprep.subr.bf16.mxu0 0
      %326 = vmatpush1.bf16.msra.mxu0 0
      %327 = vmatprep.subr.bf16.mxu0 0
      %328 = vmatpush1.bf16.msra.mxu0 0
      %329 = vmatprep.subr.bf16.mxu0 0
      %330 = vmatpush1.bf16.msra.mxu0 0
      %331 = vmatprep.subr.bf16.mxu0 0
      %332 = vmatpush1.bf16.msra.mxu0 0
      %333 = vmatprep.subr.bf16.mxu0 0
      %334 = vmatpush1.bf16.msra.mxu0 0
      %335 = vmatprep.subr.bf16.mxu0 0
      %336 = vmatpush1.bf16.msra.mxu0 0
      %337 = vmatprep.subr.bf16.mxu0 0
      %338 = vmatpush1.bf16.msra.mxu0 0
      %339 = vmatprep.subr.bf16.mxu0 0
      %340 = vmatpush1.bf16.msra.mxu0 0
      %341 = vmatprep.subr.bf16.mxu0 0
      %342 = vmatpush1.bf16.msra.mxu0 0
      %343 = vmatprep.subr.bf16.mxu0 0
      %344 = vmatpush1.bf16.msra.mxu0 0
      %345 = vmatprep.subr.bf16.mxu0 0
      %346 = vmatpush1.bf16.msra.mxu0 0
      %347 = vmatprep.subr.bf16.mxu0 0
      %348 = vmatpush1.bf16.msra.mxu0 0
      %349 = vmatprep.subr.bf16.mxu0 0
      %350 = vmatpush1.bf16.msra.mxu0 0
      %351 = vmatprep.mubr.bf16.mxu0 0
      %352 = vmatmul.mubr.bf16.gmra.mrb[0].mxu0 %v317
      %v353 = vpop.f32.mrb[0].mxu0
      %v354 = vadd.f32 0.0, %v353
      %v355 = vpop.f32.mrb[0].mxu0
      %v356 = vpop.f32.mrb[0].mxu0
      %v357 = vpop.f32.mrb[0].mxu0
      %358 = vdwg.mxu0
      %v359 = vpack.c.bf16 %v302, %v302
      %360 = vrot.lane.b32.xlu0 %v312, 96
      %v361 = vpop.permute.xlu0 %360
      %362 = vrot.lane.b32.xlu0 %v313, 96
      %v363 = vpop.permute.xlu0 %362
      %v367 = vsel %vm281, %v359, 0
      %369 = vmatprep.subr.bf16.mxu0 0
      %370 = vmatpush1.bf16.msra.mxu0 %v361
      %371 = vmatprep.subr.bf16.mxu0 0
      %372 = vmatpush1.bf16.msra.mxu0 %v363
      %373 = vmatprep.subr.bf16.mxu0 0
      %374 = vmatpush1.bf16.msra.mxu0 0
      %375 = vmatprep.subr.bf16.mxu0 0
      %376 = vmatpush1.bf16.msra.mxu0 0
      %377 = vmatprep.subr.bf16.mxu0 0
      %378 = vmatpush1.bf16.msra.mxu0 0
      %379 = vmatprep.subr.bf16.mxu0 0
      %380 = vmatpush1.bf16.msra.mxu0 0
      %381 = vmatprep.subr.bf16.mxu0 0
      %382 = vmatpush1.bf16.msra.mxu0 0
      %383 = vmatprep.subr.bf16.mxu0 0
      %384 = vmatpush1.bf16.msra.mxu0 0
      %385 = vmatprep.subr.bf16.mxu0 0
      %386 = vmatpush1.bf16.msra.mxu0 0
      %387 = vmatprep.subr.bf16.mxu0 0
      %388 = vmatpush1.bf16.msra.mxu0 0
      %389 = vmatprep.subr.bf16.mxu0 0
      %390 = vmatpush1.bf16.msra.mxu0 0
      %391 = vmatprep.subr.bf16.mxu0 0
      %392 = vmatpush1.bf16.msra.mxu0 0
      %393 = vmatprep.subr.bf16.mxu0 0
      %394 = vmatpush1.bf16.msra.mxu0 0
      %395 = vmatprep.subr.bf16.mxu0 0
      %396 = vmatpush1.bf16.msra.mxu0 0
      %397 = vmatprep.subr.bf16.mxu0 0
      %398 = vmatpush1.bf16.msra.mxu0 0
      %399 = vmatprep.subr.bf16.mxu0 0
      %400 = vmatpush1.bf16.msra.mxu0 0
      %401 = vmatprep.mubr.bf16.mxu0 0
      %402 = vmatmul.mubr.bf16.gmra.mrb[0].mxu0 %v367
      %v403 = vpop.f32.mrb[0].mxu0
      %v404 = vadd.f32 0.0, %v403
      %v405 = vpop.f32.mrb[0].mxu0
      %v406 = vpop.f32.mrb[0].mxu0
      %v407 = vpop.f32.mrb[0].mxu0
      %408 = vdwg.mxu0
      %v409 = vld [vmem:[%s273] sm:$0x1]
      %v410 = vpack.c.bf16 %v354, %v354
      %v411 = vpack.c.bf16 %v404, %v404
      %v413 = vlaneseq
      %v414 = vshrl.u32 %v413, 7
      %v415 = vsub.s32 0, %v414
      %v416 = vrot.slane %v409, %v415
      %vm418 = vcmask 64512
      %v420 = vsel %vm418, %v410, 0
      %v423 = vsel %vm418, %v411, 0
      %425 = vmatprep.subr.bf16.mxu0 0
      %426 = vmatpush1.bf16.xpose.msra.mxu0 %v423
      %427 = vmatprep.subr.bf16.mxu0 0
      %428 = vmatpush1.bf16.xpose.msra.mxu0 0
      %429 = vmatprep.subr.bf16.mxu0 0
      %430 = vmatpush1.bf16.xpose.msra.mxu0 0
      %431 = vmatprep.subr.bf16.mxu0 0
      %432 = vmatpush1.bf16.xpose.msra.mxu0 0
      %433 = vmatprep.subr.bf16.mxu0 0
      %434 = vmatpush1.bf16.xpose.msra.mxu0 0
      %435 = vmatprep.subr.bf16.mxu0 0
      %436 = vmatpush1.bf16.xpose.msra.mxu0 0
      %437 = vmatprep.subr.bf16.mxu0 0
      %438 = vmatpush1.bf16.xpose.msra.mxu0 0
      %439 = vmatprep.subr.bf16.mxu0 0
      %440 = vmatpush1.bf16.xpose.msra.mxu0 0
      %441 = vmatprep.subr.bf16.mxu0 0
      %442 = vmatpush1.bf16.xpose.msra.mxu0 0
      %443 = vmatprep.subr.bf16.mxu0 0
      %444 = vmatpush1.bf16.xpose.msra.mxu0 0
      %445 = vmatprep.subr.bf16.mxu0 0
      %446 = vmatpush1.bf16.xpose.msra.mxu0 0
      %447 = vmatprep.subr.bf16.mxu0 0
      %448 = vmatpush1.bf16.xpose.msra.mxu0 0
      %449 = vmatprep.subr.bf16.mxu0 0
      %450 = vmatpush1.bf16.xpose.msra.mxu0 0
      %451 = vmatprep.subr.bf16.mxu0 0
      %452 = vmatpush1.bf16.xpose.msra.mxu0 0
      %453 = vmatprep.subr.bf16.mxu0 0
      %454 = vmatpush1.bf16.xpose.msra.mxu0 0
      %455 = vmatprep.subr.bf16.mxu0 0
      %456 = vmatpush1.bf16.xpose.msra.mxu0 0
      %457 = vmatprep.mubr.bf16.mxu0 0
      %458 = vmatmul.mubr.bf16.gmra.mrb[0].mxu0 %v420
      %v459 = vpop.f32.mrb[0].mxu0
      %v460 = vadd.f32 %v416, %v459
      %v461 = vpop.f32.mrb[0].mxu0
      %v462 = vpop.f32.mrb[0].mxu0
      %v463 = vpop.f32.mrb[0].mxu0
      %464 = vdwg.mxu0
      %v465 = vsel %vm418, %v460, -inf
      %466 = vmax.xlane.f32.xlu0 %v465
      %v467 = vpop.xlane.xlu0 %466
      %v468 = vsub.f32 %v460, %v467
      %v469 = vmul.f32 %v468, 1.442695
      %v470 = vpow.pop %v469
      %v471 = vsel %vm418, %v470, 0.0
      %472 = vadd.xlane.f32.xlu0 %v471
      %v473 = vpop.xlane.xlu0 %472
      %v474 = vrcp.pop %v473
      %v475 = vmul.f32 %v470, %v474
      %v476 = vpack.c.bf16 %v475, %v475
      %478 = vrot.lane.b32.xlu0 %v411, 96
      %v479 = vpop.permute.xlu0 %478
      %v481 = vsel %vm418, %v476, 0
      %vm483 = vcmask 1043456
      %v485 = vsel %vm483, %v479, 0
      %487 = vmatprep.subr.bf16.mxu0 0
      %488 = vmatpush1.bf16.msra.mxu0 %v485
      %489 = vmatprep.subr.bf16.mxu0 0
      %490 = vmatpush1.bf16.msra.mxu0 0
      %491 = vmatprep.subr.bf16.mxu0 0
      %492 = vmatpush1.bf16.msra.mxu0 0
      %493 = vmatprep.subr.bf16.mxu0 0
      %494 = vmatpush1.bf16.msra.mxu0 0
      %495 = vmatprep.subr.bf16.mxu0 0
      %496 = vmatpush1.bf16.msra.mxu0 0
      %497 = vmatprep.subr.bf16.mxu0 0
      %498 = vmatpush1.bf16.msra.mxu0 0
      %499 = vmatprep.subr.bf16.mxu0 0
      %500 = vmatpush1.bf16.msra.mxu0 0
      %501 = vmatprep.subr.bf16.mxu0 0
      %502 = vmatpush1.bf16.msra.mxu0 0
      %503 = vmatprep.subr.bf16.mxu0 0
      %504 = vmatpush1.bf16.msra.mxu0 0
      %505 = vmatprep.subr.bf16.mxu0 0
      %506 = vmatpush1.bf16.msra.mxu0 0
      %507 = vmatprep.subr.bf16.mxu0 0
      %508 = vmatpush1.bf16.msra.mxu0 0
      %509 = vmatprep.subr.bf16.mxu0 0
      %510 = vmatpush1.bf16.msra.mxu0 0
      %511 = vmatprep.subr.bf16.mxu0 0
      %512 = vmatpush1.bf16.msra.mxu0 0
      %513 = vmatprep.subr.bf16.mxu0 0
      %514 = vmatpush1.bf16.msra.mxu0 0
      %515 = vmatprep.subr.bf16.mxu0 0
      %516 = vmatpush1.bf16.msra.mxu0 0
      %517 = vmatprep.subr.bf16.mxu0 0
      %518 = vmatpush1.bf16.msra.mxu0 0
      %519 = vmatprep.mubr.bf16.mxu0 0
      %520 = vmatmul.mubr.bf16.gmra.mrb[0].mxu0 %v481
      %v521 = vpop.f32.mrb[0].mxu0
      %v522 = vadd.f32 0.0, %v521
      %v523 = vpop.f32.mrb[0].mxu0
      %v524 = vpop.f32.mrb[0].mxu0
      %v525 = vpop.f32.mrb[0].mxu0
      %526 = vdwg.mxu0
      %527 = vst.msk [vmem:[#allocation2] sm:$0xff] %vm418, %v522
      %529 = vrot.lane.b32.xlu0 %v410, 120
      %v530 = vpop.permute.xlu0 %529
      %531 = vrot.lane.b32.xlu0 %v411, 120
      %v532 = vpop.permute.xlu0 %531
      %v534 = vsel %vm418, %v530, 0
      %v537 = vsel %vm418, %v532, 0
      %539 = vmatprep.subr.bf16.mxu0 0
      %540 = vmatpush1.bf16.xpose.msra.mxu0 %v537
      %541 = vmatprep.subr.bf16.mxu0 0
      %542 = vmatpush1.bf16.xpose.msra.mxu0 0
      %543 = vmatprep.subr.bf16.mxu0 0
      %544 = vmatpush1.bf16.xpose.msra.mxu0 0
      %545 = vmatprep.subr.bf16.mxu0 0
      %546 = vmatpush1.bf16.xpose.msra.mxu0 0
      %547 = vmatprep.subr.bf16.mxu0 0
      %548 = vmatpush1.bf16.xpose.msra.mxu0 0
      %549 = vmatprep.subr.bf16.mxu0 0
      %550 = vmatpush1.bf16.xpose.msra.mxu0 0
      %551 = vmatprep.subr.bf16.mxu0 0
      %552 = vmatpush1.bf16.xpose.msra.mxu0 0
      %553 = vmatprep.subr.bf16.mxu0 0
      %554 = vmatpush1.bf16.xpose.msra.mxu0 0
      %555 = vmatprep.subr.bf16.mxu0 0
      %556 = vmatpush1.bf16.xpose.msra.mxu0 0
      %557 = vmatprep.subr.bf16.mxu0 0
      %558 = vmatpush1.bf16.xpose.msra.mxu0 0
      %559 = vmatprep.subr.bf16.mxu0 0
      %560 = vmatpush1.bf16.xpose.msra.mxu0 0
      %561 = vmatprep.subr.bf16.mxu0 0
      %562 = vmatpush1.bf16.xpose.msra.mxu0 0
      %563 = vmatprep.subr.bf16.mxu0 0
      %564 = vmatpush1.bf16.xpose.msra.mxu0 0
      %565 = vmatprep.subr.bf16.mxu0 0
      %566 = vmatpush1.bf16.xpose.msra.mxu0 0
      %567 = vmatprep.subr.bf16.mxu0 0
      %568 = vmatpush1.bf16.xpose.msra.mxu0 0
      %569 = vmatprep.subr.bf16.mxu0 0
      %570 = vmatpush1.bf16.xpose.msra.mxu0 0
      %571 = vmatprep.mubr.bf16.mxu0 0
      %572 = vmatmul.mubr.bf16.gmra.mrb[0].mxu0 %v534
      %v573 = vpop.f32.mrb[0].mxu0
      %v574 = vadd.f32 %v416, %v573
      %v575 = vpop.f32.mrb[0].mxu0
      %v576 = vpop.f32.mrb[0].mxu0
      %v577 = vpop.f32.mrb[0].mxu0
      %578 = vdwg.mxu0
      %v579 = vsel %vm418, %v574, -inf
      %580 = vmax.xlane.f32.xlu0 %v579
      %v581 = vpop.xlane.xlu0 %580
      %v582 = vsub.f32 %v574, %v581
      %v583 = vmul.f32 %v582, 1.442695
      %v584 = vpow.pop %v583
      %v585 = vsel %vm418, %v584, 0.0
      %586 = vadd.xlane.f32.xlu0 %v585
      %v587 = vpop.xlane.xlu0 %586
      %v588 = vrcp.pop %v587
      %v589 = vmul.f32 %v584, %v588
      %v590 = vpack.c.bf16 %v589, %v589
      %591 = vrot.lane.b32.xlu0 %v411, 88
      %v592 = vpop.permute.xlu0 %591
      %v594 = vsel %vm418, %v590, 0
      %v597 = vsel %vm483, %v592, 0
      %599 = vmatprep.subr.bf16.mxu0 0
      %600 = vmatpush1.bf16.msra.mxu0 %v597
      %601 = vmatprep.subr.bf16.mxu0 0
      %602 = vmatpush1.bf16.msra.mxu0 0
      %603 = vmatprep.subr.bf16.mxu0 0
      %604 = vmatpush1.bf16.msra.mxu0 0
      %605 = vmatprep.subr.bf16.mxu0 0
      %606 = vmatpush1.bf16.msra.mxu0 0
      %607 = vmatprep.subr.bf16.mxu0 0
      %608 = vmatpush1.bf16.msra.mxu0 0
      %609 = vmatprep.subr.bf16.mxu0 0
      %610 = vmatpush1.bf16.msra.mxu0 0
      %611 = vmatprep.subr.bf16.mxu0 0
      %612 = vmatpush1.bf16.msra.mxu0 0
      %613 = vmatprep.subr.bf16.mxu0 0
      %614 = vmatpush1.bf16.msra.mxu0 0
      %615 = vmatprep.subr.bf16.mxu0 0
      %616 = vmatpush1.bf16.msra.mxu0 0
      %617 = vmatprep.subr.bf16.mxu0 0
      %618 = vmatpush1.bf16.msra.mxu0 0
      %619 = vmatprep.subr.bf16.mxu0 0
      %620 = vmatpush1.bf16.msra.mxu0 0
      %621 = vmatprep.subr.bf16.mxu0 0
      %622 = vmatpush1.bf16.msra.mxu0 0
      %623 = vmatprep.subr.bf16.mxu0 0
      %624 = vmatpush1.bf16.msra.mxu0 0
      %625 = vmatprep.subr.bf16.mxu0 0
      %626 = vmatpush1.bf16.msra.mxu0 0
      %627 = vmatprep.subr.bf16.mxu0 0
      %628 = vmatpush1.bf16.msra.mxu0 0
      %629 = vmatprep.subr.bf16.mxu0 0
      %630 = vmatpush1.bf16.msra.mxu0 0
      %631 = vmatprep.mubr.bf16.mxu0 0
      %632 = vmatmul.mubr.bf16.gmra.mrb[0].mxu0 %v594
      %v633 = vpop.f32.mrb[0].mxu0
      %v634 = vadd.f32 0.0, %v633
      %v635 = vpop.f32.mrb[0].mxu0
      %v636 = vpop.f32.mrb[0].mxu0
      %v637 = vpop.f32.mrb[0].mxu0
      %638 = vdwg.mxu0
      %640 = vrot.lane.b32.xlu0 %v634, 8
      %v641 = vpop.permute.xlu0 %640
      %vm643 = vcmask 130112
      %644 = vst.msk [vmem:[#allocation2] sm:$0xff] %vm643, %v641
      %645 = vrot.lane.b32.xlu0 %v410, 112
      %v646 = vpop.permute.xlu0 %645
      %647 = vrot.lane.b32.xlu0 %v411, 112
      %v648 = vpop.permute.xlu0 %647
      %v650 = vsel %vm418, %v646, 0
      %v653 = vsel %vm418, %v648, 0
      %655 = vmatprep.subr.bf16.mxu0 0
      %656 = vmatpush1.bf16.xpose.msra.mxu0 %v653
      %657 = vmatprep.subr.bf16.mxu0 0
      %658 = vmatpush1.bf16.xpose.msra.mxu0 0
      %659 = vmatprep.subr.bf16.mxu0 0
      %660 = vmatpush1.bf16.xpose.msra.mxu0 0
      %661 = vmatprep.subr.bf16.mxu0 0
      %662 = vmatpush1.bf16.xpose.msra.mxu0 0
      %663 = vmatprep.subr.bf16.mxu0 0
      %664 = vmatpush1.bf16.xpose.msra.mxu0 0
      %665 = vmatprep.subr.bf16.mxu0 0
      %666 = vmatpush1.bf16.xpose.msra.mxu0 0
      %667 = vmatprep.subr.bf16.mxu0 0
      %668 = vmatpush1.bf16.xpose.msra.mxu0 0
      %669 = vmatprep.subr.bf16.mxu0 0
      %670 = vmatpush1.bf16.xpose.msra.mxu0 0
      %671 = vmatprep.subr.bf16.mxu0 0
      %672 = vmatpush1.bf16.xpose.msra.mxu0 0
      %673 = vmatprep.subr.bf16.mxu0 0
      %674 = vmatpush1.bf16.xpose.msra.mxu0 0
      %675 = vmatprep.subr.bf16.mxu0 0
      %676 = vmatpush1.bf16.xpose.msra.mxu0 0
      %677 = vmatprep.subr.bf16.mxu0 0
      %678 = vmatpush1.bf16.xpose.msra.mxu0 0
      %679 = vmatprep.subr.bf16.mxu0 0
      %680 = vmatpush1.bf16.xpose.msra.mxu0 0
      %681 = vmatprep.subr.bf16.mxu0 0
      %682 = vmatpush1.bf16.xpose.msra.mxu0 0
      %683 = vmatprep.subr.bf16.mxu0 0
      %684 = vmatpush1.bf16.xpose.msra.mxu0 0
      %685 = vmatprep.subr.bf16.mxu0 0
      %686 = vmatpush1.bf16.xpose.msra.mxu0 0
      %687 = vmatprep.mubr.bf16.mxu0 0
      %688 = vmatmul.mubr.bf16.gmra.mrb[0].mxu0 %v650
      %v689 = vpop.f32.mrb[0].mxu0
      %v690 = vadd.f32 %v416, %v689
      %v691 = vpop.f32.mrb[0].mxu0
      %v692 = vpop.f32.mrb[0].mxu0
      %v693 = vpop.f32.mrb[0].mxu0
      %694 = vdwg.mxu0
      %v695 = vsel %vm418, %v690, -inf
      %696 = vmax.xlane.f32.xlu0 %v695
      %v697 = vpop.xlane.xlu0 %696
      %v698 = vsub.f32 %v690, %v697
      %v699 = vmul.f32 %v698, 1.442695
      %v700 = vpow.pop %v699
      %v701 = vsel %vm418, %v700, 0.0
      %702 = vadd.xlane.f32.xlu0 %v701
      %v703 = vpop.xlane.xlu0 %702
      %v704 = vrcp.pop %v703
      %v705 = vmul.f32 %v700, %v704
      %v706 = vpack.c.bf16 %v705, %v705
      %707 = vrot.lane.b32.xlu0 %v411, 80
      %v708 = vpop.permute.xlu0 %707
      %v710 = vsel %vm418, %v706, 0
      %v713 = vsel %vm483, %v708, 0
      %715 = vmatprep.subr.bf16.mxu0 0
      %716 = vmatpush1.bf16.msra.mxu0 %v713
      %717 = vmatprep.subr.bf16.mxu0 0
      %718 = vmatpush1.bf16.msra.mxu0 0
      %719 = vmatprep.subr.bf16.mxu0 0
      %720 = vmatpush1.bf16.msra.mxu0 0
      %721 = vmatprep.subr.bf16.mxu0 0
      %722 = vmatpush1.bf16.msra.mxu0 0
      %723 = vmatprep.subr.bf16.mxu0 0
      %724 = vmatpush1.bf16.msra.mxu0 0
      %725 = vmatprep.subr.bf16.mxu0 0
      %726 = vmatpush1.bf16.msra.mxu0 0
      %727 = vmatprep.subr.bf16.mxu0 0
      %728 = vmatpush1.bf16.msra.mxu0 0
      %729 = vmatprep.subr.bf16.mxu0 0
      %730 = vmatpush1.bf16.msra.mxu0 0
      %731 = vmatprep.subr.bf16.mxu0 0
      %732 = vmatpush1.bf16.msra.mxu0 0
      %733 = vmatprep.subr.bf16.mxu0 0
      %734 = vmatpush1.bf16.msra.mxu0 0
      %735 = vmatprep.subr.bf16.mxu0 0
      %736 = vmatpush1.bf16.msra.mxu0 0
      %737 = vmatprep.subr.bf16.mxu0 0
      %738 = vmatpush1.bf16.msra.mxu0 0
      %739 = vmatprep.subr.bf16.mxu0 0
      %740 = vmatpush1.bf16.msra.mxu0 0
      %741 = vmatprep.subr.bf16.mxu0 0
      %742 = vmatpush1.bf16.msra.mxu0 0
      %743 = vmatprep.subr.bf16.mxu0 0
      %744 = vmatpush1.bf16.msra.mxu0 0
      %745 = vmatprep.subr.bf16.mxu0 0
      %746 = vmatpush1.bf16.msra.mxu0 0
      %747 = vmatprep.mubr.bf16.mxu0 0
      %748 = vmatmul.mubr.bf16.gmra.mrb[0].mxu0 %v710
      %v749 = vpop.f32.mrb[0].mxu0
      %v750 = vadd.f32 0.0, %v749
      %v751 = vpop.f32.mrb[0].mxu0
      %v752 = vpop.f32.mrb[0].mxu0
      %v753 = vpop.f32.mrb[0].mxu0
      %754 = vdwg.mxu0
      %756 = vrot.lane.b32.xlu0 %v750, 16
      %v757 = vpop.permute.xlu0 %756
      %vm759 = vcmask 195712
      %760 = vst.msk [vmem:[#allocation2] sm:$0xff] %vm759, %v757
      %761 = vrot.lane.b32.xlu0 %v410, 104
      %v762 = vpop.permute.xlu0 %761
      %763 = vrot.lane.b32.xlu0 %v411, 104
      %v764 = vpop.permute.xlu0 %763
      %v766 = vsel %vm418, %v762, 0
      %v769 = vsel %vm418, %v764, 0
      %771 = vmatprep.subr.bf16.mxu0 0
      %772 = vmatpush1.bf16.xpose.msra.mxu0 %v769
      %773 = vmatprep.subr.bf16.mxu0 0
      %774 = vmatpush1.bf16.xpose.msra.mxu0 0
      %775 = vmatprep.subr.bf16.mxu0 0
      %776 = vmatpush1.bf16.xpose.msra.mxu0 0
      %777 = vmatprep.subr.bf16.mxu0 0
      %778 = vmatpush1.bf16.xpose.msra.mxu0 0
      %779 = vmatprep.subr.bf16.mxu0 0
      %780 = vmatpush1.bf16.xpose.msra.mxu0 0
      %781 = vmatprep.subr.bf16.mxu0 0
      %782 = vmatpush1.bf16.xpose.msra.mxu0 0
      %783 = vmatprep.subr.bf16.mxu0 0
      %784 = vmatpush1.bf16.xpose.msra.mxu0 0
      %785 = vmatprep.subr.bf16.mxu0 0
      %786 = vmatpush1.bf16.xpose.msra.mxu0 0
      %787 = vmatprep.subr.bf16.mxu0 0
      %788 = vmatpush1.bf16.xpose.msra.mxu0 0
      %789 = vmatprep.subr.bf16.mxu0 0
      %790 = vmatpush1.bf16.xpose.msra.mxu0 0
      %791 = vmatprep.subr.bf16.mxu0 0
      %792 = vmatpush1.bf16.xpose.msra.mxu0 0
      %793 = vmatprep.subr.bf16.mxu0 0
      %794 = vmatpush1.bf16.xpose.msra.mxu0 0
      %795 = vmatprep.subr.bf16.mxu0 0
      %796 = vmatpush1.bf16.xpose.msra.mxu0 0
      %797 = vmatprep.subr.bf16.mxu0 0
      %798 = vmatpush1.bf16.xpose.msra.mxu0 0
      %799 = vmatprep.subr.bf16.mxu0 0
      %800 = vmatpush1.bf16.xpose.msra.mxu0 0
      %801 = vmatprep.subr.bf16.mxu0 0
      %802 = vmatpush1.bf16.xpose.msra.mxu0 0
      %803 = vmatprep.mubr.bf16.mxu0 0
      %804 = vmatmul.mubr.bf16.gmra.mrb[0].mxu0 %v766
      %v805 = vpop.f32.mrb[0].mxu0
      %v806 = vadd.f32 %v416, %v805
      %v807 = vpop.f32.mrb[0].mxu0
      %v808 = vpop.f32.mrb[0].mxu0
      %v809 = vpop.f32.mrb[0].mxu0
      %810 = vdwg.mxu0
      %v811 = vsel %vm418, %v806, -inf
      %812 = vmax.xlane.f32.xlu0 %v811
      %v813 = vpop.xlane.xlu0 %812
      %v814 = vsub.f32 %v806, %v813
      %v815 = vmul.f32 %v814, 1.442695
      %v816 = vpow.pop %v815
      %v817 = vsel %vm418, %v816, 0.0
      %818 = vadd.xlane.f32.xlu0 %v817
      %v819 = vpop.xlane.xlu0 %818
      %v820 = vrcp.pop %v819
      %v821 = vmul.f32 %v816, %v820
      %v822 = vpack.c.bf16 %v821, %v821
      %823 = vrot.lane.b32.xlu0 %v411, 72
      %v824 = vpop.permute.xlu0 %823
      %v826 = vsel %vm418, %v822, 0
      %v829 = vsel %vm483, %v824, 0
      %831 = vmatprep.subr.bf16.mxu0 0
      %832 = vmatpush1.bf16.msra.mxu0 %v829
      %833 = vmatprep.subr.bf16.mxu0 0
      %834 = vmatpush1.bf16.msra.mxu0 0
      %835 = vmatprep.subr.bf16.mxu0 0
      %836 = vmatpush1.bf16.msra.mxu0 0
      %837 = vmatprep.subr.bf16.mxu0 0
      %838 = vmatpush1.bf16.msra.mxu0 0
      %839 = vmatprep.subr.bf16.mxu0 0
      %840 = vmatpush1.bf16.msra.mxu0 0
      %841 = vmatprep.subr.bf16.mxu0 0
      %842 = vmatpush1.bf16.msra.mxu0 0
      %843 = vmatprep.subr.bf16.mxu0 0
      %844 = vmatpush1.bf16.msra.mxu0 0
      %845 = vmatprep.subr.bf16.mxu0 0
      %846 = vmatpush1.bf16.msra.mxu0 0
      %847 = vmatprep.subr.bf16.mxu0 0
      %848 = vmatpush1.bf16.msra.mxu0 0
      %849 = vmatprep.subr.bf16.mxu0 0
      %850 = vmatpush1.bf16.msra.mxu0 0
      %851 = vmatprep.subr.bf16.mxu0 0
      %852 = vmatpush1.bf16.msra.mxu0 0
      %853 = vmatprep.subr.bf16.mxu0 0
      %854 = vmatpush1.bf16.msra.mxu0 0
      %855 = vmatprep.subr.bf16.mxu0 0
      %856 = vmatpush1.bf16.msra.mxu0 0
      %857 = vmatprep.subr.bf16.mxu0 0
      %858 = vmatpush1.bf16.msra.mxu0 0
      %859 = vmatprep.subr.bf16.mxu0 0
      %860 = vmatpush1.bf16.msra.mxu0 0
      %861 = vmatprep.subr.bf16.mxu0 0
      %862 = vmatpush1.bf16.msra.mxu0 0
      %863 = vmatprep.mubr.bf16.mxu0 0
      %864 = vmatmul.mubr.bf16.gmra.mrb[0].mxu0 %v826
      %v865 = vpop.f32.mrb[0].mxu0
      %v866 = vadd.f32 0.0, %v865
      %v867 = vpop.f32.mrb[0].mxu0
      %v868 = vpop.f32.mrb[0].mxu0
      %v869 = vpop.f32.mrb[0].mxu0
      %870 = vdwg.mxu0
      %872 = vrot.lane.b32.xlu0 %v866, 24
      %v873 = vpop.permute.xlu0 %872
      %vm875 = vcmask 261312
      %876 = vst.msk [vmem:[#allocation2] sm:$0xff] %vm875, %v873
      %v877 = vld [vmem:[#allocation2] sm:$0xff]
      %v878 = vpack.c.bf16 %v877, %v877
      %v879 = vld [vmem:[%s4] sm:$0xf]
      %v880 = vld [vmem:[%s4 + $0x4] sm:$0xf]
      %v881 = vld [vmem:[%s4 + $0x8] sm:$0xf]
      %v882 = vld [vmem:[%s4 + $0xc] sm:$0xf]
      %v887 = vunpack.c.l.b16 %v879
      %v888 = vunpack.c.l.b16 %v880
      %v889 = vunpack.c.l.b16 %v881
      %v890 = vunpack.c.l.b16 %v882
      %v891 = vpack.c.b16 %v888, %v887
      %v892 = vpack.c.b16 %v890, %v889
      %v896 = vsel %vm281, %v878, 0
      %898 = vmatprep.subr.bf16.mxu0 0
      %899 = vmatpush1.bf16.msra.mxu0 %v891
      %900 = vmatprep.subr.bf16.mxu0 0
      %901 = vmatpush1.bf16.msra.mxu0 %v892
      %902 = vmatprep.subr.bf16.mxu0 0
      %903 = vmatpush1.bf16.msra.mxu0 0
      %904 = vmatprep.subr.bf16.mxu0 0
      %905 = vmatpush1.bf16.msra.mxu0 0
      %906 = vmatprep.subr.bf16.mxu0 0
      %907 = vmatpush1.bf16.msra.mxu0 0
      %908 = vmatprep.subr.bf16.mxu0 0
      %909 = vmatpush1.bf16.msra.mxu0 0
      %910 = vmatprep.subr.bf16.mxu0 0
      %911 = vmatpush1.bf16.msra.mxu0 0
      %912 = vmatprep.subr.bf16.mxu0 0
      %913 = vmatpush1.bf16.msra.mxu0 0
      %914 = vmatprep.subr.bf16.mxu0 0
      %915 = vmatpush1.bf16.msra.mxu0 0
      %916 = vmatprep.subr.bf16.mxu0 0
      %917 = vmatpush1.bf16.msra.mxu0 0
      %918 = vmatprep.subr.bf16.mxu0 0
      %919 = vmatpush1.bf16.msra.mxu0 0
      %920 = vmatprep.subr.bf16.mxu0 0
      %921 = vmatpush1.bf16.msra.mxu0 0
      %922 = vmatprep.subr.bf16.mxu0 0
      %923 = vmatpush1.bf16.msra.mxu0 0
      %924 = vmatprep.subr.bf16.mxu0 0
      %925 = vmatpush1.bf16.msra.mxu0 0
      %926 = vmatprep.subr.bf16.mxu0 0
      %927 = vmatpush1.bf16.msra.mxu0 0
      %928 = vmatprep.subr.bf16.mxu0 0
      %929 = vmatpush1.bf16.msra.mxu0 0
      %930 = vmatprep.mubr.bf16.mxu0 0
      %931 = vmatmul.mubr.bf16.gmra.mrb[0].mxu0 %v896
      %v932 = vpop.f32.mrb[0].mxu0
      %v933 = vadd.f32 0.0, %v932
      %v934 = vpop.f32.mrb[0].mxu0
      %v935 = vpop.f32.mrb[0].mxu0
      %v936 = vpop.f32.mrb[0].mxu0
      %937 = vdwg.mxu0
      %v938 = vadd.f32 %v279, %v933
      %939 = vst.msk [vmem:[%s277] sm:$0xff] %vm281, %v938
      %p940 = scmp.lt.s32.totalorder %s17, 1
      %s941 = scalar_select %p940, %s17, 1
      %s942 = smul.addr %s941, 8
      %s943 = scalar_lea.vmem %s6, %s942
      // Predicated region
      $region45: #{_lambda_.21} parent=43 // pred_check
        %p944 = pneg %p176
      $region46: #{_lambda_.21} parent=43 // pred_check_branch
        %946 = sbr.rel (%p944) target = $region48
      $region47: #{_lambda_.21} parent=43 // pred_region
        _
      $region48: #{_lambda_.21} parent=43 // pred_fallthru
        _
    $region44: #{_lambda_.21} parent=5 // pred_fallthru
      _
    %p947 = scmp.le.s32.totalorder 2, %s12
    // Predicated region
    $region49: #{_lambda_.21} parent=5 // pred_check
      %p948 = pneg %p947
    $region50: #{_lambda_.21} parent=5 // pred_check_branch
      %950 = sbr.rel (%p948) target = $region52
    $region51: #{_lambda_.21} parent=5 // pred_region
      %s951 = ssub.s32 %s12, 2
      // Predicated region
      $region53: #{_lambda_.21} parent=51 // pred_check
        %p952 = pneg %p182
      $region54: #{_lambda_.21} parent=51 // pred_check_branch
        %954 = sbr.rel (%p952) target = $region56
      $region55: #{_lambda_.21} parent=51 // pred_region
        %p955 = scmp.lt.s32.totalorder %s18, 1
        %s956 = scalar_select %p955, %s18, 1
        %s957 = smul.addr %s956, 8
        %s958 = scalar_lea.vmem %s6, %s957
      $region56: #{_lambda_.21} parent=51 // pred_fallthru
        _
    $region52: #{_lambda_.21} parent=5 // pred_fallthru
      _
  $region6: #{_lambda_.21} parent=0 // loop_footer
    %s16 = sadd.s32 1, %s12
  $region7: #{_lambda_.21} parent=0 // loop_footer_branch
    %11 = sbr.rel target = $region3
  $region8: #{_lambda_.21} parent=0 // loop_exit
    _

// kernel: _lambda_.20
$region0: #{_lambda_.20}
  #allocation0 [shape = 'u32[]', space=smem, size = 0x4, offset = 0x4, fixed_abs, tag = 'smem constant byte address 0x4 - core index']
  #allocation1 [shape = 'u32[144,128]{1,0:T(1,128)}', space=vmem, size = 0x12000, scoped, tag = 'internal scratch']
  #allocation2 [shape = 'f32[8,32]{1,0:T(8,128)}', space=vmem, size = 0x1000, scoped, tag = 'scratch operand']
  %s0 = inlined_call_operand.vmem [shape: f32[2,8,32], index: 0, kind: input, shape index: {}]
  %s1 = inlined_call_operand.vmem [shape: f32[1,32], index: 1, kind: input, shape index: {}]
  %s2 = inlined_call_operand.vmem [shape: bf16[32,96], index: 2, kind: input, shape index: {}]
  %s3 = inlined_call_operand.vmem [shape: bf16[32,32], index: 3, kind: input, shape index: {}]
  %s4 = inlined_call_operand.vmem [shape: f32[4,8,8], index: 4, kind: input, shape index: {}]
  %s5 = inlined_call_operand.vmem [shape: f32[2,8,8], index: 5, kind: input, shape index: {}]
  %s6 = inlined_call_operand.vmem [shape: f32[2,8,32], index: 6, kind: output, shape index: {}]
  %s7 = sld [smem:[#allocation0]]
  $region57: #{_lambda_.20} parent=0
    _
  %s9 = ssub.s32 1, %s7
  %s10 = scalar_select 0, %s9, %s7
  loop: start=0, step=1, limit=4
  $region2: #{_lambda_.20} parent=0 // loop_pre_header
    _
  $region3: #{_lambda_.20} parent=0 // loop_header
    %s12 = sphi 0, %s16
    %p13 = scmp.ge.s32.totalorder %s12, 4
    %s22 = sphi 0, %s24
    %s25 = sphi 0, %s22
    %s26 = sphi 0, %s25
    %s42 = sphi 0, %s26
    %s46 = sphi 0, %s46
    %s48 = sphi 0, %s46
    %s49 = sphi 0, %s48
    %s63 = sphi 0, %s49
    %s67 = sphi 0, %s67
    %s69 = sphi 0, %s67
    %s70 = sphi 0, %s69
    %s84 = sphi 0, %s70
    %s88 = sphi 0, %s88
    %s90 = sphi 0, %s88
    %s91 = sphi 0, %s90
    %s105 = sphi 0, %s91
    %s109 = sphi 0, %s109
    %s111 = sphi 0, %s109
    %s112 = sphi 0, %s111
    %s126 = sphi 0, %s112
    %s132 = sphi 0, %s134
    %s135 = sphi 0, %s132
    %s136 = sphi 0, %s135
    %s152 = sphi 0, %s136
    %s158 = sphi 0, %s160
    %s161 = sphi 0, %s158
    %s162 = sphi 0, %s161
    %s178 = sphi 0, %s162
  $region4: #{_lambda_.20} parent=0 // loop_header_branch
    %15 = sbr.rel (%p13) target = $region8
  $region5: #{_lambda_.20} parent=0 // loop_body
    %s17 = ssub.s32 %s12, 1
    %s18 = ssub.s32 %s12, 2
    %s19 = sadd.s32 %s12, 1
    %s20 = ssub.s32 %s12, %s19
    %p21 = scmp.eq.s32.totalorder %s20, 0
    %s23 = sadd.s32 %s22, 1
    %s24 = scalar_select %p21, %s22, %s23
    %p27 = pneg %p21
    %p28 = scmp.eq.s32.totalorder %s12, 1
    %p29 = por %p27, %p28
    %p30 = scmp.ne.s32.totalorder %s22, %s25
    %p31 = scmp.eq.s32.totalorder %s12, 0
    %p32 = por %p30, %p31
    %p33 = scmp.ne.s32.totalorder %s22, %s25
    %p34 = scmp.eq.s32.totalorder %s17, 1
    %p35 = por %p33, %p34
    %p36 = scmp.ne.s32.totalorder %s25, %s26
    %p37 = scmp.eq.s32.totalorder %s17, 0
    %p38 = por %p36, %p37
    %p39 = scmp.ne.s32.totalorder %s25, %s26
    %p40 = scmp.eq.s32.totalorder %s18, 1
    %p41 = por %p39, %p40
    %p43 = scmp.ne.s32.totalorder %s26, %s42
    %p44 = scmp.eq.s32.totalorder %s18, 0
    %p45 = por %p43, %p44
    %s47 = sadd.s32 %s46, 1
    %p50 = scmp.eq.s32.totalorder %s12, 1
    %p51 = scmp.ne.s32.totalorder %s46, %s48
    %p52 = scmp.eq.s32.totalorder %s12, 0
    %p53 = por %p51, %p52
    %p54 = scmp.ne.s32.totalorder %s46, %s48
    %p55 = scmp.eq.s32.totalorder %s17, 1
    %p56 = por %p54, %p55
    %p57 = scmp.ne.s32.totalorder %s48, %s49
    %p58 = scmp.eq.s32.totalorder %s17, 0
    %p59 = por %p57, %p58
    %p60 = scmp.ne.s32.totalorder %s48, %s49
    %p61 = scmp.eq.s32.totalorder %s18, 1
    %p62 = por %p60, %p61
    %p64 = scmp.ne.s32.totalorder %s49, %s63
    %p65 = scmp.eq.s32.totalorder %s18, 0
    %p66 = por %p64, %p65
    %s68 = sadd.s32 %s67, 1
    %p71 = scmp.eq.s32.totalorder %s12, 1
    %p72 = scmp.ne.s32.totalorder %s67, %s69
    %p73 = scmp.eq.s32.totalorder %s12, 0
    %p74 = por %p72, %p73
    %p75 = scmp.ne.s32.totalorder %s67, %s69
    %p76 = scmp.eq.s32.totalorder %s17, 1
    %p77 = por %p75, %p76
    %p78 = scmp.ne.s32.totalorder %s69, %s70
    %p79 = scmp.eq.s32.totalorder %s17, 0
    %p80 = por %p78, %p79
    %p81 = scmp.ne.s32.totalorder %s69, %s70
    %p82 = scmp.eq.s32.totalorder %s18, 1
    %p83 = por %p81, %p82
    %p85 = scmp.ne.s32.totalorder %s70, %s84
    %p86 = scmp.eq.s32.totalorder %s18, 0
    %p87 = por %p85, %p86
    %s89 = sadd.s32 %s88, 1
    %p92 = scmp.eq.s32.totalorder %s12, 1
    %p93 = scmp.ne.s32.totalorder %s88, %s90
    %p94 = scmp.eq.s32.totalorder %s12, 0
    %p95 = por %p93, %p94
    %p96 = scmp.ne.s32.totalorder %s88, %s90
    %p97 = scmp.eq.s32.totalorder %s17, 1
    %p98 = por %p96, %p97
    %p99 = scmp.ne.s32.totalorder %s90, %s91
    %p100 = scmp.eq.s32.totalorder %s17, 0
    %p101 = por %p99, %p100
    %p102 = scmp.ne.s32.totalorder %s90, %s91
    %p103 = scmp.eq.s32.totalorder %s18, 1
    %p104 = por %p102, %p103
    %p106 = scmp.ne.s32.totalorder %s91, %s105
    %p107 = scmp.eq.s32.totalorder %s18, 0
    %p108 = por %p106, %p107
    %s110 = sadd.s32 %s109, 1
    %p113 = scmp.eq.s32.totalorder %s12, 1
    %p114 = scmp.ne.s32.totalorder %s109, %s111
    %p115 = scmp.eq.s32.totalorder %s12, 0
    %p116 = por %p114, %p115
    %p117 = scmp.ne.s32.totalorder %s109, %s111
    %p118 = scmp.eq.s32.totalorder %s17, 1
    %p119 = por %p117, %p118
    %p120 = scmp.ne.s32.totalorder %s111, %s112
    %p121 = scmp.eq.s32.totalorder %s17, 0
    %p122 = por %p120, %p121
    %p123 = scmp.ne.s32.totalorder %s111, %s112
    %p124 = scmp.eq.s32.totalorder %s18, 1
    %p125 = por %p123, %p124
    %p127 = scmp.ne.s32.totalorder %s112, %s126
    %p128 = scmp.eq.s32.totalorder %s18, 0
    %p129 = por %p127, %p128
    %s130 = ssub.s32 %s12, %s19
    %p131 = scmp.eq.s32.totalorder %s130, 0
    %s133 = sadd.s32 %s132, 1
    %s134 = scalar_select %p131, %s132, %s133
    %p137 = pneg %p131
    %p138 = scmp.eq.s32.totalorder %s12, 1
    %p139 = por %p137, %p138
    %p140 = scmp.ne.s32.totalorder %s132, %s135
    %p141 = scmp.eq.s32.totalorder %s12, 0
    %p142 = por %p140, %p141
    %p143 = scmp.ne.s32.totalorder %s132, %s135
    %p144 = scmp.eq.s32.totalorder %s17, 1
    %p145 = por %p143, %p144
    %p146 = scmp.ne.s32.totalorder %s135, %s136
    %p147 = scmp.eq.s32.totalorder %s17, 0
    %p148 = por %p146, %p147
    %p149 = scmp.ne.s32.totalorder %s135, %s136
    %p150 = scmp.eq.s32.totalorder %s18, 1
    %p151 = por %p149, %p150
    %p153 = scmp.ne.s32.totalorder %s136, %s152
    %p154 = scmp.eq.s32.totalorder %s18, 0
    %p155 = por %p153, %p154
    %s156 = ssub.s32 %s12, %s19
    %p157 = scmp.eq.s32.totalorder %s156, 0
    %s159 = sadd.s32 %s158, 1
    %s160 = scalar_select %p157, %s158, %s159
    %p163 = pneg %p157
    %p164 = scmp.eq.s32.totalorder %s12, 1
    %p165 = por %p163, %p164
    %p166 = scmp.ne.s32.totalorder %s158, %s161
    %p167 = scmp.eq.s32.totalorder %s12, 0
    %p168 = por %p166, %p167
    %p169 = scmp.ne.s32.totalorder %s158, %s161
    %p170 = scmp.eq.s32.totalorder %s17, 1
    %p171 = por %p169, %p170
    %p172 = scmp.ne.s32.totalorder %s161, %s162
    %p173 = scmp.eq.s32.totalorder %s17, 0
    %p174 = por %p172, %p173
    %p175 = scmp.ne.s32.totalorder %s161, %s162
    %p176 = scmp.eq.s32.totalorder %s18, 1
    %p177 = por %p175, %p176
    %p179 = scmp.ne.s32.totalorder %s162, %s178
    %p180 = scmp.eq.s32.totalorder %s18, 0
    %p181 = por %p179, %p180
    %p182 = scmp.le.s32.totalorder 1, %s12
    %p183 = scmp.lt.s32.totalorder %s12, 3
    %p184 = pnand %p182, %p183
    %p185 = pneg %p184
    // Predicated region
    $region9: #{_lambda_.20} parent=5 // pred_check
      _
    $region10: #{_lambda_.20} parent=5 // pred_check_branch
      %187 = sbr.rel (%p184) target = $region12
    $region11: #{_lambda_.20} parent=5 // pred_region
      %s188 = ssub.s32 %s12, 1
      // Predicated region
      $region13: #{_lambda_.20} parent=11 // pred_check
        %p189 = pneg %p59
      $region14: #{_lambda_.20} parent=11 // pred_check_branch
        %191 = sbr.rel (%p189) target = $region16
      $region15: #{_lambda_.20} parent=11 // pred_region
        _
      $region16: #{_lambda_.20} parent=11 // pred_fallthru
        _
      // Predicated region
      $region17: #{_lambda_.20} parent=11 // pred_check
        %p192 = pneg %p80
      $region18: #{_lambda_.20} parent=11 // pred_check_branch
        %194 = sbr.rel (%p192) target = $region20
      $region19: #{_lambda_.20} parent=11 // pred_region
        _
      $region20: #{_lambda_.20} parent=11 // pred_fallthru
        _
      // Predicated region
      $region21: #{_lambda_.20} parent=11 // pred_check
        %p195 = pneg %p101
      $region22: #{_lambda_.20} parent=11 // pred_check_branch
        %197 = sbr.rel (%p195) target = $region24
      $region23: #{_lambda_.20} parent=11 // pred_region
        _
      $region24: #{_lambda_.20} parent=11 // pred_fallthru
        _
      // Predicated region
      $region25: #{_lambda_.20} parent=11 // pred_check
        %p198 = pneg %p122
      $region26: #{_lambda_.20} parent=11 // pred_check_branch
        %200 = sbr.rel (%p198) target = $region28
      $region27: #{_lambda_.20} parent=11 // pred_region
        _
      $region28: #{_lambda_.20} parent=11 // pred_fallthru
        _
    $region12: #{_lambda_.20} parent=5 // pred_fallthru
      _
    %p201 = scmp.lt.s32.totalorder %s12, 2
    // Predicated region
    $region29: #{_lambda_.20} parent=5 // pred_check
      %p202 = pneg %p201
    $region30: #{_lambda_.20} parent=5 // pred_check_branch
      %204 = sbr.rel (%p202) target = $region32
    $region31: #{_lambda_.20} parent=5 // pred_region
      // Predicated region
      $region33: #{_lambda_.20} parent=31 // pred_check
        %p205 = pneg %p32
      $region34: #{_lambda_.20} parent=31 // pred_check_branch
        %207 = sbr.rel (%p205) target = $region36
      $region35: #{_lambda_.20} parent=31 // pred_region
        %p208 = scmp.lt.s32.totalorder %s12, 1
        %s209 = scalar_select %p208, %s12, 1
        %s210 = smul.addr %s209, 8
        %s211 = scalar_lea.vmem %s0, %s210
      $region36: #{_lambda_.20} parent=31 // pred_fallthru
        _
      // Predicated region
      $region37: #{_lambda_.20} parent=31 // pred_check
        %p212 = pneg %p142
      $region38: #{_lambda_.20} parent=31 // pred_check_branch
        %214 = sbr.rel (%p212) target = $region40
      $region39: #{_lambda_.20} parent=31 // pred_region
        %p215 = scmp.lt.s32.totalorder %s12, 1
        %s216 = scalar_select %p215, %s12, 1
        %s217 = smul.addr %s216, 8
        %s218 = scalar_lea.vmem %s5, %s217
      $region40: #{_lambda_.20} parent=31 // pred_fallthru
        _
    $region32: #{_lambda_.20} parent=5 // pred_fallthru
      _
    %p219 = scmp.le.s32.totalorder 1, %s12
    %p220 = scmp.lt.s32.totalorder %s12, 3
    %p221 = pnand %p219, %p220
    %p222 = pneg %p221
    // Predicated region
    $region41: #{_lambda_.20} parent=5 // pred_check
      _
    $region42: #{_lambda_.20} parent=5 // pred_check_branch
      %224 = sbr.rel (%p221) target = $region44
    $region43: #{_lambda_.20} parent=5 // pred_region
      %s225 = ssub.s32 %s12, 1
      %p226 = scmp.lt.s32.totalorder %s17, 1
      %s227 = scalar_select %p226, %s17, 1
      %s228 = smul.addr %s227, 8
      %s229 = scalar_lea.vmem %s0, %s228
      %p230 = pneg %p38
      %p231 = pneg %p35
      %p232 = pneg %p59
      %p233 = pneg %p56
      %p234 = pneg %p80
      %p235 = pneg %p77
      %p236 = pneg %p101
      %p237 = pneg %p98
      %p238 = pneg %p122
      %p239 = pneg %p119
      %p240 = scmp.lt.s32.totalorder %s17, 1
      %s241 = scalar_select %p240, %s17, 1
      %s242 = smul.addr %s241, 8
      %s243 = scalar_lea.vmem %s5, %s242
      %p244 = pneg %p148
      %p245 = pneg %p145
      %p246 = pneg %p174
      %p247 = pneg %p171
      %p248 = scmp.lt.s32.totalorder %s17, 1
      %s249 = scalar_select %p248, %s17, 1
      %s250 = smul.addr %s249, 8
      %s251 = scalar_lea.vmem %s6, %s250
      %p252 = scmp.lt.s32.totalorder %s17, 1
      %s253 = scalar_select %p252, %s17, 1
      %s254 = smul.addr %s253, 8
      %s255 = scalar_lea.vmem %s0, %s254
      %p256 = scmp.lt.s32.totalorder %s17, 1
      %s257 = scalar_select %p256, %s17, 1
      %s258 = smul.addr %s257, 8
      %s259 = scalar_lea.vmem %s5, %s258
      %p260 = scmp.lt.s32.totalorder %s17, 1
      %s261 = scalar_select %p260, %s17, 1
      %s262 = smul.addr %s261, 8
      %s263 = scalar_lea.vmem %s6, %s262
      %v265 = vld [vmem:[%s255] sm:$0xff]
      %v266 = vmul.f32 %v265, %v265
      %vm267 = vcmask 261120
      %v268 = vsel %vm267, %v266, 0.0
      %269 = vadd.xlane.f32.xlu0 %v268
      %v270 = vpop.xlane.xlu0 %269
      %v271 = vrcp.pop 32.0
      %v272 = vmul.f32 %v270, %v271
      %v273 = vld [vmem:[%s1] sm:$0x1]
      %v274 = vadd.f32 %v272, 1e-06
      %v275 = vrsqrt.pop %v274
      %v276 = vmul.f32 %v265, %v275
      %v278 = vlaneseq
      %v279 = vshrl.u32 %v278, 7
      %v280 = vsub.s32 0, %v279
      %v281 = vrot.slane %v273, %v280
      %v283 = vmul.f32 %v281, %v276
      %v284 = vld [vmem:[%s2] sm:$0xf]
      %v285 = vld [vmem:[%s2 + $0x4] sm:$0xf]
      %v286 = vld [vmem:[%s2 + $0x8] sm:$0xf]
      %v287 = vld [vmem:[%s2 + $0xc] sm:$0xf]
      %v288 = vpack.c.bf16 %v283, %v283
      %v293 = vunpack.c.l.b16 %v284
      %v294 = vunpack.c.l.b16 %v285
      %v295 = vunpack.c.l.b16 %v286
      %v296 = vunpack.c.l.b16 %v287
      %v297 = vpack.c.b16 %v294, %v293
      %v298 = vpack.c.b16 %v296, %v295
      %v302 = vsel %vm267, %v288, 0
      %304 = vmatprep.subr.bf16.mxu0 0
      %305 = vmatpush1.bf16.msra.mxu0 %v297
      %306 = vmatprep.subr.bf16.mxu0 0
      %307 = vmatpush1.bf16.msra.mxu0 %v298
      %308 = vmatprep.subr.bf16.mxu0 0
      %309 = vmatpush1.bf16.msra.mxu0 0
      %310 = vmatprep.subr.bf16.mxu0 0
      %311 = vmatpush1.bf16.msra.mxu0 0
      %312 = vmatprep.subr.bf16.mxu0 0
      %313 = vmatpush1.bf16.msra.mxu0 0
      %314 = vmatprep.subr.bf16.mxu0 0
      %315 = vmatpush1.bf16.msra.mxu0 0
      %316 = vmatprep.subr.bf16.mxu0 0
      %317 = vmatpush1.bf16.msra.mxu0 0
      %318 = vmatprep.subr.bf16.mxu0 0
      %319 = vmatpush1.bf16.msra.mxu0 0
      %320 = vmatprep.subr.bf16.mxu0 0
      %321 = vmatpush1.bf16.msra.mxu0 0
      %322 = vmatprep.subr.bf16.mxu0 0
      %323 = vmatpush1.bf16.msra.mxu0 0
      %324 = vmatprep.subr.bf16.mxu0 0
      %325 = vmatpush1.bf16.msra.mxu0 0
      %326 = vmatprep.subr.bf16.mxu0 0
      %327 = vmatpush1.bf16.msra.mxu0 0
      %328 = vmatprep.subr.bf16.mxu0 0
      %329 = vmatpush1.bf16.msra.mxu0 0
      %330 = vmatprep.subr.bf16.mxu0 0
      %331 = vmatpush1.bf16.msra.mxu0 0
      %332 = vmatprep.subr.bf16.mxu0 0
      %333 = vmatpush1.bf16.msra.mxu0 0
      %334 = vmatprep.subr.bf16.mxu0 0
      %335 = vmatpush1.bf16.msra.mxu0 0
      %336 = vmatprep.mubr.bf16.mxu0 0
      %337 = vmatmul.mubr.bf16.gmra.mrb[0].mxu0 %v302
      %v338 = vpop.f32.mrb[0].mxu0
      %v339 = vadd.f32 0.0, %v338
      %v340 = vpop.f32.mrb[0].mxu0
      %v341 = vpop.f32.mrb[0].mxu0
      %v342 = vpop.f32.mrb[0].mxu0
      %343 = vdwg.mxu0
      %v344 = vld [vmem:[%s259] sm:$0xff]
      %v345 = vpack.c.bf16 %v339, %v339
      %347 = vrot.lane.b32.xlu0 %v345, 96
      %v348 = vpop.permute.xlu0 %347
      %vm349 = vcmask 64512
      %v351 = vsel %vm349, %v345, 0
      %v354 = vsel %vm349, %v348, 0
      %356 = vmatprep.subr.bf16.mxu0 0
      %357 = vmatpush1.bf16.xpose.msra.mxu0 %v354
      %358 = vmatprep.subr.bf16.mxu0 0
      %359 = vmatpush1.bf16.xpose.msra.mxu0 0
      %360 = vmatprep.subr.bf16.mxu0 0
      %361 = vmatpush1.bf16.xpose.msra.mxu0 0
      %362 = vmatprep.subr.bf16.mxu0 0
      %363 = vmatpush1.bf16.xpose.msra.mxu0 0
      %364 = vmatprep.subr.bf16.mxu0 0
      %365 = vmatpush1.bf16.xpose.msra.mxu0 0
      %366 = vmatprep.subr.bf16.mxu0 0
      %367 = vmatpush1.bf16.xpose.msra.mxu0 0
      %368 = vmatprep.subr.bf16.mxu0 0
      %369 = vmatpush1.bf16.xpose.msra.mxu0 0
      %370 = vmatprep.subr.bf16.mxu0 0
      %371 = vmatpush1.bf16.xpose.msra.mxu0 0
      %372 = vmatprep.subr.bf16.mxu0 0
      %373 = vmatpush1.bf16.xpose.msra.mxu0 0
      %374 = vmatprep.subr.bf16.mxu0 0
      %375 = vmatpush1.bf16.xpose.msra.mxu0 0
      %376 = vmatprep.subr.bf16.mxu0 0
      %377 = vmatpush1.bf16.xpose.msra.mxu0 0
      %378 = vmatprep.subr.bf16.mxu0 0
      %379 = vmatpush1.bf16.xpose.msra.mxu0 0
      %380 = vmatprep.subr.bf16.mxu0 0
      %381 = vmatpush1.bf16.xpose.msra.mxu0 0
      %382 = vmatprep.subr.bf16.mxu0 0
      %383 = vmatpush1.bf16.xpose.msra.mxu0 0
      %384 = vmatprep.subr.bf16.mxu0 0
      %385 = vmatpush1.bf16.xpose.msra.mxu0 0
      %386 = vmatprep.subr.bf16.mxu0 0
      %387 = vmatpush1.bf16.xpose.msra.mxu0 0
      %388 = vmatprep.mubr.bf16.mxu0 0
      %389 = vmatmul.mubr.bf16.gmra.mrb[0].mxu0 %v351
      %v390 = vpop.f32.mrb[0].mxu0
      %v391 = vadd.f32 %v344, %v390
      %v392 = vpop.f32.mrb[0].mxu0
      %v393 = vpop.f32.mrb[0].mxu0
      %v394 = vpop.f32.mrb[0].mxu0
      %395 = vdwg.mxu0
      %v396 = vld [vmem:[%s4] sm:$0xff]
      %v397 = vadd.f32 %v391, %v396
      %v398 = vsel %vm349, %v397, -inf
      %399 = vmax.xlane.f32.xlu0 %v398
      %v400 = vpop.xlane.xlu0 %399
      %v401 = vsub.f32 %v397, %v400
      %v402 = vmul.f32 %v401, 1.442695
      %v403 = vpow.pop %v402
      %v404 = vsel %vm349, %v403, 0.0
      %405 = vadd.xlane.f32.xlu0 %v404
      %v406 = vpop.xlane.xlu0 %405
      %v407 = vrcp.pop %v406
      %v408 = vmul.f32 %v403, %v407
      %v409 = vpack.c.bf16 %v408, %v408
      %410 = vrot.lane.b32.xlu0 %v345, 64
      %v411 = vpop.permute.xlu0 %410
      %v413 = vsel %vm349, %v409, 0
      %vm415 = vcmask 1043456
      %v417 = vsel %vm415, %v411, 0
      %419 = vmatprep.subr.bf16.mxu0 0
      %420 = vmatpush1.bf16.msra.mxu0 %v417
      %421 = vmatprep.subr.bf16.mxu0 0
      %422 = vmatpush1.bf16.msra.mxu0 0
      %423 = vmatprep.subr.bf16.mxu0 0
      %424 = vmatpush1.bf16.msra.mxu0 0
      %425 = vmatprep.subr.bf16.mxu0 0
      %426 = vmatpush1.bf16.msra.mxu0 0
      %427 = vmatprep.subr.bf16.mxu0 0
      %428 = vmatpush1.bf16.msra.mxu0 0
      %429 = vmatprep.subr.bf16.mxu0 0
      %430 = vmatpush1.bf16.msra.mxu0 0
      %431 = vmatprep.subr.bf16.mxu0 0
      %432 = vmatpush1.bf16.msra.mxu0 0
      %433 = vmatprep.subr.bf16.mxu0 0
      %434 = vmatpush1.bf16.msra.mxu0 0
      %435 = vmatprep.subr.bf16.mxu0 0
      %436 = vmatpush1.bf16.msra.mxu0 0
      %437 = vmatprep.subr.bf16.mxu0 0
      %438 = vmatpush1.bf16.msra.mxu0 0
      %439 = vmatprep.subr.bf16.mxu0 0
      %440 = vmatpush1.bf16.msra.mxu0 0
      %441 = vmatprep.subr.bf16.mxu0 0
      %442 = vmatpush1.bf16.msra.mxu0 0
      %443 = vmatprep.subr.bf16.mxu0 0
      %444 = vmatpush1.bf16.msra.mxu0 0
      %445 = vmatprep.subr.bf16.mxu0 0
      %446 = vmatpush1.bf16.msra.mxu0 0
      %447 = vmatprep.subr.bf16.mxu0 0
      %448 = vmatpush1.bf16.msra.mxu0 0
      %449 = vmatprep.subr.bf16.mxu0 0
      %450 = vmatpush1.bf16.msra.mxu0 0
      %451 = vmatprep.mubr.bf16.mxu0 0
      %452 = vmatmul.mubr.bf16.gmra.mrb[0].mxu0 %v413
      %v453 = vpop.f32.mrb[0].mxu0
      %v454 = vadd.f32 0.0, %v453
      %v455 = vpop.f32.mrb[0].mxu0
      %v456 = vpop.f32.mrb[0].mxu0
      %v457 = vpop.f32.mrb[0].mxu0
      %458 = vdwg.mxu0
      %459 = vst.msk [vmem:[#allocation2] sm:$0xff] %vm349, %v454
      %460 = vrot.lane.b32.xlu0 %v345, 120
      %v461 = vpop.permute.xlu0 %460
      %462 = vrot.lane.b32.xlu0 %v345, 88
      %v463 = vpop.permute.xlu0 %462
      %v465 = vsel %vm349, %v461, 0
      %v468 = vsel %vm349, %v463, 0
      %470 = vmatprep.subr.bf16.mxu0 0
      %471 = vmatpush1.bf16.xpose.msra.mxu0 %v468
      %472 = vmatprep.subr.bf16.mxu0 0
      %473 = vmatpush1.bf16.xpose.msra.mxu0 0
      %474 = vmatprep.subr.bf16.mxu0 0
      %475 = vmatpush1.bf16.xpose.msra.mxu0 0
      %476 = vmatprep.subr.bf16.mxu0 0
      %477 = vmatpush1.bf16.xpose.msra.mxu0 0
      %478 = vmatprep.subr.bf16.mxu0 0
      %479 = vmatpush1.bf16.xpose.msra.mxu0 0
      %480 = vmatprep.subr.bf16.mxu0 0
      %481 = vmatpush1.bf16.xpose.msra.mxu0 0
      %482 = vmatprep.subr.bf16.mxu0 0
      %483 = vmatpush1.bf16.xpose.msra.mxu0 0
      %484 = vmatprep.subr.bf16.mxu0 0
      %485 = vmatpush1.bf16.xpose.msra.mxu0 0
      %486 = vmatprep.subr.bf16.mxu0 0
      %487 = vmatpush1.bf16.xpose.msra.mxu0 0
      %488 = vmatprep.subr.bf16.mxu0 0
      %489 = vmatpush1.bf16.xpose.msra.mxu0 0
      %490 = vmatprep.subr.bf16.mxu0 0
      %491 = vmatpush1.bf16.xpose.msra.mxu0 0
      %492 = vmatprep.subr.bf16.mxu0 0
      %493 = vmatpush1.bf16.xpose.msra.mxu0 0
      %494 = vmatprep.subr.bf16.mxu0 0
      %495 = vmatpush1.bf16.xpose.msra.mxu0 0
      %496 = vmatprep.subr.bf16.mxu0 0
      %497 = vmatpush1.bf16.xpose.msra.mxu0 0
      %498 = vmatprep.subr.bf16.mxu0 0
      %499 = vmatpush1.bf16.xpose.msra.mxu0 0
      %500 = vmatprep.subr.bf16.mxu0 0
      %501 = vmatpush1.bf16.xpose.msra.mxu0 0
      %502 = vmatprep.mubr.bf16.mxu0 0
      %503 = vmatmul.mubr.bf16.gmra.mrb[0].mxu0 %v465
      %v504 = vpop.f32.mrb[0].mxu0
      %v505 = vadd.f32 %v344, %v504
      %v506 = vpop.f32.mrb[0].mxu0
      %v507 = vpop.f32.mrb[0].mxu0
      %v508 = vpop.f32.mrb[0].mxu0
      %509 = vdwg.mxu0
      %s510 = scalar_lea.vmem %s4, 8
      %v511 = vld [vmem:[%s510] sm:$0xff]
      %v512 = vadd.f32 %v505, %v511
      %v513 = vsel %vm349, %v512, -inf
      %514 = vmax.xlane.f32.xlu0 %v513
      %v515 = vpop.xlane.xlu0 %514
      %v516 = vsub.f32 %v512, %v515
      %v517 = vmul.f32 %v516, 1.442695
      %v518 = vpow.pop %v517
      %v519 = vsel %vm349, %v518, 0.0
      %520 = vadd.xlane.f32.xlu0 %v519
      %v521 = vpop.xlane.xlu0 %520
      %v522 = vrcp.pop %v521
      %v523 = vmul.f32 %v518, %v522
      %v524 = vpack.c.bf16 %v523, %v523
      %525 = vrot.lane.b32.xlu0 %v345, 56
      %v526 = vpop.permute.xlu0 %525
      %v528 = vsel %vm349, %v524, 0
      %v531 = vsel %vm415, %v526, 0
      %533 = vmatprep.subr.bf16.mxu0 0
      %534 = vmatpush1.bf16.msra.mxu0 %v531
      %535 = vmatprep.subr.bf16.mxu0 0
      %536 = vmatpush1.bf16.msra.mxu0 0
      %537 = vmatprep.subr.bf16.mxu0 0
      %538 = vmatpush1.bf16.msra.mxu0 0
      %539 = vmatprep.subr.bf16.mxu0 0
      %540 = vmatpush1.bf16.msra.mxu0 0
      %541 = vmatprep.subr.bf16.mxu0 0
      %542 = vmatpush1.bf16.msra.mxu0 0
      %543 = vmatprep.subr.bf16.mxu0 0
      %544 = vmatpush1.bf16.msra.mxu0 0
      %545 = vmatprep.subr.bf16.mxu0 0
      %546 = vmatpush1.bf16.msra.mxu0 0
      %547 = vmatprep.subr.bf16.mxu0 0
      %548 = vmatpush1.bf16.msra.mxu0 0
      %549 = vmatprep.subr.bf16.mxu0 0
      %550 = vmatpush1.bf16.msra.mxu0 0
      %551 = vmatprep.subr.bf16.mxu0 0
      %552 = vmatpush1.bf16.msra.mxu0 0
      %553 = vmatprep.subr.bf16.mxu0 0
      %554 = vmatpush1.bf16.msra.mxu0 0
      %555 = vmatprep.subr.bf16.mxu0 0
      %556 = vmatpush1.bf16.msra.mxu0 0
      %557 = vmatprep.subr.bf16.mxu0 0
      %558 = vmatpush1.bf16.msra.mxu0 0
      %559 = vmatprep.subr.bf16.mxu0 0
      %560 = vmatpush1.bf16.msra.mxu0 0
      %561 = vmatprep.subr.bf16.mxu0 0
      %562 = vmatpush1.bf16.msra.mxu0 0
      %563 = vmatprep.subr.bf16.mxu0 0
      %564 = vmatpush1.bf16.msra.mxu0 0
      %565 = vmatprep.mubr.bf16.mxu0 0
      %566 = vmatmul.mubr.bf16.gmra.mrb[0].mxu0 %v528
      %v567 = vpop.f32.mrb[0].mxu0
      %v568 = vadd.f32 0.0, %v567
      %v569 = vpop.f32.mrb[0].mxu0
      %v570 = vpop.f32.mrb[0].mxu0
      %v571 = vpop.f32.mrb[0].mxu0
      %572 = vdwg.mxu0
      %574 = vrot.lane.b32.xlu0 %v568, 8
      %v575 = vpop.permute.xlu0 %574
      %vm577 = vcmask 130112
      %578 = vst.msk [vmem:[#allocation2] sm:$0xff] %vm577, %v575
      %579 = vrot.lane.b32.xlu0 %v345, 112
      %v580 = vpop.permute.xlu0 %579
      %581 = vrot.lane.b32.xlu0 %v345, 80
      %v582 = vpop.permute.xlu0 %581
      %v584 = vsel %vm349, %v580, 0
      %v587 = vsel %vm349, %v582, 0
      %589 = vmatprep.subr.bf16.mxu0 0
      %590 = vmatpush1.bf16.xpose.msra.mxu0 %v587
      %591 = vmatprep.subr.bf16.mxu0 0
      %592 = vmatpush1.bf16.xpose.msra.mxu0 0
      %593 = vmatprep.subr.bf16.mxu0 0
      %594 = vmatpush1.bf16.xpose.msra.mxu0 0
      %595 = vmatprep.subr.bf16.mxu0 0
      %596 = vmatpush1.bf16.xpose.msra.mxu0 0
      %597 = vmatprep.subr.bf16.mxu0 0
      %598 = vmatpush1.bf16.xpose.msra.mxu0 0
      %599 = vmatprep.subr.bf16.mxu0 0
      %600 = vmatpush1.bf16.xpose.msra.mxu0 0
      %601 = vmatprep.subr.bf16.mxu0 0
      %602 = vmatpush1.bf16.xpose.msra.mxu0 0
      %603 = vmatprep.subr.bf16.mxu0 0
      %604 = vmatpush1.bf16.xpose.msra.mxu0 0
      %605 = vmatprep.subr.bf16.mxu0 0
      %606 = vmatpush1.bf16.xpose.msra.mxu0 0
      %607 = vmatprep.subr.bf16.mxu0 0
      %608 = vmatpush1.bf16.xpose.msra.mxu0 0
      %609 = vmatprep.subr.bf16.mxu0 0
      %610 = vmatpush1.bf16.xpose.msra.mxu0 0
      %611 = vmatprep.subr.bf16.mxu0 0
      %612 = vmatpush1.bf16.xpose.msra.mxu0 0
      %613 = vmatprep.subr.bf16.mxu0 0
      %614 = vmatpush1.bf16.xpose.msra.mxu0 0
      %615 = vmatprep.subr.bf16.mxu0 0
      %616 = vmatpush1.bf16.xpose.msra.mxu0 0
      %617 = vmatprep.subr.bf16.mxu0 0
      %618 = vmatpush1.bf16.xpose.msra.mxu0 0
      %619 = vmatprep.subr.bf16.mxu0 0
      %620 = vmatpush1.bf16.xpose.msra.mxu0 0
      %621 = vmatprep.mubr.bf16.mxu0 0
      %622 = vmatmul.mubr.bf16.gmra.mrb[0].mxu0 %v584
      %v623 = vpop.f32.mrb[0].mxu0
      %v624 = vadd.f32 %v344, %v623
      %v625 = vpop.f32.mrb[0].mxu0
      %v626 = vpop.f32.mrb[0].mxu0
      %v627 = vpop.f32.mrb[0].mxu0
      %628 = vdwg.mxu0
      %s629 = scalar_lea.vmem %s4, 16
      %v630 = vld [vmem:[%s629] sm:$0xff]
      %v631 = vadd.f32 %v624, %v630
      %v632 = vsel %vm349, %v631, -inf
      %633 = vmax.xlane.f32.xlu0 %v632
      %v634 = vpop.xlane.xlu0 %633
      %v635 = vsub.f32 %v631, %v634
      %v636 = vmul.f32 %v635, 1.442695
      %v637 = vpow.pop %v636
      %v638 = vsel %vm349, %v637, 0.0
      %639 = vadd.xlane.f32.xlu0 %v638
      %v640 = vpop.xlane.xlu0 %639
      %v641 = vrcp.pop %v640
      %v642 = vmul.f32 %v637, %v641
      %v643 = vpack.c.bf16 %v642, %v642
      %644 = vrot.lane.b32.xlu0 %v345, 48
      %v645 = vpop.permute.xlu0 %644
      %v647 = vsel %vm349, %v643, 0
      %v650 = vsel %vm415, %v645, 0
      %652 = vmatprep.subr.bf16.mxu0 0
      %653 = vmatpush1.bf16.msra.mxu0 %v650
      %654 = vmatprep.subr.bf16.mxu0 0
      %655 = vmatpush1.bf16.msra.mxu0 0
      %656 = vmatprep.subr.bf16.mxu0 0
      %657 = vmatpush1.bf16.msra.mxu0 0
      %658 = vmatprep.subr.bf16.mxu0 0
      %659 = vmatpush1.bf16.msra.mxu0 0
      %660 = vmatprep.subr.bf16.mxu0 0
      %661 = vmatpush1.bf16.msra.mxu0 0
      %662 = vmatprep.subr.bf16.mxu0 0
      %663 = vmatpush1.bf16.msra.mxu0 0
      %664 = vmatprep.subr.bf16.mxu0 0
      %665 = vmatpush1.bf16.msra.mxu0 0
      %666 = vmatprep.subr.bf16.mxu0 0
      %667 = vmatpush1.bf16.msra.mxu0 0
      %668 = vmatprep.subr.bf16.mxu0 0
      %669 = vmatpush1.bf16.msra.mxu0 0
      %670 = vmatprep.subr.bf16.mxu0 0
      %671 = vmatpush1.bf16.msra.mxu0 0
      %672 = vmatprep.subr.bf16.mxu0 0
      %673 = vmatpush1.bf16.msra.mxu0 0
      %674 = vmatprep.subr.bf16.mxu0 0
      %675 = vmatpush1.bf16.msra.mxu0 0
      %676 = vmatprep.subr.bf16.mxu0 0
      %677 = vmatpush1.bf16.msra.mxu0 0
      %678 = vmatprep.subr.bf16.mxu0 0
      %679 = vmatpush1.bf16.msra.mxu0 0
      %680 = vmatprep.subr.bf16.mxu0 0
      %681 = vmatpush1.bf16.msra.mxu0 0
      %682 = vmatprep.subr.bf16.mxu0 0
      %683 = vmatpush1.bf16.msra.mxu0 0
      %684 = vmatprep.mubr.bf16.mxu0 0
      %685 = vmatmul.mubr.bf16.gmra.mrb[0].mxu0 %v647
      %v686 = vpop.f32.mrb[0].mxu0
      %v687 = vadd.f32 0.0, %v686
      %v688 = vpop.f32.mrb[0].mxu0
      %v689 = vpop.f32.mrb[0].mxu0
      %v690 = vpop.f32.mrb[0].mxu0
      %691 = vdwg.mxu0
      %693 = vrot.lane.b32.xlu0 %v687, 16
      %v694 = vpop.permute.xlu0 %693
      %vm696 = vcmask 195712
      %697 = vst.msk [vmem:[#allocation2] sm:$0xff] %vm696, %v694
      %698 = vrot.lane.b32.xlu0 %v345, 104
      %v699 = vpop.permute.xlu0 %698
      %700 = vrot.lane.b32.xlu0 %v345, 72
      %v701 = vpop.permute.xlu0 %700
      %v703 = vsel %vm349, %v699, 0
      %v706 = vsel %vm349, %v701, 0
      %708 = vmatprep.subr.bf16.mxu0 0
      %709 = vmatpush1.bf16.xpose.msra.mxu0 %v706
      %710 = vmatprep.subr.bf16.mxu0 0
      %711 = vmatpush1.bf16.xpose.msra.mxu0 0
      %712 = vmatprep.subr.bf16.mxu0 0
      %713 = vmatpush1.bf16.xpose.msra.mxu0 0
      %714 = vmatprep.subr.bf16.mxu0 0
      %715 = vmatpush1.bf16.xpose.msra.mxu0 0
      %716 = vmatprep.subr.bf16.mxu0 0
      %717 = vmatpush1.bf16.xpose.msra.mxu0 0
      %718 = vmatprep.subr.bf16.mxu0 0
      %719 = vmatpush1.bf16.xpose.msra.mxu0 0
      %720 = vmatprep.subr.bf16.mxu0 0
      %721 = vmatpush1.bf16.xpose.msra.mxu0 0
      %722 = vmatprep.subr.bf16.mxu0 0
      %723 = vmatpush1.bf16.xpose.msra.mxu0 0
      %724 = vmatprep.subr.bf16.mxu0 0
      %725 = vmatpush1.bf16.xpose.msra.mxu0 0
      %726 = vmatprep.subr.bf16.mxu0 0
      %727 = vmatpush1.bf16.xpose.msra.mxu0 0
      %728 = vmatprep.subr.bf16.mxu0 0
      %729 = vmatpush1.bf16.xpose.msra.mxu0 0
      %730 = vmatprep.subr.bf16.mxu0 0
      %731 = vmatpush1.bf16.xpose.msra.mxu0 0
      %732 = vmatprep.subr.bf16.mxu0 0
      %733 = vmatpush1.bf16.xpose.msra.mxu0 0
      %734 = vmatprep.subr.bf16.mxu0 0
      %735 = vmatpush1.bf16.xpose.msra.mxu0 0
      %736 = vmatprep.subr.bf16.mxu0 0
      %737 = vmatpush1.bf16.xpose.msra.mxu0 0
      %738 = vmatprep.subr.bf16.mxu0 0
      %739 = vmatpush1.bf16.xpose.msra.mxu0 0
      %740 = vmatprep.mubr.bf16.mxu0 0
      %741 = vmatmul.mubr.bf16.gmra.mrb[0].mxu0 %v703
      %v742 = vpop.f32.mrb[0].mxu0
      %v743 = vadd.f32 %v344, %v742
      %v744 = vpop.f32.mrb[0].mxu0
      %v745 = vpop.f32.mrb[0].mxu0
      %v746 = vpop.f32.mrb[0].mxu0
      %747 = vdwg.mxu0
      %s748 = scalar_lea.vmem %s4, 24
      %v749 = vld [vmem:[%s748] sm:$0xff]
      %v750 = vadd.f32 %v743, %v749
      %v751 = vsel %vm349, %v750, -inf
      %752 = vmax.xlane.f32.xlu0 %v751
      %v753 = vpop.xlane.xlu0 %752
      %v754 = vsub.f32 %v750, %v753
      %v755 = vmul.f32 %v754, 1.442695
      %v756 = vpow.pop %v755
      %v757 = vsel %vm349, %v756, 0.0
      %758 = vadd.xlane.f32.xlu0 %v757
      %v759 = vpop.xlane.xlu0 %758
      %v760 = vrcp.pop %v759
      %v761 = vmul.f32 %v756, %v760
      %v762 = vpack.c.bf16 %v761, %v761
      %763 = vrot.lane.b32.xlu0 %v345, 40
      %v764 = vpop.permute.xlu0 %763
      %v766 = vsel %vm349, %v762, 0
      %v769 = vsel %vm415, %v764, 0
      %771 = vmatprep.subr.bf16.mxu0 0
      %772 = vmatpush1.bf16.msra.mxu0 %v769
      %773 = vmatprep.subr.bf16.mxu0 0
      %774 = vmatpush1.bf16.msra.mxu0 0
      %775 = vmatprep.subr.bf16.mxu0 0
      %776 = vmatpush1.bf16.msra.mxu0 0
      %777 = vmatprep.subr.bf16.mxu0 0
      %778 = vmatpush1.bf16.msra.mxu0 0
      %779 = vmatprep.subr.bf16.mxu0 0
      %780 = vmatpush1.bf16.msra.mxu0 0
      %781 = vmatprep.subr.bf16.mxu0 0
      %782 = vmatpush1.bf16.msra.mxu0 0
      %783 = vmatprep.subr.bf16.mxu0 0
      %784 = vmatpush1.bf16.msra.mxu0 0
      %785 = vmatprep.subr.bf16.mxu0 0
      %786 = vmatpush1.bf16.msra.mxu0 0
      %787 = vmatprep.subr.bf16.mxu0 0
      %788 = vmatpush1.bf16.msra.mxu0 0
      %789 = vmatprep.subr.bf16.mxu0 0
      %790 = vmatpush1.bf16.msra.mxu0 0
      %791 = vmatprep.subr.bf16.mxu0 0
      %792 = vmatpush1.bf16.msra.mxu0 0
      %793 = vmatprep.subr.bf16.mxu0 0
      %794 = vmatpush1.bf16.msra.mxu0 0
      %795 = vmatprep.subr.bf16.mxu0 0
      %796 = vmatpush1.bf16.msra.mxu0 0
      %797 = vmatprep.subr.bf16.mxu0 0
      %798 = vmatpush1.bf16.msra.mxu0 0
      %799 = vmatprep.subr.bf16.mxu0 0
      %800 = vmatpush1.bf16.msra.mxu0 0
      %801 = vmatprep.subr.bf16.mxu0 0
      %802 = vmatpush1.bf16.msra.mxu0 0
      %803 = vmatprep.mubr.bf16.mxu0 0
      %804 = vmatmul.mubr.bf16.gmra.mrb[0].mxu0 %v766
      %v805 = vpop.f32.mrb[0].mxu0
      %v806 = vadd.f32 0.0, %v805
      %v807 = vpop.f32.mrb[0].mxu0
      %v808 = vpop.f32.mrb[0].mxu0
      %v809 = vpop.f32.mrb[0].mxu0
      %810 = vdwg.mxu0
      %812 = vrot.lane.b32.xlu0 %v806, 24
      %v813 = vpop.permute.xlu0 %812
      %vm815 = vcmask 261312
      %816 = vst.msk [vmem:[#allocation2] sm:$0xff] %vm815, %v813
      %v817 = vld [vmem:[#allocation2] sm:$0xff]
      %v818 = vpack.c.bf16 %v817, %v817
      %v819 = vld [vmem:[%s3] sm:$0xf]
      %v820 = vld [vmem:[%s3 + $0x4] sm:$0xf]
      %v821 = vld [vmem:[%s3 + $0x8] sm:$0xf]
      %v822 = vld [vmem:[%s3 + $0xc] sm:$0xf]
      %v827 = vunpack.c.l.b16 %v819
      %v828 = vunpack.c.l.b16 %v820
      %v829 = vunpack.c.l.b16 %v821
      %v830 = vunpack.c.l.b16 %v822
      %v831 = vpack.c.b16 %v828, %v827
      %v832 = vpack.c.b16 %v830, %v829
      %v836 = vsel %vm267, %v818, 0
      %838 = vmatprep.subr.bf16.mxu0 0
      %839 = vmatpush1.bf16.msra.mxu0 %v831
      %840 = vmatprep.subr.bf16.mxu0 0
      %841 = vmatpush1.bf16.msra.mxu0 %v832
      %842 = vmatprep.subr.bf16.mxu0 0
      %843 = vmatpush1.bf16.msra.mxu0 0
      %844 = vmatprep.subr.bf16.mxu0 0
      %845 = vmatpush1.bf16.msra.mxu0 0
      %846 = vmatprep.subr.bf16.mxu0 0
      %847 = vmatpush1.bf16.msra.mxu0 0
      %848 = vmatprep.subr.bf16.mxu0 0
      %849 = vmatpush1.bf16.msra.mxu0 0
      %850 = vmatprep.subr.bf16.mxu0 0
      %851 = vmatpush1.bf16.msra.mxu0 0
      %852 = vmatprep.subr.bf16.mxu0 0
      %853 = vmatpush1.bf16.msra.mxu0 0
      %854 = vmatprep.subr.bf16.mxu0 0
      %855 = vmatpush1.bf16.msra.mxu0 0
      %856 = vmatprep.subr.bf16.mxu0 0
      %857 = vmatpush1.bf16.msra.mxu0 0
      %858 = vmatprep.subr.bf16.mxu0 0
      %859 = vmatpush1.bf16.msra.mxu0 0
      %860 = vmatprep.subr.bf16.mxu0 0
      %861 = vmatpush1.bf16.msra.mxu0 0
      %862 = vmatprep.subr.bf16.mxu0 0
      %863 = vmatpush1.bf16.msra.mxu0 0
      %864 = vmatprep.subr.bf16.mxu0 0
      %865 = vmatpush1.bf16.msra.mxu0 0
      %866 = vmatprep.subr.bf16.mxu0 0
      %867 = vmatpush1.bf16.msra.mxu0 0
      %868 = vmatprep.subr.bf16.mxu0 0
      %869 = vmatpush1.bf16.msra.mxu0 0
      %870 = vmatprep.mubr.bf16.mxu0 0
      %871 = vmatmul.mubr.bf16.gmra.mrb[0].mxu0 %v836
      %v872 = vpop.f32.mrb[0].mxu0
      %v873 = vadd.f32 0.0, %v872
      %v874 = vpop.f32.mrb[0].mxu0
      %v875 = vpop.f32.mrb[0].mxu0
      %v876 = vpop.f32.mrb[0].mxu0
      %877 = vdwg.mxu0
      %v878 = vadd.f32 %v265, %v873
      %879 = vst.msk [vmem:[%s263] sm:$0xff] %vm267, %v878
      %p880 = scmp.lt.s32.totalorder %s17, 1
      %s881 = scalar_select %p880, %s17, 1
      %s882 = smul.addr %s881, 8
      %s883 = scalar_lea.vmem %s6, %s882
      // Predicated region
      $region45: #{_lambda_.20} parent=43 // pred_check
        %p884 = pneg %p171
      $region46: #{_lambda_.20} parent=43 // pred_check_branch
        %886 = sbr.rel (%p884) target = $region48
      $region47: #{_lambda_.20} parent=43 // pred_region
        _
      $region48: #{_lambda_.20} parent=43 // pred_fallthru
        _
    $region44: #{_lambda_.20} parent=5 // pred_fallthru
      _
    %p887 = scmp.le.s32.totalorder 2, %s12
    // Predicated region
    $region49: #{_lambda_.20} parent=5 // pred_check
      %p888 = pneg %p887
    $region50: #{_lambda_.20} parent=5 // pred_check_branch
      %890 = sbr.rel (%p888) target = $region52
    $region51: #{_lambda_.20} parent=5 // pred_region
      %s891 = ssub.s32 %s12, 2
      // Predicated region
      $region53: #{_lambda_.20} parent=51 // pred_check
        %p892 = pneg %p177
      $region54: #{_lambda_.20} parent=51 // pred_check_branch
        %894 = sbr.rel (%p892) target = $region56
      $region55: #{_lambda_.20} parent=51 // pred_region
        %p895 = scmp.lt.s32.totalorder %s18, 1
        %s896 = scalar_select %p895, %s18, 1
        %s897 = smul.addr %s896, 8
        %s898 = scalar_lea.vmem %s6, %s897
      $region56: #{_lambda_.20} parent=51 // pred_fallthru
        _
    $region52: #{_lambda_.20} parent=5 // pred_fallthru
      _
  $region6: #{_lambda_.20} parent=0 // loop_footer
    %s16 = sadd.s32 1, %s12
  $region7: #{_lambda_.20} parent=0 // loop_footer_branch
    %11 = sbr.rel target = $region3
  $region8: #{_lambda_.20} parent=0 // loop_exit
    _

</llo_original>
